<compile_context>
chip_gen: v6e
topology: v6e:2x2x1
jax: 0.10.0
libtpu: 0.0.40
codegen_flags: <defaults>
</compile_context>

<pallas_src>
import math

import jax
import jax.numpy as jnp
from jax.experimental import pallas as pl
from jax.experimental.pallas import tpu as pltpu

INPUT_DIM = 5
H1 = 256
H2 = 1024
OUTPUT_DIM = 784
OUT_PAD = 896  # 7 * 128 -> lane-dense padded output width


def _round_up(n, m):
    return ((n + m - 1) // m) * m


def _decoder_kernel(x_ref, w1_ref, b1_ref, w2_ref, b2_ref, w3_ref, b3_ref, o_ref):
    # fc1 + ReLU. K = 5, so this matmul is negligible: keep it in f32 for accuracy.
    h1 = jnp.dot(x_ref[...], w1_ref[...], preferred_element_type=jnp.float32)
    h1 = jnp.maximum(h1 + b1_ref[...], 0.0)

    # fc2 + ReLU  (bf16 x bf16 -> f32 accumulation on the MXU).
    h2 = jnp.dot(h1.astype(jnp.bfloat16), w2_ref[...],
                 preferred_element_type=jnp.float32)
    h2 = jnp.maximum(h2 + b2_ref[...], 0.0)

    # fc3 + Sigmoid.  exp goes to the EUP; the approx reciprocal keeps the divide
    # off the VALU/MXU critical path.  Saturation behaves correctly:
    #   logits -> -inf : exp -> inf, 1/(1+inf) -> 0 ; logits -> +inf : -> 1.
    logits = jnp.dot(h2.astype(jnp.bfloat16), w3_ref[...],
                     preferred_element_type=jnp.float32)
    logits = logits + b3_ref[...]
    o_ref[...] = pl.reciprocal(1.0 + jnp.exp(-logits), approx=True)


def mnist_decoder(x, w1, b1, w2, b2, w3, b3, *, batch_tile=None):
    """x: (B, INPUT_DIM) float32. Returns (B, OUTPUT_DIM) float32."""
    B = x.shape[0]

    # --- pick a batch tile that fills the MXU M dimension ---------------------
    if batch_tile is None:
        batch_tile = _round_up(B, 16) if B <= 256 else 256
    assert batch_tile % 16 == 0, "batch_tile must be a multiple of 16"
    B_pad = _round_up(B, batch_tile)
    grid = (B_pad // batch_tile,)

    # --- pad batch with zero rows; pad output width 784 -> 896 (7*128) --------
    x_p = x if B_pad == B else jnp.pad(x, ((0, B_pad - B), (0, 0)))
    w3_p = jnp.pad(w3, ((0, 0), (0, OUT_PAD - OUTPUT_DIM)))
    b3_p = jnp.pad(b3, ((0, OUT_PAD - OUTPUT_DIM),))

    # --- dtypes: f32 first layer, bf16 big matmuls, f32 biases / acc / output -
    x_f32 = x_p.astype(jnp.float32)
    w1_f32 = w1.astype(jnp.float32)
    w2_bf = w2.astype(jnp.bfloat16)
    w3_bf = w3_p.astype(jnp.bfloat16)
    b1_2d = b1.reshape(1, H1).astype(jnp.float32)
    b2_2d = b2.reshape(1, H2).astype(jnp.float32)
    b3_2d = b3_p.reshape(1, OUT_PAD).astype(jnp.float32)

    flops = 2 * B_pad * (INPUT_DIM * H1 + H1 * H2 + H2 * OUT_PAD)
    bytes_accessed = (
        x_f32.size * 4 + w1_f32.size * 4 + w2_bf.size * 2 + w3_bf.size * 2
        + (H1 + H2 + OUT_PAD) * 4 + B_pad * OUT_PAD * 4
    )
    cost = pl.CostEstimate(
        flops=flops,
        transcendentals=B_pad * OUT_PAD,  # exp in the sigmoid epilogue
        bytes_accessed=bytes_accessed,
    )

    out_padded = pl.pallas_call(
        _decoder_kernel,
        out_shape=jax.ShapeDtypeStruct((B_pad, OUT_PAD), jnp.float32),
        grid_spec=pltpu.PrefetchScalarGridSpec(
            num_scalar_prefetch=0,
            grid=grid,
            in_specs=[
                # activations: tiled over the (padded) batch
                pl.BlockSpec((batch_tile, INPUT_DIM), lambda i: (i, 0)),
                # weights / biases: constant index_map -> fetched once, resident
                # across the whole grid (no per-step re-DMA).
                pl.BlockSpec((INPUT_DIM, H1), lambda i: (0, 0)),
                pl.BlockSpec((1, H1), lambda i: (0, 0)),
                pl.BlockSpec((H1, H2), lambda i: (0, 0)),
                pl.BlockSpec((1, H2), lambda i: (0, 0)),
                pl.BlockSpec((H2, OUT_PAD), lambda i: (0, 0)),
                pl.BlockSpec((1, OUT_PAD), lambda i: (0, 0)),
            ],
            out_specs=pl.BlockSpec((batch_tile, OUT_PAD), lambda i: (i, 0)),
        ),
        compiler_params=pltpu.CompilerParams(
            dimension_semantics=("parallel",),
            vmem_limit_bytes=48 * 1024 * 1024,
        ),
        cost_estimate=cost,
    )(x_f32, w1_f32, b1_2d, w2_bf, b2_2d, w3_bf, b3_2d)

    return out_padded[:B, :OUTPUT_DIM]


def init_params(key):
    """Synthetic params mirroring the PyTorch module.

    Weights: Xavier-normal (gain=1), std = sqrt(2 / (fan_in + fan_out)).
    Biases:  PyTorch nn.Linear default, U(-1/sqrt(fan_in), 1/sqrt(fan_in)).
    Stored as (in_dim, out_dim) - transpose of PyTorch's (out, in).
    """
    keys = jax.random.split(key, 6)

    def xavier(k, fan_in, fan_out):
        std = math.sqrt(2.0 / (fan_in + fan_out))
        return std * jax.random.normal(k, (fan_in, fan_out), dtype=jnp.float32)

    def bias(k, fan_in, fan_out):
        bound = 1.0 / math.sqrt(fan_in)
        return jax.random.uniform(
            k, (fan_out,), minval=-bound, maxval=bound, dtype=jnp.float32
        )

    w1 = xavier(keys[0], INPUT_DIM, H1)
    b1 = bias(keys[1], INPUT_DIM, H1)
    w2 = xavier(keys[2], H1, H2)
    b2 = bias(keys[3], H1, H2)
    w3 = xavier(keys[4], H2, OUTPUT_DIM)
    b3 = bias(keys[5], H2, OUTPUT_DIM)
    return w1, b1, w2, b2, w3, b3


def reference(x, w1, b1, w2, b2, w3, b3):
    h1 = jnp.maximum(x @ w1 + b1, 0.0)
    h2 = jnp.maximum(h1 @ w2 + b2, 0.0)
    return jax.nn.sigmoid(h2 @ w3 + b3)


if __name__ == "__main__":
    key = jax.random.PRNGKey(0)
    pkey, xkey = jax.random.split(key)

    params = init_params(pkey)

    # batch=30 deliberately not a multiple of the tile, to exercise the pad/slice path.
    batch = 30
    x = jax.random.normal(xkey, (batch, INPUT_DIM), dtype=jnp.float32)

    out = mnist_decoder(x, *params)
    out = jax.block_until_ready(out)

    ref = reference(x, *params)
    assert out.shape == (batch, OUTPUT_DIM)
    max_err = float(jnp.max(jnp.abs(out - ref)))
    # bf16 matmul operands (fc2/fc3) + approx reciprocal => relaxed tolerance.
    assert max_err < 1e-2, f"mismatch vs JAX reference: max_err={max_err}"

    print("KERNEL_OK")
</pallas_src>

<mosaic_0001>
module attributes {stable_mosaic.version = 11 : i64} {
  func.func @_decoder_kernel(%arg0: i32, %arg1: memref<32x5xf32, #tpu.memory_space<vmem>>, %arg2: memref<5x256xf32, #tpu.memory_space<vmem>>, %arg3: memref<1x256xf32, #tpu.memory_space<vmem>>, %arg4: memref<256x1024xbf16, #tpu.memory_space<vmem>>, %arg5: memref<1x1024xf32, #tpu.memory_space<vmem>>, %arg6: memref<1024x896xbf16, #tpu.memory_space<vmem>>, %arg7: memref<1x896xf32, #tpu.memory_space<vmem>>, %arg8: memref<32x896xf32, #tpu.memory_space<vmem>>) attributes {dimension_semantics = [#tpu.dimension_semantics<parallel>], iteration_bounds = array<i64: 1>, scalar_prefetch = 0 : i64, scratch_operands = 0 : i64, tpu.core_type = #tpu.core_type<tc>, window_params = [{transform_indices = @transform_0, window_bounds = array<i64: 32, 5>}, {pipeline_mode = #tpu.pipeline_mode<synchronous>, transform_indices = @transform_1, window_bounds = array<i64: 5, 256>}, {pipeline_mode = #tpu.pipeline_mode<synchronous>, transform_indices = @transform_2, window_bounds = array<i64: 1, 256>}, {pipeline_mode = #tpu.pipeline_mode<synchronous>, transform_indices = @transform_3, window_bounds = array<i64: 256, 1024>}, {pipeline_mode = #tpu.pipeline_mode<synchronous>, transform_indices = @transform_4, window_bounds = array<i64: 1, 1024>}, {pipeline_mode = #tpu.pipeline_mode<synchronous>, transform_indices = @transform_5, window_bounds = array<i64: 1024, 896>}, {pipeline_mode = #tpu.pipeline_mode<synchronous>, transform_indices = @transform_6, window_bounds = array<i64: 1, 896>}, {transform_indices = @transform_7, window_bounds = array<i64: 32, 896>}]} {
    %c0 = arith.constant 0 : index
    %c0_0 = arith.constant 0 : index
    %0 = vector.load %arg1[%c0, %c0_0] : memref<32x5xf32, #tpu.memory_space<vmem>>, vector<32x5xf32>
    %c0_1 = arith.constant 0 : index
    %c0_2 = arith.constant 0 : index
    %1 = vector.load %arg2[%c0_1, %c0_2] : memref<5x256xf32, #tpu.memory_space<vmem>>, vector<5x256xf32>
    %cst = arith.constant dense<0.000000e+00> : vector<32x256xf32>
    %2 = tpu.matmul %0, %1, %cst {dimension_numbers = #tpu.dot_dimension_numbers<[1], [0], [0], [1], [0, 0, 1, 1], [], []>} : vector<32x5xf32>, vector<5x256xf32>, vector<32x256xf32> -> vector<32x256xf32>
    %c0_3 = arith.constant 0 : index
    %c0_4 = arith.constant 0 : index
    %3 = vector.load %arg3[%c0_3, %c0_4] : memref<1x256xf32, #tpu.memory_space<vmem>>, vector<1x256xf32>
    %4 = vector.broadcast %3 : vector<1x256xf32> to vector<32x256xf32>
    %5 = arith.addf %2, %4 : vector<32x256xf32>
    %cst_5 = arith.constant 0.000000e+00 : f32
    %6 = vector.broadcast %cst_5 : f32 to vector<32x256xf32>
    %7 = arith.maximumf %5, %6 : vector<32x256xf32>
    %8 = arith.truncf %7 : vector<32x256xf32> to vector<32x256xbf16>
    %c0_6 = arith.constant 0 : index
    %c0_7 = arith.constant 0 : index
    %9 = vector.load %arg4[%c0_6, %c0_7] : memref<256x1024xbf16, #tpu.memory_space<vmem>>, vector<256x1024xbf16>
    %cst_8 = arith.constant dense<0.000000e+00> : vector<32x1024xf32>
    %10 = tpu.matmul %8, %9, %cst_8 {dimension_numbers = #tpu.dot_dimension_numbers<[1], [0], [0], [1], [0, 0, 1, 1], [], []>} : vector<32x256xbf16>, vector<256x1024xbf16>, vector<32x1024xf32> -> vector<32x1024xf32>
    %c0_9 = arith.constant 0 : index
    %c0_10 = arith.constant 0 : index
    %11 = vector.load %arg5[%c0_9, %c0_10] : memref<1x1024xf32, #tpu.memory_space<vmem>>, vector<1x1024xf32>
    %12 = vector.broadcast %11 : vector<1x1024xf32> to vector<32x1024xf32>
    %13 = arith.addf %10, %12 : vector<32x1024xf32>
    %cst_11 = arith.constant 0.000000e+00 : f32
    %14 = vector.broadcast %cst_11 : f32 to vector<32x1024xf32>
    %15 = arith.maximumf %13, %14 : vector<32x1024xf32>
    %16 = arith.truncf %15 : vector<32x1024xf32> to vector<32x1024xbf16>
    %c0_12 = arith.constant 0 : index
    %c0_13 = arith.constant 0 : index
    %17 = vector.load %arg6[%c0_12, %c0_13] : memref<1024x896xbf16, #tpu.memory_space<vmem>>, vector<1024x896xbf16>
    %cst_14 = arith.constant dense<0.000000e+00> : vector<32x896xf32>
    %18 = tpu.matmul %16, %17, %cst_14 {dimension_numbers = #tpu.dot_dimension_numbers<[1], [0], [0], [1], [0, 0, 1, 1], [], []>} : vector<32x1024xbf16>, vector<1024x896xbf16>, vector<32x896xf32> -> vector<32x896xf32>
    %c0_15 = arith.constant 0 : index
    %c0_16 = arith.constant 0 : index
    %19 = vector.load %arg7[%c0_15, %c0_16] : memref<1x896xf32, #tpu.memory_space<vmem>>, vector<1x896xf32>
    %20 = vector.broadcast %19 : vector<1x896xf32> to vector<32x896xf32>
    %21 = arith.addf %18, %20 : vector<32x896xf32>
    %cst_17 = arith.constant 0.000000e+00 : f32
    %22 = vector.broadcast %cst_17 : f32 to vector<32x896xf32>
    %23 = arith.subf %22, %21 : vector<32x896xf32>
    %24 = math.exp %23 : vector<32x896xf32>
    %cst_18 = arith.constant 1.000000e+00 : f32
    %25 = vector.broadcast %cst_18 : f32 to vector<32x896xf32>
    %26 = arith.addf %25, %24 : vector<32x896xf32>
    %27 = tpu.reciprocal %26 {approx = true} : vector<32x896xf32> -> vector<32x896xf32>
    %c0_19 = arith.constant 0 : index
    %c0_20 = arith.constant 0 : index
    %28 = vector.load %arg8[%c0_19, %c0_20] : memref<32x896xf32, #tpu.memory_space<vmem>>, vector<32x896xf32>
    tpu.vector_store %arg8[%c0_19, %c0_20], %27 {strides = array<i32>} : memref<32x896xf32, #tpu.memory_space<vmem>>, vector<32x896xf32>,
    return
  }
  func.func @transform_0(%arg0: i32) -> (i32, i32) {
    %c0_i32 = arith.constant 0 : i32
    %c0_i32_0 = arith.constant 0 : i32
    return %arg0, %c0_i32 : i32, i32
  }
  func.func @transform_1(%arg0: i32) -> (i32, i32) {
    %c0_i32 = arith.constant 0 : i32
    %c0_i32_0 = arith.constant 0 : i32
    %c0_i32_1 = arith.constant 0 : i32
    return %c0_i32, %c0_i32_0 : i32, i32
  }
  func.func @transform_2(%arg0: i32) -> (i32, i32) {
    %c0_i32 = arith.constant 0 : i32
    %c0_i32_0 = arith.constant 0 : i32
    %c0_i32_1 = arith.constant 0 : i32
    return %c0_i32, %c0_i32_0 : i32, i32
  }
  func.func @transform_3(%arg0: i32) -> (i32, i32) {
    %c0_i32 = arith.constant 0 : i32
    %c0_i32_0 = arith.constant 0 : i32
    %c0_i32_1 = arith.constant 0 : i32
    return %c0_i32, %c0_i32_0 : i32, i32
  }
  func.func @transform_4(%arg0: i32) -> (i32, i32) {
    %c0_i32 = arith.constant 0 : i32
    %c0_i32_0 = arith.constant 0 : i32
    %c0_i32_1 = arith.constant 0 : i32
    return %c0_i32, %c0_i32_0 : i32, i32
  }
  func.func @transform_5(%arg0: i32) -> (i32, i32) {
    %c0_i32 = arith.constant 0 : i32
    %c0_i32_0 = arith.constant 0 : i32
    %c0_i32_1 = arith.constant 0 : i32
    return %c0_i32, %c0_i32_0 : i32, i32
  }
  func.func @transform_6(%arg0: i32) -> (i32, i32) {
    %c0_i32 = arith.constant 0 : i32
    %c0_i32_0 = arith.constant 0 : i32
    %c0_i32_1 = arith.constant 0 : i32
    return %c0_i32, %c0_i32_0 : i32, i32
  }
  func.func @transform_7(%arg0: i32) -> (i32, i32) {
    %c0_i32 = arith.constant 0 : i32
    %c0_i32_0 = arith.constant 0 : i32
    return %arg0, %c0_i32 : i32, i32
  }
}

</mosaic_0001>

<llo_original>
// kernel: tpu_custom_call.1
$region0: #{tpu_custom_call.1}
  #allocation0 [shape = 'u32[]', space=smem, size = 0x4, offset = 0x4, fixed_abs, tag = 'smem constant byte address 0x4 - core index']
  #allocation1 [shape = 'u32[144,128]{1,0:T(1,128)}', space=vmem, size = 0x12000, scoped, tag = 'internal scratch']
  %s0 = inlined_call_operand.vmem [shape: f32[32,5], index: 0, kind: input, shape index: {}]
  %s1 = inlined_call_operand.hbm [shape: f32[5,256], index: 1, kind: input, shape index: {}]
  %s2 = inlined_call_operand.hbm [shape: f32[1,256], index: 2, kind: input, shape index: {}]
  %s3 = inlined_call_operand.hbm [shape: bf16[256,1024], index: 3, kind: input, shape index: {}]
  %s4 = inlined_call_operand.hbm [shape: f32[1,1024], index: 4, kind: input, shape index: {}]
  %s5 = inlined_call_operand.hbm [shape: bf16[1024,896], index: 5, kind: input, shape index: {}]
  %s6 = inlined_call_operand.hbm [shape: f32[1,896], index: 6, kind: input, shape index: {}]
  %s7 = inlined_call_operand.hbm [shape: f32[32,896], index: 7, kind: output, shape index: {}]
  %s8 = sld [smem:[#allocation0]]
  $region62: #{tpu_custom_call.1} parent=0
    _
  %s10 = ssub.s32 1, %s8
  %s11 = scalar_select 0, %s10, %s8
  $region1: #{tpu_custom_call.1} parent=0
    #allocation2 [shape = 'u8[8192]{0}', space=vmem, size = 0x2000, scoped, tag = 'input window, operand 1, single buffered']
    #allocation3 [shape = 's32[1]{0}', space=sflag, size = 0x4, scoped, tag = 'scoped memory for tpu_custom_call.1']
    #allocation4 [shape = 's32[1]{0}', space=sflag, size = 0x4, scoped, tag = 'scoped memory for tpu_custom_call.1']
    #allocation5 [shape = 'u8[1024]{0}', space=vmem, size = 0x400, scoped, tag = 'input window, operand 2, single buffered']
    #allocation6 [shape = 's32[1]{0}', space=sflag, size = 0x4, scoped, tag = 'scoped memory for tpu_custom_call.1']
    #allocation7 [shape = 'u8[524288]{0}', space=vmem, size = 0x80000, scoped, tag = 'input window, operand 3, single buffered']
    #allocation8 [shape = 'u8[4096]{0}', space=vmem, size = 0x1000, scoped, tag = 'input window, operand 4, single buffered']
    #allocation9 [shape = 's32[1]{0}', space=sflag, size = 0x4, scoped, tag = 'scoped memory for tpu_custom_call.1']
    #allocation10 [shape = 'u8[1835008]{0}', space=vmem, size = 0x1c0000, scoped, tag = 'input window, operand 5, single buffered']
    #allocation11 [shape = 'u8[3584]{0}', space=vmem, size = 0x1000, scoped, tag = 'input window, operand 6, single buffered']
    #allocation12 [shape = 's32[1]{0}', space=sflag, size = 0x4, scoped, tag = 'scoped memory for tpu_custom_call.1']
    #allocation13 [shape = 'u8[114688]{0}', space=vmem, size = 0x1c000, scoped, tag = 'output window, operand 0, single buffered']
    %12 = vsyncpa [#allocation3], 0
    %13 = vsyncpa [#allocation6], 0
    %14 = vsyncpa [#allocation9], 0
    %15 = vsyncpa [#allocation12], 0
    %16 = vsyncpa [#allocation4], 0
    // Predicated region
    $region2: #{tpu_custom_call.1} parent=1 // pred_check
      _
    $region3: #{tpu_custom_call.1} parent=1 // pred_check_branch
      %18 = sbr.rel (0) target = $region5
    $region4: #{tpu_custom_call.1} parent=1 // pred_region
      _
    $region5: #{tpu_custom_call.1} parent=1 // pred_fallthru
      _
    // Predicated region
    $region6: #{tpu_custom_call.1} parent=1 // pred_check
      _
    $region7: #{tpu_custom_call.1} parent=1 // pred_check_branch
      %20 = sbr.rel (0) target = $region9
    $region8: #{tpu_custom_call.1} parent=1 // pred_region
      %s22 = ssub.s32 256, 256
      %23 = vsyncadd [#allocation3], %s22
      %s25 = sshll.u32 [#allocation2], 4
      %s26 = int_to_ptr.vmem [resolvable:$true] %s25
      %28 = dma.hbm_to_vmem [thread:$0]  %s1, 256, %s26, [#allocation3]
    $region9: #{tpu_custom_call.1} parent=1 // pred_fallthru
      _
    // Predicated region
    $region10: #{tpu_custom_call.1} parent=1 // pred_check
      _
    $region11: #{tpu_custom_call.1} parent=1 // pred_check_branch
      %30 = sbr.rel (0) target = $region13
    $region12: #{tpu_custom_call.1} parent=1 // pred_region
      %s32 = ssub.s32 32, 32
      %33 = vsyncadd [#allocation6], %s32
      %s35 = sshll.u32 [#allocation5], 4
      %s36 = int_to_ptr.vmem [resolvable:$true] %s35
      %38 = dma.hbm_to_vmem [thread:$0]  %s2, 32, %s36, [#allocation6]
    $region13: #{tpu_custom_call.1} parent=1 // pred_fallthru
      _
    // Predicated region
    $region14: #{tpu_custom_call.1} parent=1 // pred_check
      _
    $region15: #{tpu_custom_call.1} parent=1 // pred_check_branch
      %40 = sbr.rel (0) target = $region17
    $region16: #{tpu_custom_call.1} parent=1 // pred_region
      %s42 = ssub.s32 16384, 16384
      %43 = vsyncadd [#allocation6], %s42
      %s44 = sshll.u32 [#allocation7], 4
      %s45 = int_to_ptr.vmem [resolvable:$true] %s44
      %50 = dma.hbm_to_vmem [thread:$0]  %s3, 16384, %s45, [#allocation6], 512, 512, 32
    $region17: #{tpu_custom_call.1} parent=1 // pred_fallthru
      _
    // Predicated region
    $region18: #{tpu_custom_call.1} parent=1 // pred_check
      _
    $region19: #{tpu_custom_call.1} parent=1 // pred_check_branch
      %52 = sbr.rel (0) target = $region21
    $region20: #{tpu_custom_call.1} parent=1 // pred_region
      %s54 = ssub.s32 128, 128
      %55 = vsyncadd [#allocation9], %s54
      %s57 = sshll.u32 [#allocation8], 4
      %s58 = int_to_ptr.vmem [resolvable:$true] %s57
      %60 = dma.hbm_to_vmem [thread:$0]  %s4, 128, %s58, [#allocation9]
    $region21: #{tpu_custom_call.1} parent=1 // pred_fallthru
      _
    // Predicated region
    $region22: #{tpu_custom_call.1} parent=1 // pred_check
      _
    $region23: #{tpu_custom_call.1} parent=1 // pred_check_branch
      %62 = sbr.rel (0) target = $region25
    $region24: #{tpu_custom_call.1} parent=1 // pred_region
      %s64 = ssub.s32 57344, 57344
      %65 = vsyncadd [#allocation9], %s64
      %s66 = sshll.u32 [#allocation10], 4
      %s67 = int_to_ptr.vmem [resolvable:$true] %s66
      %72 = dma.hbm_to_vmem [thread:$0]  %s5, 57344, %s67, [#allocation9], 448, 448, 28
    $region25: #{tpu_custom_call.1} parent=1 // pred_fallthru
      _
    // Predicated region
    $region26: #{tpu_custom_call.1} parent=1 // pred_check
      _
    $region27: #{tpu_custom_call.1} parent=1 // pred_check_branch
      %74 = sbr.rel (0) target = $region29
    $region28: #{tpu_custom_call.1} parent=1 // pred_region
      %s76 = ssub.s32 112, 112
      %77 = vsyncadd [#allocation12], %s76
      %s79 = sshll.u32 [#allocation11], 4
      %s80 = int_to_ptr.vmem [resolvable:$true] %s79
      %82 = dma.hbm_to_vmem [thread:$0]  %s6, 112, %s80, [#allocation12]
    $region29: #{tpu_custom_call.1} parent=1 // pred_fallthru
      _
    // Predicated region
    $region30: #{tpu_custom_call.1} parent=1 // pred_check
      _
    $region31: #{tpu_custom_call.1} parent=1 // pred_check_branch
      %84 = sbr.rel (0) target = $region33
    $region32: #{tpu_custom_call.1} parent=1 // pred_region
      %85 = dma.done [#allocation3], 256
    $region33: #{tpu_custom_call.1} parent=1 // pred_fallthru
      _
    // Predicated region
    $region34: #{tpu_custom_call.1} parent=1 // pred_check
      _
    $region35: #{tpu_custom_call.1} parent=1 // pred_check_branch
      %87 = sbr.rel (0) target = $region37
    $region36: #{tpu_custom_call.1} parent=1 // pred_region
      %88 = dma.done [#allocation6], 32
    $region37: #{tpu_custom_call.1} parent=1 // pred_fallthru
      _
    // Predicated region
    $region38: #{tpu_custom_call.1} parent=1 // pred_check
      _
    $region39: #{tpu_custom_call.1} parent=1 // pred_check_branch
      %90 = sbr.rel (0) target = $region41
    $region40: #{tpu_custom_call.1} parent=1 // pred_region
      %91 = dma.done [#allocation6], 16384
    $region41: #{tpu_custom_call.1} parent=1 // pred_fallthru
      _
    // Predicated region
    $region42: #{tpu_custom_call.1} parent=1 // pred_check
      _
    $region43: #{tpu_custom_call.1} parent=1 // pred_check_branch
      %93 = sbr.rel (0) target = $region45
    $region44: #{tpu_custom_call.1} parent=1 // pred_region
      %94 = dma.done [#allocation9], 128
    $region45: #{tpu_custom_call.1} parent=1 // pred_fallthru
      _
    // Predicated region
    $region46: #{tpu_custom_call.1} parent=1 // pred_check
      _
    $region47: #{tpu_custom_call.1} parent=1 // pred_check_branch
      %96 = sbr.rel (0) target = $region49
    $region48: #{tpu_custom_call.1} parent=1 // pred_region
      %97 = dma.done [#allocation9], 57344
    $region49: #{tpu_custom_call.1} parent=1 // pred_fallthru
      _
    // Predicated region
    $region50: #{tpu_custom_call.1} parent=1 // pred_check
      _
    $region51: #{tpu_custom_call.1} parent=1 // pred_check_branch
      %99 = sbr.rel (0) target = $region53
    $region52: #{tpu_custom_call.1} parent=1 // pred_region
      %100 = dma.done [#allocation12], 112
    $region53: #{tpu_custom_call.1} parent=1 // pred_fallthru
      _
    %v102 = vld [vmem:[%s0] sm:$0xff]
    %v103 = vld [vmem:[%s0 + $0x8] sm:$0xff]
    %v104 = vld [vmem:[%s0 + $0x10] sm:$0xff]
    %v105 = vld [vmem:[%s0 + $0x18] sm:$0xff]
    %v106 = vld [vmem:[#allocation2] sm:$0x1f]
    %v107 = vld [vmem:[#allocation2 + $0x8] sm:$0x1f]
    %v108 = vld [vmem:[#allocation5] sm:$0x3]
    %v110 = vlaneseq
    %v111 = vshrl.u32 %v110, 7
    %v112 = vsub.s32 0, %v111
    %v113 = vrot.slane %v108, %v112
    %v114 = vlaneseq
    %v115 = vshrl.u32 %v114, 7
    %v116 = vsub.s32 1, %v115
    %v117 = vrot.slane %v108, %v116
    %vm120 = vcmask 39936
    %v122 = vsel %vm120, %v102, 0
    %v125 = vsel %vm120, %v103, 0
    %v128 = vsel %vm120, %v104, 0
    %v131 = vsel %vm120, %v105, 0
    %vm133 = vcmask 1044480
    %v135 = vsel %vm133, %v106, 0
    %v138 = vsel %vm133, %v107, 0
    %140 = vmatprep.subr.mxu0 0.0
    %141 = vmatpush1.msra.mxu0 0.0
    %142 = vmatprep.subr.mxu0 0.0
    %143 = vmatpush1.msra.mxu0 0.0
    %144 = vmatprep.subr.mxu0 0.0
    %145 = vmatpush1.msra.mxu0 0.0
    %146 = vmatprep.subr.mxu0 0.0
    %147 = vmatpush1.msra.mxu0 0.0
    %148 = vmatprep.subr.mxu0 0.0
    %149 = vmatpush1.msra.mxu0 0.0
    %150 = vmatprep.subr.mxu0 0.0
    %151 = vmatpush1.msra.mxu0 0.0
    %152 = vmatprep.subr.mxu0 0.0
    %153 = vmatpush1.msra.mxu0 0.0
    %154 = vmatprep.subr.mxu0 0.0
    %155 = vmatpush1.msra.mxu0 0.0
    %156 = vmatprep.subr.mxu0 0.0
    %157 = vmatpush1.msra.mxu0 0.0
    %158 = vmatprep.subr.mxu0 0.0
    %159 = vmatpush1.msra.mxu0 0.0
    %160 = vmatprep.subr.mxu0 0.0
    %161 = vmatpush1.msra.mxu0 0.0
    %162 = vmatprep.subr.mxu0 0.0
    %163 = vmatpush1.msra.mxu0 0.0
    %164 = vmatprep.subr.mxu0 0.0
    %165 = vmatpush1.msra.mxu0 0.0
    %166 = vmatprep.subr.mxu0 0.0
    %167 = vmatpush1.msra.mxu0 0.0
    %168 = vmatprep.subr.mxu0 0.0
    %169 = vmatpush1.msra.mxu0 0.0
    %170 = vmatprep.subr.mxu0 %v138
    %171 = vmatpush1.msra.mxu0 %v135
    %172 = vmatprep.subr.mxu0 0.0
    %173 = vmatpush2.msra.mxu0 0.0
    %174 = vmatprep.subr.mxu0 0.0
    %175 = vmatpush2.msra.mxu0 0.0
    %176 = vmatprep.subr.mxu0 0.0
    %177 = vmatpush2.msra.mxu0 0.0
    %178 = vmatprep.subr.mxu0 0.0
    %179 = vmatpush2.msra.mxu0 0.0
    %180 = vmatprep.subr.mxu0 0.0
    %181 = vmatpush2.msra.mxu0 0.0
    %182 = vmatprep.subr.mxu0 0.0
    %183 = vmatpush2.msra.mxu0 0.0
    %184 = vmatprep.subr.mxu0 0.0
    %185 = vmatpush2.msra.mxu0 0.0
    %186 = vmatprep.subr.mxu0 0.0
    %187 = vmatpush2.msra.mxu0 0.0
    %188 = vmatprep.subr.mxu0 0.0
    %189 = vmatpush2.msra.mxu0 0.0
    %190 = vmatprep.subr.mxu0 0.0
    %191 = vmatpush2.msra.mxu0 0.0
    %192 = vmatprep.subr.mxu0 0.0
    %193 = vmatpush2.msra.mxu0 0.0
    %194 = vmatprep.subr.mxu0 0.0
    %195 = vmatpush2.msra.mxu0 0.0
    %196 = vmatprep.subr.mxu0 0.0
    %197 = vmatpush2.msra.mxu0 0.0
    %198 = vmatprep.subr.mxu0 0.0
    %199 = vmatpush2.msra.mxu0 0.0
    %200 = vmatprep.subr.mxu0 0.0
    %201 = vmatpush2.msra.mxu0 0.0
    %202 = vmatprep.subr.mxu0 0.0
    %203 = vmatpush2.msra.mxu0 0.0
    %204 = vmatprep.mubr.f32.mxu0 0.0
    %205 = vmatmul.mubr.f32.gmra.mxu0 %v122
    %v206 = vpop.f32.mrf.mxu0
    %v207 = vadd.f32 %v113, %v206
    %v208 = vpop.f32.mrf.mxu0
    %v209 = vadd.f32 %v117, %v208
    %210 = vmatprep.mubr.f32.mxu0 0.0
    %211 = vmatmul.mubr.f32.gmra.mxu0 %v125
    %v212 = vpop.f32.mrf.mxu0
    %v213 = vadd.f32 %v113, %v212
    %v214 = vpop.f32.mrf.mxu0
    %v215 = vadd.f32 %v117, %v214
    %216 = vmatprep.mubr.f32.mxu0 0.0
    %217 = vmatmul.mubr.f32.gmra.mxu0 %v128
    %v218 = vpop.f32.mrf.mxu0
    %v219 = vadd.f32 %v113, %v218
    %v220 = vpop.f32.mrf.mxu0
    %v221 = vadd.f32 %v117, %v220
    %222 = vmatprep.mubr.f32.mxu0 0.0
    %223 = vmatmul.mubr.f32.gmra.mxu0 %v131
    %v224 = vpop.f32.mrf.mxu0
    %v225 = vadd.f32 %v113, %v224
    %v226 = vpop.f32.mrf.mxu0
    %v227 = vadd.f32 %v117, %v226
    %228 = vdwg.mxu0
    %v229 = vmax.f32 %v207, 0.0
    %v230 = vmax.f32 %v209, 0.0
    %v231 = vmax.f32 %v213, 0.0
    %v232 = vmax.f32 %v215, 0.0
    %v233 = vmax.f32 %v219, 0.0
    %v234 = vmax.f32 %v221, 0.0
    %v235 = vmax.f32 %v225, 0.0
    %v236 = vmax.f32 %v227, 0.0
    %v237 = vpack.c.bf16 %v231, %v229
    %v238 = vpack.c.bf16 %v232, %v230
    %v239 = vpack.c.bf16 %v235, %v233
    %v240 = vpack.c.bf16 %v236, %v234
    %v241 = vld [vmem:[#allocation7] sm:$0xff]
    %v242 = vld [vmem:[#allocation7 + $0x8] sm:$0xff]
    %v243 = vld [vmem:[#allocation7 + $0x10] sm:$0xff]
    %v244 = vld [vmem:[#allocation7 + $0x18] sm:$0xff]
    %v245 = vld [vmem:[#allocation7 + $0x20] sm:$0xff]
    %v246 = vld [vmem:[#allocation7 + $0x28] sm:$0xff]
    %v247 = vld [vmem:[#allocation7 + $0x30] sm:$0xff]
    %v248 = vld [vmem:[#allocation7 + $0x38] sm:$0xff]
    %v249 = vld [vmem:[#allocation7 + $0x40] sm:$0xff]
    %v250 = vld [vmem:[#allocation7 + $0x48] sm:$0xff]
    %v251 = vld [vmem:[#allocation7 + $0x50] sm:$0xff]
    %v252 = vld [vmem:[#allocation7 + $0x58] sm:$0xff]
    %v253 = vld [vmem:[#allocation7 + $0x60] sm:$0xff]
    %v254 = vld [vmem:[#allocation7 + $0x68] sm:$0xff]
    %v255 = vld [vmem:[#allocation7 + $0x70] sm:$0xff]
    %v256 = vld [vmem:[#allocation7 + $0x78] sm:$0xff]
    %v257 = vld [vmem:[#allocation7 + $0x80] sm:$0xff]
    %v258 = vld [vmem:[#allocation7 + $0x88] sm:$0xff]
    %v259 = vld [vmem:[#allocation7 + $0x90] sm:$0xff]
    %v260 = vld [vmem:[#allocation7 + $0x98] sm:$0xff]
    %v261 = vld [vmem:[#allocation7 + $0xa0] sm:$0xff]
    %v262 = vld [vmem:[#allocation7 + $0xa8] sm:$0xff]
    %v263 = vld [vmem:[#allocation7 + $0xb0] sm:$0xff]
    %v264 = vld [vmem:[#allocation7 + $0xb8] sm:$0xff]
    %v265 = vld [vmem:[#allocation7 + $0xc0] sm:$0xff]
    %v266 = vld [vmem:[#allocation7 + $0xc8] sm:$0xff]
    %v267 = vld [vmem:[#allocation7 + $0xd0] sm:$0xff]
    %v268 = vld [vmem:[#allocation7 + $0xd8] sm:$0xff]
    %v269 = vld [vmem:[#allocation7 + $0xe0] sm:$0xff]
    %v270 = vld [vmem:[#allocation7 + $0xe8] sm:$0xff]
    %v271 = vld [vmem:[#allocation7 + $0xf0] sm:$0xff]
    %v272 = vld [vmem:[#allocation7 + $0xf8] sm:$0xff]
    %v273 = vld [vmem:[#allocation7 + $0x100] sm:$0xff]
    %v274 = vld [vmem:[#allocation7 + $0x108] sm:$0xff]
    %v275 = vld [vmem:[#allocation7 + $0x110] sm:$0xff]
    %v276 = vld [vmem:[#allocation7 + $0x118] sm:$0xff]
    %v277 = vld [vmem:[#allocation7 + $0x120] sm:$0xff]
    %v278 = vld [vmem:[#allocation7 + $0x128] sm:$0xff]
    %v279 = vld [vmem:[#allocation7 + $0x130] sm:$0xff]
    %v280 = vld [vmem:[#allocation7 + $0x138] sm:$0xff]
    %v281 = vld [vmem:[#allocation7 + $0x140] sm:$0xff]
    %v282 = vld [vmem:[#allocation7 + $0x148] sm:$0xff]
    %v283 = vld [vmem:[#allocation7 + $0x150] sm:$0xff]
    %v284 = vld [vmem:[#allocation7 + $0x158] sm:$0xff]
    %v285 = vld [vmem:[#allocation7 + $0x160] sm:$0xff]
    %v286 = vld [vmem:[#allocation7 + $0x168] sm:$0xff]
    %v287 = vld [vmem:[#allocation7 + $0x170] sm:$0xff]
    %v288 = vld [vmem:[#allocation7 + $0x178] sm:$0xff]
    %v289 = vld [vmem:[#allocation7 + $0x180] sm:$0xff]
    %v290 = vld [vmem:[#allocation7 + $0x188] sm:$0xff]
    %v291 = vld [vmem:[#allocation7 + $0x190] sm:$0xff]
    %v292 = vld [vmem:[#allocation7 + $0x198] sm:$0xff]
    %v293 = vld [vmem:[#allocation7 + $0x1a0] sm:$0xff]
    %v294 = vld [vmem:[#allocation7 + $0x1a8] sm:$0xff]
    %v295 = vld [vmem:[#allocation7 + $0x1b0] sm:$0xff]
    %v296 = vld [vmem:[#allocation7 + $0x1b8] sm:$0xff]
    %v297 = vld [vmem:[#allocation7 + $0x1c0] sm:$0xff]
    %v298 = vld [vmem:[#allocation7 + $0x1c8] sm:$0xff]
    %v299 = vld [vmem:[#allocation7 + $0x1d0] sm:$0xff]
    %v300 = vld [vmem:[#allocation7 + $0x1d8] sm:$0xff]
    %v301 = vld [vmem:[#allocation7 + $0x1e0] sm:$0xff]
    %v302 = vld [vmem:[#allocation7 + $0x1e8] sm:$0xff]
    %v303 = vld [vmem:[#allocation7 + $0x1f0] sm:$0xff]
    %v304 = vld [vmem:[#allocation7 + $0x1f8] sm:$0xff]
    %v305 = vld [vmem:[#allocation7 + $0x200] sm:$0xff]
    %v306 = vld [vmem:[#allocation7 + $0x208] sm:$0xff]
    %v307 = vld [vmem:[#allocation7 + $0x210] sm:$0xff]
    %v308 = vld [vmem:[#allocation7 + $0x218] sm:$0xff]
    %v309 = vld [vmem:[#allocation7 + $0x220] sm:$0xff]
    %v310 = vld [vmem:[#allocation7 + $0x228] sm:$0xff]
    %v311 = vld [vmem:[#allocation7 + $0x230] sm:$0xff]
    %v312 = vld [vmem:[#allocation7 + $0x238] sm:$0xff]
    %v313 = vld [vmem:[#allocation7 + $0x240] sm:$0xff]
    %v314 = vld [vmem:[#allocation7 + $0x248] sm:$0xff]
    %v315 = vld [vmem:[#allocation7 + $0x250] sm:$0xff]
    %v316 = vld [vmem:[#allocation7 + $0x258] sm:$0xff]
    %v317 = vld [vmem:[#allocation7 + $0x260] sm:$0xff]
    %v318 = vld [vmem:[#allocation7 + $0x268] sm:$0xff]
    %v319 = vld [vmem:[#allocation7 + $0x270] sm:$0xff]
    %v320 = vld [vmem:[#allocation7 + $0x278] sm:$0xff]
    %v321 = vld [vmem:[#allocation7 + $0x280] sm:$0xff]
    %v322 = vld [vmem:[#allocation7 + $0x288] sm:$0xff]
    %v323 = vld [vmem:[#allocation7 + $0x290] sm:$0xff]
    %v324 = vld [vmem:[#allocation7 + $0x298] sm:$0xff]
    %v325 = vld [vmem:[#allocation7 + $0x2a0] sm:$0xff]
    %v326 = vld [vmem:[#allocation7 + $0x2a8] sm:$0xff]
    %v327 = vld [vmem:[#allocation7 + $0x2b0] sm:$0xff]
    %v328 = vld [vmem:[#allocation7 + $0x2b8] sm:$0xff]
    %v329 = vld [vmem:[#allocation7 + $0x2c0] sm:$0xff]
    %v330 = vld [vmem:[#allocation7 + $0x2c8] sm:$0xff]
    %v331 = vld [vmem:[#allocation7 + $0x2d0] sm:$0xff]
    %v332 = vld [vmem:[#allocation7 + $0x2d8] sm:$0xff]
    %v333 = vld [vmem:[#allocation7 + $0x2e0] sm:$0xff]
    %v334 = vld [vmem:[#allocation7 + $0x2e8] sm:$0xff]
    %v335 = vld [vmem:[#allocation7 + $0x2f0] sm:$0xff]
    %v336 = vld [vmem:[#allocation7 + $0x2f8] sm:$0xff]
    %v337 = vld [vmem:[#allocation7 + $0x300] sm:$0xff]
    %v338 = vld [vmem:[#allocation7 + $0x308] sm:$0xff]
    %v339 = vld [vmem:[#allocation7 + $0x310] sm:$0xff]
    %v340 = vld [vmem:[#allocation7 + $0x318] sm:$0xff]
    %v341 = vld [vmem:[#allocation7 + $0x320] sm:$0xff]
    %v342 = vld [vmem:[#allocation7 + $0x328] sm:$0xff]
    %v343 = vld [vmem:[#allocation7 + $0x330] sm:$0xff]
    %v344 = vld [vmem:[#allocation7 + $0x338] sm:$0xff]
    %v345 = vld [vmem:[#allocation7 + $0x340] sm:$0xff]
    %v346 = vld [vmem:[#allocation7 + $0x348] sm:$0xff]
    %v347 = vld [vmem:[#allocation7 + $0x350] sm:$0xff]
    %v348 = vld [vmem:[#allocation7 + $0x358] sm:$0xff]
    %v349 = vld [vmem:[#allocation7 + $0x360] sm:$0xff]
    %v350 = vld [vmem:[#allocation7 + $0x368] sm:$0xff]
    %v351 = vld [vmem:[#allocation7 + $0x370] sm:$0xff]
    %v352 = vld [vmem:[#allocation7 + $0x378] sm:$0xff]
    %v353 = vld [vmem:[#allocation7 + $0x380] sm:$0xff]
    %v354 = vld [vmem:[#allocation7 + $0x388] sm:$0xff]
    %v355 = vld [vmem:[#allocation7 + $0x390] sm:$0xff]
    %v356 = vld [vmem:[#allocation7 + $0x398] sm:$0xff]
    %v357 = vld [vmem:[#allocation7 + $0x3a0] sm:$0xff]
    %v358 = vld [vmem:[#allocation7 + $0x3a8] sm:$0xff]
    %v359 = vld [vmem:[#allocation7 + $0x3b0] sm:$0xff]
    %v360 = vld [vmem:[#allocation7 + $0x3b8] sm:$0xff]
    %v361 = vld [vmem:[#allocation7 + $0x3c0] sm:$0xff]
    %v362 = vld [vmem:[#allocation7 + $0x3c8] sm:$0xff]
    %v363 = vld [vmem:[#allocation7 + $0x3d0] sm:$0xff]
    %v364 = vld [vmem:[#allocation7 + $0x3d8] sm:$0xff]
    %v365 = vld [vmem:[#allocation7 + $0x3e0] sm:$0xff]
    %v366 = vld [vmem:[#allocation7 + $0x3e8] sm:$0xff]
    %v367 = vld [vmem:[#allocation7 + $0x3f0] sm:$0xff]
    %v368 = vld [vmem:[#allocation7 + $0x3f8] sm:$0xff]
    %v369 = vld [vmem:[#allocation8] sm:$0xff]
    %v371 = vlaneseq
    %v372 = vshrl.u32 %v371, 7
    %v373 = vsub.s32 0, %v372
    %v374 = vrot.slane %v369, %v373
    %v375 = vlaneseq
    %v376 = vshrl.u32 %v375, 7
    %v377 = vsub.s32 1, %v376
    %v378 = vrot.slane %v369, %v377
    %v379 = vlaneseq
    %v380 = vshrl.u32 %v379, 7
    %v381 = vsub.s32 2, %v380
    %v382 = vrot.slane %v369, %v381
    %v383 = vlaneseq
    %v384 = vshrl.u32 %v383, 7
    %v385 = vsub.s32 3, %v384
    %v386 = vrot.slane %v369, %v385
    %v387 = vlaneseq
    %v388 = vshrl.u32 %v387, 7
    %v389 = vsub.s32 4, %v388
    %v390 = vrot.slane %v369, %v389
    %v391 = vlaneseq
    %v392 = vshrl.u32 %v391, 7
    %v393 = vsub.s32 5, %v392
    %v394 = vrot.slane %v369, %v393
    %v395 = vlaneseq
    %v396 = vshrl.u32 %v395, 7
    %v397 = vsub.s32 6, %v396
    %v398 = vrot.slane %v369, %v397
    %v399 = vlaneseq
    %v400 = vshrl.u32 %v399, 7
    %v401 = vsub.s32 7, %v400
    %v402 = vrot.slane %v369, %v401
    %v539 = vunpack.c.l.b16 %v241
    %v540 = vunpack.c.h.b16 %v241
    %v541 = vunpack.c.l.b16 %v242
    %v542 = vunpack.c.h.b16 %v242
    %v543 = vunpack.c.l.b16 %v243
    %v544 = vunpack.c.h.b16 %v243
    %v545 = vunpack.c.l.b16 %v244
    %v546 = vunpack.c.h.b16 %v244
    %v547 = vunpack.c.l.b16 %v245
    %v548 = vunpack.c.h.b16 %v245
    %v549 = vunpack.c.l.b16 %v246
    %v550 = vunpack.c.h.b16 %v246
    %v551 = vunpack.c.l.b16 %v247
    %v552 = vunpack.c.h.b16 %v247
    %v553 = vunpack.c.l.b16 %v248
    %v554 = vunpack.c.h.b16 %v248
    %v555 = vunpack.c.l.b16 %v249
    %v556 = vunpack.c.h.b16 %v249
    %v557 = vunpack.c.l.b16 %v250
    %v558 = vunpack.c.h.b16 %v250
    %v559 = vunpack.c.l.b16 %v251
    %v560 = vunpack.c.h.b16 %v251
    %v561 = vunpack.c.l.b16 %v252
    %v562 = vunpack.c.h.b16 %v252
    %v563 = vunpack.c.l.b16 %v253
    %v564 = vunpack.c.h.b16 %v253
    %v565 = vunpack.c.l.b16 %v254
    %v566 = vunpack.c.h.b16 %v254
    %v567 = vunpack.c.l.b16 %v255
    %v568 = vunpack.c.h.b16 %v255
    %v569 = vunpack.c.l.b16 %v256
    %v570 = vunpack.c.h.b16 %v256
    %v571 = vunpack.c.l.b16 %v257
    %v572 = vunpack.c.h.b16 %v257
    %v573 = vunpack.c.l.b16 %v258
    %v574 = vunpack.c.h.b16 %v258
    %v575 = vunpack.c.l.b16 %v259
    %v576 = vunpack.c.h.b16 %v259
    %v577 = vunpack.c.l.b16 %v260
    %v578 = vunpack.c.h.b16 %v260
    %v579 = vunpack.c.l.b16 %v261
    %v580 = vunpack.c.h.b16 %v261
    %v581 = vunpack.c.l.b16 %v262
    %v582 = vunpack.c.h.b16 %v262
    %v583 = vunpack.c.l.b16 %v263
    %v584 = vunpack.c.h.b16 %v263
    %v585 = vunpack.c.l.b16 %v264
    %v586 = vunpack.c.h.b16 %v264
    %v587 = vunpack.c.l.b16 %v265
    %v588 = vunpack.c.h.b16 %v265
    %v589 = vunpack.c.l.b16 %v266
    %v590 = vunpack.c.h.b16 %v266
    %v591 = vunpack.c.l.b16 %v267
    %v592 = vunpack.c.h.b16 %v267
    %v593 = vunpack.c.l.b16 %v268
    %v594 = vunpack.c.h.b16 %v268
    %v595 = vunpack.c.l.b16 %v269
    %v596 = vunpack.c.h.b16 %v269
    %v597 = vunpack.c.l.b16 %v270
    %v598 = vunpack.c.h.b16 %v270
    %v599 = vunpack.c.l.b16 %v271
    %v600 = vunpack.c.h.b16 %v271
    %v601 = vunpack.c.l.b16 %v272
    %v602 = vunpack.c.h.b16 %v272
    %v603 = vunpack.c.l.b16 %v273
    %v604 = vunpack.c.h.b16 %v273
    %v605 = vunpack.c.l.b16 %v274
    %v606 = vunpack.c.h.b16 %v274
    %v607 = vunpack.c.l.b16 %v275
    %v608 = vunpack.c.h.b16 %v275
    %v609 = vunpack.c.l.b16 %v276
    %v610 = vunpack.c.h.b16 %v276
    %v611 = vunpack.c.l.b16 %v277
    %v612 = vunpack.c.h.b16 %v277
    %v613 = vunpack.c.l.b16 %v278
    %v614 = vunpack.c.h.b16 %v278
    %v615 = vunpack.c.l.b16 %v279
    %v616 = vunpack.c.h.b16 %v279
    %v617 = vunpack.c.l.b16 %v280
    %v618 = vunpack.c.h.b16 %v280
    %v619 = vunpack.c.l.b16 %v281
    %v620 = vunpack.c.h.b16 %v281
    %v621 = vunpack.c.l.b16 %v282
    %v622 = vunpack.c.h.b16 %v282
    %v623 = vunpack.c.l.b16 %v283
    %v624 = vunpack.c.h.b16 %v283
    %v625 = vunpack.c.l.b16 %v284
    %v626 = vunpack.c.h.b16 %v284
    %v627 = vunpack.c.l.b16 %v285
    %v628 = vunpack.c.h.b16 %v285
    %v629 = vunpack.c.l.b16 %v286
    %v630 = vunpack.c.h.b16 %v286
    %v631 = vunpack.c.l.b16 %v287
    %v632 = vunpack.c.h.b16 %v287
    %v633 = vunpack.c.l.b16 %v288
    %v634 = vunpack.c.h.b16 %v288
    %v635 = vunpack.c.l.b16 %v289
    %v636 = vunpack.c.h.b16 %v289
    %v637 = vunpack.c.l.b16 %v290
    %v638 = vunpack.c.h.b16 %v290
    %v639 = vunpack.c.l.b16 %v291
    %v640 = vunpack.c.h.b16 %v291
    %v641 = vunpack.c.l.b16 %v292
    %v642 = vunpack.c.h.b16 %v292
    %v643 = vunpack.c.l.b16 %v293
    %v644 = vunpack.c.h.b16 %v293
    %v645 = vunpack.c.l.b16 %v294
    %v646 = vunpack.c.h.b16 %v294
    %v647 = vunpack.c.l.b16 %v295
    %v648 = vunpack.c.h.b16 %v295
    %v649 = vunpack.c.l.b16 %v296
    %v650 = vunpack.c.h.b16 %v296
    %v651 = vunpack.c.l.b16 %v297
    %v652 = vunpack.c.h.b16 %v297
    %v653 = vunpack.c.l.b16 %v298
    %v654 = vunpack.c.h.b16 %v298
    %v655 = vunpack.c.l.b16 %v299
    %v656 = vunpack.c.h.b16 %v299
    %v657 = vunpack.c.l.b16 %v300
    %v658 = vunpack.c.h.b16 %v300
    %v659 = vunpack.c.l.b16 %v301
    %v660 = vunpack.c.h.b16 %v301
    %v661 = vunpack.c.l.b16 %v302
    %v662 = vunpack.c.h.b16 %v302
    %v663 = vunpack.c.l.b16 %v303
    %v664 = vunpack.c.h.b16 %v303
    %v665 = vunpack.c.l.b16 %v304
    %v666 = vunpack.c.h.b16 %v304
    %v667 = vunpack.c.l.b16 %v305
    %v668 = vunpack.c.h.b16 %v305
    %v669 = vunpack.c.l.b16 %v306
    %v670 = vunpack.c.h.b16 %v306
    %v671 = vunpack.c.l.b16 %v307
    %v672 = vunpack.c.h.b16 %v307
    %v673 = vunpack.c.l.b16 %v308
    %v674 = vunpack.c.h.b16 %v308
    %v675 = vunpack.c.l.b16 %v309
    %v676 = vunpack.c.h.b16 %v309
    %v677 = vunpack.c.l.b16 %v310
    %v678 = vunpack.c.h.b16 %v310
    %v679 = vunpack.c.l.b16 %v311
    %v680 = vunpack.c.h.b16 %v311
    %v681 = vunpack.c.l.b16 %v312
    %v682 = vunpack.c.h.b16 %v312
    %v683 = vunpack.c.l.b16 %v313
    %v684 = vunpack.c.h.b16 %v313
    %v685 = vunpack.c.l.b16 %v314
    %v686 = vunpack.c.h.b16 %v314
    %v687 = vunpack.c.l.b16 %v315
    %v688 = vunpack.c.h.b16 %v315
    %v689 = vunpack.c.l.b16 %v316
    %v690 = vunpack.c.h.b16 %v316
    %v691 = vunpack.c.l.b16 %v317
    %v692 = vunpack.c.h.b16 %v317
    %v693 = vunpack.c.l.b16 %v318
    %v694 = vunpack.c.h.b16 %v318
    %v695 = vunpack.c.l.b16 %v319
    %v696 = vunpack.c.h.b16 %v319
    %v697 = vunpack.c.l.b16 %v320
    %v698 = vunpack.c.h.b16 %v320
    %v699 = vunpack.c.l.b16 %v321
    %v700 = vunpack.c.h.b16 %v321
    %v701 = vunpack.c.l.b16 %v322
    %v702 = vunpack.c.h.b16 %v322
    %v703 = vunpack.c.l.b16 %v323
    %v704 = vunpack.c.h.b16 %v323
    %v705 = vunpack.c.l.b16 %v324
    %v706 = vunpack.c.h.b16 %v324
    %v707 = vunpack.c.l.b16 %v325
    %v708 = vunpack.c.h.b16 %v325
    %v709 = vunpack.c.l.b16 %v326
    %v710 = vunpack.c.h.b16 %v326
    %v711 = vunpack.c.l.b16 %v327
    %v712 = vunpack.c.h.b16 %v327
    %v713 = vunpack.c.l.b16 %v328
    %v714 = vunpack.c.h.b16 %v328
    %v715 = vunpack.c.l.b16 %v329
    %v716 = vunpack.c.h.b16 %v329
    %v717 = vunpack.c.l.b16 %v330
    %v718 = vunpack.c.h.b16 %v330
    %v719 = vunpack.c.l.b16 %v331
    %v720 = vunpack.c.h.b16 %v331
    %v721 = vunpack.c.l.b16 %v332
    %v722 = vunpack.c.h.b16 %v332
    %v723 = vunpack.c.l.b16 %v333
    %v724 = vunpack.c.h.b16 %v333
    %v725 = vunpack.c.l.b16 %v334
    %v726 = vunpack.c.h.b16 %v334
    %v727 = vunpack.c.l.b16 %v335
    %v728 = vunpack.c.h.b16 %v335
    %v729 = vunpack.c.l.b16 %v336
    %v730 = vunpack.c.h.b16 %v336
    %v731 = vunpack.c.l.b16 %v337
    %v732 = vunpack.c.h.b16 %v337
    %v733 = vunpack.c.l.b16 %v338
    %v734 = vunpack.c.h.b16 %v338
    %v735 = vunpack.c.l.b16 %v339
    %v736 = vunpack.c.h.b16 %v339
    %v737 = vunpack.c.l.b16 %v340
    %v738 = vunpack.c.h.b16 %v340
    %v739 = vunpack.c.l.b16 %v341
    %v740 = vunpack.c.h.b16 %v341
    %v741 = vunpack.c.l.b16 %v342
    %v742 = vunpack.c.h.b16 %v342
    %v743 = vunpack.c.l.b16 %v343
    %v744 = vunpack.c.h.b16 %v343
    %v745 = vunpack.c.l.b16 %v344
    %v746 = vunpack.c.h.b16 %v344
    %v747 = vunpack.c.l.b16 %v345
    %v748 = vunpack.c.h.b16 %v345
    %v749 = vunpack.c.l.b16 %v346
    %v750 = vunpack.c.h.b16 %v346
    %v751 = vunpack.c.l.b16 %v347
    %v752 = vunpack.c.h.b16 %v347
    %v753 = vunpack.c.l.b16 %v348
    %v754 = vunpack.c.h.b16 %v348
    %v755 = vunpack.c.l.b16 %v349
    %v756 = vunpack.c.h.b16 %v349
    %v757 = vunpack.c.l.b16 %v350
    %v758 = vunpack.c.h.b16 %v350
    %v759 = vunpack.c.l.b16 %v351
    %v760 = vunpack.c.h.b16 %v351
    %v761 = vunpack.c.l.b16 %v352
    %v762 = vunpack.c.h.b16 %v352
    %v763 = vunpack.c.l.b16 %v353
    %v764 = vunpack.c.h.b16 %v353
    %v765 = vunpack.c.l.b16 %v354
    %v766 = vunpack.c.h.b16 %v354
    %v767 = vunpack.c.l.b16 %v355
    %v768 = vunpack.c.h.b16 %v355
    %v769 = vunpack.c.l.b16 %v356
    %v770 = vunpack.c.h.b16 %v356
    %v771 = vunpack.c.l.b16 %v357
    %v772 = vunpack.c.h.b16 %v357
    %v773 = vunpack.c.l.b16 %v358
    %v774 = vunpack.c.h.b16 %v358
    %v775 = vunpack.c.l.b16 %v359
    %v776 = vunpack.c.h.b16 %v359
    %v777 = vunpack.c.l.b16 %v360
    %v778 = vunpack.c.h.b16 %v360
    %v779 = vunpack.c.l.b16 %v361
    %v780 = vunpack.c.h.b16 %v361
    %v781 = vunpack.c.l.b16 %v362
    %v782 = vunpack.c.h.b16 %v362
    %v783 = vunpack.c.l.b16 %v363
    %v784 = vunpack.c.h.b16 %v363
    %v785 = vunpack.c.l.b16 %v364
    %v786 = vunpack.c.h.b16 %v364
    %v787 = vunpack.c.l.b16 %v365
    %v788 = vunpack.c.h.b16 %v365
    %v789 = vunpack.c.l.b16 %v366
    %v790 = vunpack.c.h.b16 %v366
    %v791 = vunpack.c.l.b16 %v367
    %v792 = vunpack.c.h.b16 %v367
    %v793 = vunpack.c.l.b16 %v368
    %v794 = vunpack.c.h.b16 %v368
    %v795 = vpack.c.b16 %v547, %v539
    %v796 = vpack.c.b16 %v548, %v540
    %v797 = vpack.c.b16 %v549, %v541
    %v798 = vpack.c.b16 %v550, %v542
    %v799 = vpack.c.b16 %v551, %v543
    %v800 = vpack.c.b16 %v552, %v544
    %v801 = vpack.c.b16 %v553, %v545
    %v802 = vpack.c.b16 %v554, %v546
    %v803 = vpack.c.b16 %v563, %v555
    %v804 = vpack.c.b16 %v564, %v556
    %v805 = vpack.c.b16 %v565, %v557
    %v806 = vpack.c.b16 %v566, %v558
    %v807 = vpack.c.b16 %v567, %v559
    %v808 = vpack.c.b16 %v568, %v560
    %v809 = vpack.c.b16 %v569, %v561
    %v810 = vpack.c.b16 %v570, %v562
    %v811 = vpack.c.b16 %v579, %v571
    %v812 = vpack.c.b16 %v580, %v572
    %v813 = vpack.c.b16 %v581, %v573
    %v814 = vpack.c.b16 %v582, %v574
    %v815 = vpack.c.b16 %v583, %v575
    %v816 = vpack.c.b16 %v584, %v576
    %v817 = vpack.c.b16 %v585, %v577
    %v818 = vpack.c.b16 %v586, %v578
    %v819 = vpack.c.b16 %v595, %v587
    %v820 = vpack.c.b16 %v596, %v588
    %v821 = vpack.c.b16 %v597, %v589
    %v822 = vpack.c.b16 %v598, %v590
    %v823 = vpack.c.b16 %v599, %v591
    %v824 = vpack.c.b16 %v600, %v592
    %v825 = vpack.c.b16 %v601, %v593
    %v826 = vpack.c.b16 %v602, %v594
    %v827 = vpack.c.b16 %v611, %v603
    %v828 = vpack.c.b16 %v612, %v604
    %v829 = vpack.c.b16 %v613, %v605
    %v830 = vpack.c.b16 %v614, %v606
    %v831 = vpack.c.b16 %v615, %v607
    %v832 = vpack.c.b16 %v616, %v608
    %v833 = vpack.c.b16 %v617, %v609
    %v834 = vpack.c.b16 %v618, %v610
    %v835 = vpack.c.b16 %v627, %v619
    %v836 = vpack.c.b16 %v628, %v620
    %v837 = vpack.c.b16 %v629, %v621
    %v838 = vpack.c.b16 %v630, %v622
    %v839 = vpack.c.b16 %v631, %v623
    %v840 = vpack.c.b16 %v632, %v624
    %v841 = vpack.c.b16 %v633, %v625
    %v842 = vpack.c.b16 %v634, %v626
    %v843 = vpack.c.b16 %v643, %v635
    %v844 = vpack.c.b16 %v644, %v636
    %v845 = vpack.c.b16 %v645, %v637
    %v846 = vpack.c.b16 %v646, %v638
    %v847 = vpack.c.b16 %v647, %v639
    %v848 = vpack.c.b16 %v648, %v640
    %v849 = vpack.c.b16 %v649, %v641
    %v850 = vpack.c.b16 %v650, %v642
    %v851 = vpack.c.b16 %v659, %v651
    %v852 = vpack.c.b16 %v660, %v652
    %v853 = vpack.c.b16 %v661, %v653
    %v854 = vpack.c.b16 %v662, %v654
    %v855 = vpack.c.b16 %v663, %v655
    %v856 = vpack.c.b16 %v664, %v656
    %v857 = vpack.c.b16 %v665, %v657
    %v858 = vpack.c.b16 %v666, %v658
    %v859 = vpack.c.b16 %v675, %v667
    %v860 = vpack.c.b16 %v676, %v668
    %v861 = vpack.c.b16 %v677, %v669
    %v862 = vpack.c.b16 %v678, %v670
    %v863 = vpack.c.b16 %v679, %v671
    %v864 = vpack.c.b16 %v680, %v672
    %v865 = vpack.c.b16 %v681, %v673
    %v866 = vpack.c.b16 %v682, %v674
    %v867 = vpack.c.b16 %v691, %v683
    %v868 = vpack.c.b16 %v692, %v684
    %v869 = vpack.c.b16 %v693, %v685
    %v870 = vpack.c.b16 %v694, %v686
    %v871 = vpack.c.b16 %v695, %v687
    %v872 = vpack.c.b16 %v696, %v688
    %v873 = vpack.c.b16 %v697, %v689
    %v874 = vpack.c.b16 %v698, %v690
    %v875 = vpack.c.b16 %v707, %v699
    %v876 = vpack.c.b16 %v708, %v700
    %v877 = vpack.c.b16 %v709, %v701
    %v878 = vpack.c.b16 %v710, %v702
    %v879 = vpack.c.b16 %v711, %v703
    %v880 = vpack.c.b16 %v712, %v704
    %v881 = vpack.c.b16 %v713, %v705
    %v882 = vpack.c.b16 %v714, %v706
    %v883 = vpack.c.b16 %v723, %v715
    %v884 = vpack.c.b16 %v724, %v716
    %v885 = vpack.c.b16 %v725, %v717
    %v886 = vpack.c.b16 %v726, %v718
    %v887 = vpack.c.b16 %v727, %v719
    %v888 = vpack.c.b16 %v728, %v720
    %v889 = vpack.c.b16 %v729, %v721
    %v890 = vpack.c.b16 %v730, %v722
    %v891 = vpack.c.b16 %v739, %v731
    %v892 = vpack.c.b16 %v740, %v732
    %v893 = vpack.c.b16 %v741, %v733
    %v894 = vpack.c.b16 %v742, %v734
    %v895 = vpack.c.b16 %v743, %v735
    %v896 = vpack.c.b16 %v744, %v736
    %v897 = vpack.c.b16 %v745, %v737
    %v898 = vpack.c.b16 %v746, %v738
    %v899 = vpack.c.b16 %v755, %v747
    %v900 = vpack.c.b16 %v756, %v748
    %v901 = vpack.c.b16 %v757, %v749
    %v902 = vpack.c.b16 %v758, %v750
    %v903 = vpack.c.b16 %v759, %v751
    %v904 = vpack.c.b16 %v760, %v752
    %v905 = vpack.c.b16 %v761, %v753
    %v906 = vpack.c.b16 %v762, %v754
    %v907 = vpack.c.b16 %v771, %v763
    %v908 = vpack.c.b16 %v772, %v764
    %v909 = vpack.c.b16 %v773, %v765
    %v910 = vpack.c.b16 %v774, %v766
    %v911 = vpack.c.b16 %v775, %v767
    %v912 = vpack.c.b16 %v776, %v768
    %v913 = vpack.c.b16 %v777, %v769
    %v914 = vpack.c.b16 %v778, %v770
    %v915 = vpack.c.b16 %v787, %v779
    %v916 = vpack.c.b16 %v788, %v780
    %v917 = vpack.c.b16 %v789, %v781
    %v918 = vpack.c.b16 %v790, %v782
    %v919 = vpack.c.b16 %v791, %v783
    %v920 = vpack.c.b16 %v792, %v784
    %v921 = vpack.c.b16 %v793, %v785
    %v922 = vpack.c.b16 %v794, %v786
    %1051 = vmatprep.subr.bf16.mxu0 %v852
    %1052 = vmatpush1.bf16.msra.mxu0 %v851
    %1053 = vmatprep.subr.bf16.mxu0 %v844
    %1054 = vmatpush1.bf16.msra.mxu0 %v843
    %1055 = vmatprep.subr.bf16.mxu0 %v836
    %1056 = vmatpush1.bf16.msra.mxu0 %v835
    %1057 = vmatprep.subr.bf16.mxu0 %v828
    %1058 = vmatpush1.bf16.msra.mxu0 %v827
    %1059 = vmatprep.subr.bf16.mxu0 %v820
    %1060 = vmatpush1.bf16.msra.mxu0 %v819
    %1061 = vmatprep.subr.bf16.mxu0 %v812
    %1062 = vmatpush1.bf16.msra.mxu0 %v811
    %1063 = vmatprep.subr.bf16.mxu0 %v804
    %1064 = vmatpush1.bf16.msra.mxu0 %v803
    %1065 = vmatprep.subr.bf16.mxu0 %v796
    %1066 = vmatpush1.bf16.msra.mxu0 %v795
    %1067 = vmatprep.subr.bf16.mxu0 %v916
    %1068 = vmatpush2.bf16.msra.mxu0 %v915
    %1069 = vmatprep.subr.bf16.mxu0 %v908
    %1070 = vmatpush2.bf16.msra.mxu0 %v907
    %1071 = vmatprep.subr.bf16.mxu0 %v900
    %1072 = vmatpush2.bf16.msra.mxu0 %v899
    %1073 = vmatprep.subr.bf16.mxu0 %v892
    %1074 = vmatpush2.bf16.msra.mxu0 %v891
    %1075 = vmatprep.subr.bf16.mxu0 %v884
    %1076 = vmatpush2.bf16.msra.mxu0 %v883
    %1077 = vmatprep.subr.bf16.mxu0 %v876
    %1078 = vmatpush2.bf16.msra.mxu0 %v875
    %1079 = vmatprep.subr.bf16.mxu0 %v868
    %1080 = vmatpush2.bf16.msra.mxu0 %v867
    %1081 = vmatprep.subr.bf16.mxu0 %v860
    %1082 = vmatpush2.bf16.msra.mxu0 %v859
    %1083 = vmatprep.mubr.bf16.mxu0 %v238
    %1084 = vmatmul.mubr.bf16.gmra.mxu0 %v237
    %v1085 = vpop.f32.mrf.mxu0
    %v1086 = vadd.f32 %v374, %v1085
    %v1087 = vpop.f32.mrf.mxu0
    %v1088 = vadd.f32 %v378, %v1087
    %v1089 = vpop.f32.mrf.mxu0
    %v1090 = vadd.f32 %v374, %v1089
    %v1091 = vpop.f32.mrf.mxu0
    %v1092 = vadd.f32 %v378, %v1091
    %1093 = vmatprep.mubr.bf16.mxu0 %v240
    %1094 = vmatmul.mubr.bf16.gmra.mxu0 %v239
    %v1095 = vpop.f32.mrf.mxu0
    %v1096 = vadd.f32 %v374, %v1095
    %v1097 = vpop.f32.mrf.mxu0
    %v1098 = vadd.f32 %v378, %v1097
    %v1099 = vpop.f32.mrf.mxu0
    %v1100 = vadd.f32 %v374, %v1099
    %v1101 = vpop.f32.mrf.mxu0
    %v1102 = vadd.f32 %v378, %v1101
    %1103 = vdwg.mxu0
    %1104 = vmatprep.subr.bf16.mxu0 %v854
    %1105 = vmatpush1.bf16.msra.mxu0 %v853
    %1106 = vmatprep.subr.bf16.mxu0 %v846
    %1107 = vmatpush1.bf16.msra.mxu0 %v845
    %1108 = vmatprep.subr.bf16.mxu0 %v838
    %1109 = vmatpush1.bf16.msra.mxu0 %v837
    %1110 = vmatprep.subr.bf16.mxu0 %v830
    %1111 = vmatpush1.bf16.msra.mxu0 %v829
    %1112 = vmatprep.subr.bf16.mxu0 %v822
    %1113 = vmatpush1.bf16.msra.mxu0 %v821
    %1114 = vmatprep.subr.bf16.mxu0 %v814
    %1115 = vmatpush1.bf16.msra.mxu0 %v813
    %1116 = vmatprep.subr.bf16.mxu0 %v806
    %1117 = vmatpush1.bf16.msra.mxu0 %v805
    %1118 = vmatprep.subr.bf16.mxu0 %v798
    %1119 = vmatpush1.bf16.msra.mxu0 %v797
    %1120 = vmatprep.subr.bf16.mxu0 %v918
    %1121 = vmatpush2.bf16.msra.mxu0 %v917
    %1122 = vmatprep.subr.bf16.mxu0 %v910
    %1123 = vmatpush2.bf16.msra.mxu0 %v909
    %1124 = vmatprep.subr.bf16.mxu0 %v902
    %1125 = vmatpush2.bf16.msra.mxu0 %v901
    %1126 = vmatprep.subr.bf16.mxu0 %v894
    %1127 = vmatpush2.bf16.msra.mxu0 %v893
    %1128 = vmatprep.subr.bf16.mxu0 %v886
    %1129 = vmatpush2.bf16.msra.mxu0 %v885
    %1130 = vmatprep.subr.bf16.mxu0 %v878
    %1131 = vmatpush2.bf16.msra.mxu0 %v877
    %1132 = vmatprep.subr.bf16.mxu0 %v870
    %1133 = vmatpush2.bf16.msra.mxu0 %v869
    %1134 = vmatprep.subr.bf16.mxu0 %v862
    %1135 = vmatpush2.bf16.msra.mxu0 %v861
    %1136 = vmatprep.mubr.bf16.mxu0 %v238
    %1137 = vmatmul.mubr.bf16.gmra.mxu0 %v237
    %v1138 = vpop.f32.mrf.mxu0
    %v1139 = vadd.f32 %v382, %v1138
    %v1140 = vpop.f32.mrf.mxu0
    %v1141 = vadd.f32 %v386, %v1140
    %v1142 = vpop.f32.mrf.mxu0
    %v1143 = vadd.f32 %v382, %v1142
    %v1144 = vpop.f32.mrf.mxu0
    %v1145 = vadd.f32 %v386, %v1144
    %1146 = vmatprep.mubr.bf16.mxu0 %v240
    %1147 = vmatmul.mubr.bf16.gmra.mxu0 %v239
    %v1148 = vpop.f32.mrf.mxu0
    %v1149 = vadd.f32 %v382, %v1148
    %v1150 = vpop.f32.mrf.mxu0
    %v1151 = vadd.f32 %v386, %v1150
    %v1152 = vpop.f32.mrf.mxu0
    %v1153 = vadd.f32 %v382, %v1152
    %v1154 = vpop.f32.mrf.mxu0
    %v1155 = vadd.f32 %v386, %v1154
    %1156 = vdwg.mxu0
    %1157 = vmatprep.subr.bf16.mxu0 %v856
    %1158 = vmatpush1.bf16.msra.mxu0 %v855
    %1159 = vmatprep.subr.bf16.mxu0 %v848
    %1160 = vmatpush1.bf16.msra.mxu0 %v847
    %1161 = vmatprep.subr.bf16.mxu0 %v840
    %1162 = vmatpush1.bf16.msra.mxu0 %v839
    %1163 = vmatprep.subr.bf16.mxu0 %v832
    %1164 = vmatpush1.bf16.msra.mxu0 %v831
    %1165 = vmatprep.subr.bf16.mxu0 %v824
    %1166 = vmatpush1.bf16.msra.mxu0 %v823
    %1167 = vmatprep.subr.bf16.mxu0 %v816
    %1168 = vmatpush1.bf16.msra.mxu0 %v815
    %1169 = vmatprep.subr.bf16.mxu0 %v808
    %1170 = vmatpush1.bf16.msra.mxu0 %v807
    %1171 = vmatprep.subr.bf16.mxu0 %v800
    %1172 = vmatpush1.bf16.msra.mxu0 %v799
    %1173 = vmatprep.subr.bf16.mxu0 %v920
    %1174 = vmatpush2.bf16.msra.mxu0 %v919
    %1175 = vmatprep.subr.bf16.mxu0 %v912
    %1176 = vmatpush2.bf16.msra.mxu0 %v911
    %1177 = vmatprep.subr.bf16.mxu0 %v904
    %1178 = vmatpush2.bf16.msra.mxu0 %v903
    %1179 = vmatprep.subr.bf16.mxu0 %v896
    %1180 = vmatpush2.bf16.msra.mxu0 %v895
    %1181 = vmatprep.subr.bf16.mxu0 %v888
    %1182 = vmatpush2.bf16.msra.mxu0 %v887
    %1183 = vmatprep.subr.bf16.mxu0 %v880
    %1184 = vmatpush2.bf16.msra.mxu0 %v879
    %1185 = vmatprep.subr.bf16.mxu0 %v872
    %1186 = vmatpush2.bf16.msra.mxu0 %v871
    %1187 = vmatprep.subr.bf16.mxu0 %v864
    %1188 = vmatpush2.bf16.msra.mxu0 %v863
    %1189 = vmatprep.mubr.bf16.mxu0 %v238
    %1190 = vmatmul.mubr.bf16.gmra.mxu0 %v237
    %v1191 = vpop.f32.mrf.mxu0
    %v1192 = vadd.f32 %v390, %v1191
    %v1193 = vpop.f32.mrf.mxu0
    %v1194 = vadd.f32 %v394, %v1193
    %v1195 = vpop.f32.mrf.mxu0
    %v1196 = vadd.f32 %v390, %v1195
    %v1197 = vpop.f32.mrf.mxu0
    %v1198 = vadd.f32 %v394, %v1197
    %1199 = vmatprep.mubr.bf16.mxu0 %v240
    %1200 = vmatmul.mubr.bf16.gmra.mxu0 %v239
    %v1201 = vpop.f32.mrf.mxu0
    %v1202 = vadd.f32 %v390, %v1201
    %v1203 = vpop.f32.mrf.mxu0
    %v1204 = vadd.f32 %v394, %v1203
    %v1205 = vpop.f32.mrf.mxu0
    %v1206 = vadd.f32 %v390, %v1205
    %v1207 = vpop.f32.mrf.mxu0
    %v1208 = vadd.f32 %v394, %v1207
    %1209 = vdwg.mxu0
    %1210 = vmatprep.subr.bf16.mxu0 %v858
    %1211 = vmatpush1.bf16.msra.mxu0 %v857
    %1212 = vmatprep.subr.bf16.mxu0 %v850
    %1213 = vmatpush1.bf16.msra.mxu0 %v849
    %1214 = vmatprep.subr.bf16.mxu0 %v842
    %1215 = vmatpush1.bf16.msra.mxu0 %v841
    %1216 = vmatprep.subr.bf16.mxu0 %v834
    %1217 = vmatpush1.bf16.msra.mxu0 %v833
    %1218 = vmatprep.subr.bf16.mxu0 %v826
    %1219 = vmatpush1.bf16.msra.mxu0 %v825
    %1220 = vmatprep.subr.bf16.mxu0 %v818
    %1221 = vmatpush1.bf16.msra.mxu0 %v817
    %1222 = vmatprep.subr.bf16.mxu0 %v810
    %1223 = vmatpush1.bf16.msra.mxu0 %v809
    %1224 = vmatprep.subr.bf16.mxu0 %v802
    %1225 = vmatpush1.bf16.msra.mxu0 %v801
    %1226 = vmatprep.subr.bf16.mxu0 %v922
    %1227 = vmatpush2.bf16.msra.mxu0 %v921
    %1228 = vmatprep.subr.bf16.mxu0 %v914
    %1229 = vmatpush2.bf16.msra.mxu0 %v913
    %1230 = vmatprep.subr.bf16.mxu0 %v906
    %1231 = vmatpush2.bf16.msra.mxu0 %v905
    %1232 = vmatprep.subr.bf16.mxu0 %v898
    %1233 = vmatpush2.bf16.msra.mxu0 %v897
    %1234 = vmatprep.subr.bf16.mxu0 %v890
    %1235 = vmatpush2.bf16.msra.mxu0 %v889
    %1236 = vmatprep.subr.bf16.mxu0 %v882
    %1237 = vmatpush2.bf16.msra.mxu0 %v881
    %1238 = vmatprep.subr.bf16.mxu0 %v874
    %1239 = vmatpush2.bf16.msra.mxu0 %v873
    %1240 = vmatprep.subr.bf16.mxu0 %v866
    %1241 = vmatpush2.bf16.msra.mxu0 %v865
    %1242 = vmatprep.mubr.bf16.mxu0 %v238
    %1243 = vmatmul.mubr.bf16.gmra.mxu0 %v237
    %v1244 = vpop.f32.mrf.mxu0
    %v1245 = vadd.f32 %v398, %v1244
    %v1246 = vpop.f32.mrf.mxu0
    %v1247 = vadd.f32 %v402, %v1246
    %v1248 = vpop.f32.mrf.mxu0
    %v1249 = vadd.f32 %v398, %v1248
    %v1250 = vpop.f32.mrf.mxu0
    %v1251 = vadd.f32 %v402, %v1250
    %1252 = vmatprep.mubr.bf16.mxu0 %v240
    %1253 = vmatmul.mubr.bf16.gmra.mxu0 %v239
    %v1254 = vpop.f32.mrf.mxu0
    %v1255 = vadd.f32 %v398, %v1254
    %v1256 = vpop.f32.mrf.mxu0
    %v1257 = vadd.f32 %v402, %v1256
    %v1258 = vpop.f32.mrf.mxu0
    %v1259 = vadd.f32 %v398, %v1258
    %v1260 = vpop.f32.mrf.mxu0
    %v1261 = vadd.f32 %v402, %v1260
    %1262 = vdwg.mxu0
    %v1263 = vmax.f32 %v1086, 0.0
    %v1264 = vmax.f32 %v1088, 0.0
    %v1265 = vmax.f32 %v1139, 0.0
    %v1266 = vmax.f32 %v1141, 0.0
    %v1267 = vmax.f32 %v1192, 0.0
    %v1268 = vmax.f32 %v1194, 0.0
    %v1269 = vmax.f32 %v1245, 0.0
    %v1270 = vmax.f32 %v1247, 0.0
    %v1271 = vmax.f32 %v1090, 0.0
    %v1272 = vmax.f32 %v1092, 0.0
    %v1273 = vmax.f32 %v1143, 0.0
    %v1274 = vmax.f32 %v1145, 0.0
    %v1275 = vmax.f32 %v1196, 0.0
    %v1276 = vmax.f32 %v1198, 0.0
    %v1277 = vmax.f32 %v1249, 0.0
    %v1278 = vmax.f32 %v1251, 0.0
    %v1279 = vmax.f32 %v1096, 0.0
    %v1280 = vmax.f32 %v1098, 0.0
    %v1281 = vmax.f32 %v1149, 0.0
    %v1282 = vmax.f32 %v1151, 0.0
    %v1283 = vmax.f32 %v1202, 0.0
    %v1284 = vmax.f32 %v1204, 0.0
    %v1285 = vmax.f32 %v1255, 0.0
    %v1286 = vmax.f32 %v1257, 0.0
    %v1287 = vmax.f32 %v1100, 0.0
    %v1288 = vmax.f32 %v1102, 0.0
    %v1289 = vmax.f32 %v1153, 0.0
    %v1290 = vmax.f32 %v1155, 0.0
    %v1291 = vmax.f32 %v1206, 0.0
    %v1292 = vmax.f32 %v1208, 0.0
    %v1293 = vmax.f32 %v1259, 0.0
    %v1294 = vmax.f32 %v1261, 0.0
    %v1295 = vpack.c.bf16 %v1271, %v1263
    %v1296 = vpack.c.bf16 %v1272, %v1264
    %v1297 = vpack.c.bf16 %v1273, %v1265
    %v1298 = vpack.c.bf16 %v1274, %v1266
    %v1299 = vpack.c.bf16 %v1275, %v1267
    %v1300 = vpack.c.bf16 %v1276, %v1268
    %v1301 = vpack.c.bf16 %v1277, %v1269
    %v1302 = vpack.c.bf16 %v1278, %v1270
    %v1303 = vpack.c.bf16 %v1287, %v1279
    %v1304 = vpack.c.bf16 %v1288, %v1280
    %v1305 = vpack.c.bf16 %v1289, %v1281
    %v1306 = vpack.c.bf16 %v1290, %v1282
    %v1307 = vpack.c.bf16 %v1291, %v1283
    %v1308 = vpack.c.bf16 %v1292, %v1284
    %v1309 = vpack.c.bf16 %v1293, %v1285
    %v1310 = vpack.c.bf16 %v1294, %v1286
    %v1311 = vld [vmem:[#allocation10] sm:$0xff]
    %v1312 = vld [vmem:[#allocation10 + $0x8] sm:$0xff]
    %v1313 = vld [vmem:[#allocation10 + $0x10] sm:$0xff]
    %v1314 = vld [vmem:[#allocation10 + $0x18] sm:$0xf]
    %v1315 = vld [vmem:[#allocation10 + $0x1c] sm:$0xff]
    %v1316 = vld [vmem:[#allocation10 + $0x24] sm:$0xff]
    %v1317 = vld [vmem:[#allocation10 + $0x2c] sm:$0xff]
    %v1318 = vld [vmem:[#allocation10 + $0x34] sm:$0xf]
    %v1319 = vld [vmem:[#allocation10 + $0x38] sm:$0xff]
    %v1320 = vld [vmem:[#allocation10 + $0x40] sm:$0xff]
    %v1321 = vld [vmem:[#allocation10 + $0x48] sm:$0xff]
    %v1322 = vld [vmem:[#allocation10 + $0x50] sm:$0xf]
    %v1323 = vld [vmem:[#allocation10 + $0x54] sm:$0xff]
    %v1324 = vld [vmem:[#allocation10 + $0x5c] sm:$0xff]
    %v1325 = vld [vmem:[#allocation10 + $0x64] sm:$0xff]
    %v1326 = vld [vmem:[#allocation10 + $0x6c] sm:$0xf]
    %v1327 = vld [vmem:[#allocation10 + $0x70] sm:$0xff]
    %v1328 = vld [vmem:[#allocation10 + $0x78] sm:$0xff]
    %v1329 = vld [vmem:[#allocation10 + $0x80] sm:$0xff]
    %v1330 = vld [vmem:[#allocation10 + $0x88] sm:$0xf]
    %v1331 = vld [vmem:[#allocation10 + $0x8c] sm:$0xff]
    %v1332 = vld [vmem:[#allocation10 + $0x94] sm:$0xff]
    %v1333 = vld [vmem:[#allocation10 + $0x9c] sm:$0xff]
    %v1334 = vld [vmem:[#allocation10 + $0xa4] sm:$0xf]
    %v1335 = vld [vmem:[#allocation10 + $0xa8] sm:$0xff]
    %v1336 = vld [vmem:[#allocation10 + $0xb0] sm:$0xff]
    %v1337 = vld [vmem:[#allocation10 + $0xb8] sm:$0xff]
    %v1338 = vld [vmem:[#allocation10 + $0xc0] sm:$0xf]
    %v1339 = vld [vmem:[#allocation10 + $0xc4] sm:$0xff]
    %v1340 = vld [vmem:[#allocation10 + $0xcc] sm:$0xff]
    %v1341 = vld [vmem:[#allocation10 + $0xd4] sm:$0xff]
    %v1342 = vld [vmem:[#allocation10 + $0xdc] sm:$0xf]
    %v1343 = vld [vmem:[#allocation10 + $0xe0] sm:$0xff]
    %v1344 = vld [vmem:[#allocation10 + $0xe8] sm:$0xff]
    %v1345 = vld [vmem:[#allocation10 + $0xf0] sm:$0xff]
    %v1346 = vld [vmem:[#allocation10 + $0xf8] sm:$0xf]
    %v1347 = vld [vmem:[#allocation10 + $0xfc] sm:$0xff]
    %v1348 = vld [vmem:[#allocation10 + $0x104] sm:$0xff]
    %v1349 = vld [vmem:[#allocation10 + $0x10c] sm:$0xff]
    %v1350 = vld [vmem:[#allocation10 + $0x114] sm:$0xf]
    %v1351 = vld [vmem:[#allocation10 + $0x118] sm:$0xff]
    %v1352 = vld [vmem:[#allocation10 + $0x120] sm:$0xff]
    %v1353 = vld [vmem:[#allocation10 + $0x128] sm:$0xff]
    %v1354 = vld [vmem:[#allocation10 + $0x130] sm:$0xf]
    %v1355 = vld [vmem:[#allocation10 + $0x134] sm:$0xff]
    %v1356 = vld [vmem:[#allocation10 + $0x13c] sm:$0xff]
    %v1357 = vld [vmem:[#allocation10 + $0x144] sm:$0xff]
    %v1358 = vld [vmem:[#allocation10 + $0x14c] sm:$0xf]
    %v1359 = vld [vmem:[#allocation10 + $0x150] sm:$0xff]
    %v1360 = vld [vmem:[#allocation10 + $0x158] sm:$0xff]
    %v1361 = vld [vmem:[#allocation10 + $0x160] sm:$0xff]
    %v1362 = vld [vmem:[#allocation10 + $0x168] sm:$0xf]
    %v1363 = vld [vmem:[#allocation10 + $0x16c] sm:$0xff]
    %v1364 = vld [vmem:[#allocation10 + $0x174] sm:$0xff]
    %v1365 = vld [vmem:[#allocation10 + $0x17c] sm:$0xff]
    %v1366 = vld [vmem:[#allocation10 + $0x184] sm:$0xf]
    %v1367 = vld [vmem:[#allocation10 + $0x188] sm:$0xff]
    %v1368 = vld [vmem:[#allocation10 + $0x190] sm:$0xff]
    %v1369 = vld [vmem:[#allocation10 + $0x198] sm:$0xff]
    %v1370 = vld [vmem:[#allocation10 + $0x1a0] sm:$0xf]
    %v1371 = vld [vmem:[#allocation10 + $0x1a4] sm:$0xff]
    %v1372 = vld [vmem:[#allocation10 + $0x1ac] sm:$0xff]
    %v1373 = vld [vmem:[#allocation10 + $0x1b4] sm:$0xff]
    %v1374 = vld [vmem:[#allocation10 + $0x1bc] sm:$0xf]
    %v1375 = vld [vmem:[#allocation10 + $0x1c0] sm:$0xff]
    %v1376 = vld [vmem:[#allocation10 + $0x1c8] sm:$0xff]
    %v1377 = vld [vmem:[#allocation10 + $0x1d0] sm:$0xff]
    %v1378 = vld [vmem:[#allocation10 + $0x1d8] sm:$0xf]
    %v1379 = vld [vmem:[#allocation10 + $0x1dc] sm:$0xff]
    %v1380 = vld [vmem:[#allocation10 + $0x1e4] sm:$0xff]
    %v1381 = vld [vmem:[#allocation10 + $0x1ec] sm:$0xff]
    %v1382 = vld [vmem:[#allocation10 + $0x1f4] sm:$0xf]
    %v1383 = vld [vmem:[#allocation10 + $0x1f8] sm:$0xff]
    %v1384 = vld [vmem:[#allocation10 + $0x200] sm:$0xff]
    %v1385 = vld [vmem:[#allocation10 + $0x208] sm:$0xff]
    %v1386 = vld [vmem:[#allocation10 + $0x210] sm:$0xf]
    %v1387 = vld [vmem:[#allocation10 + $0x214] sm:$0xff]
    %v1388 = vld [vmem:[#allocation10 + $0x21c] sm:$0xff]
    %v1389 = vld [vmem:[#allocation10 + $0x224] sm:$0xff]
    %v1390 = vld [vmem:[#allocation10 + $0x22c] sm:$0xf]
    %v1391 = vld [vmem:[#allocation10 + $0x230] sm:$0xff]
    %v1392 = vld [vmem:[#allocation10 + $0x238] sm:$0xff]
    %v1393 = vld [vmem:[#allocation10 + $0x240] sm:$0xff]
    %v1394 = vld [vmem:[#allocation10 + $0x248] sm:$0xf]
    %v1395 = vld [vmem:[#allocation10 + $0x24c] sm:$0xff]
    %v1396 = vld [vmem:[#allocation10 + $0x254] sm:$0xff]
    %v1397 = vld [vmem:[#allocation10 + $0x25c] sm:$0xff]
    %v1398 = vld [vmem:[#allocation10 + $0x264] sm:$0xf]
    %v1399 = vld [vmem:[#allocation10 + $0x268] sm:$0xff]
    %v1400 = vld [vmem:[#allocation10 + $0x270] sm:$0xff]
    %v1401 = vld [vmem:[#allocation10 + $0x278] sm:$0xff]
    %v1402 = vld [vmem:[#allocation10 + $0x280] sm:$0xf]
    %v1403 = vld [vmem:[#allocation10 + $0x284] sm:$0xff]
    %v1404 = vld [vmem:[#allocation10 + $0x28c] sm:$0xff]
    %v1405 = vld [vmem:[#allocation10 + $0x294] sm:$0xff]
    %v1406 = vld [vmem:[#allocation10 + $0x29c] sm:$0xf]
    %v1407 = vld [vmem:[#allocation10 + $0x2a0] sm:$0xff]
    %v1408 = vld [vmem:[#allocation10 + $0x2a8] sm:$0xff]
    %v1409 = vld [vmem:[#allocation10 + $0x2b0] sm:$0xff]
    %v1410 = vld [vmem:[#allocation10 + $0x2b8] sm:$0xf]
    %v1411 = vld [vmem:[#allocation10 + $0x2bc] sm:$0xff]
    %v1412 = vld [vmem:[#allocation10 + $0x2c4] sm:$0xff]
    %v1413 = vld [vmem:[#allocation10 + $0x2cc] sm:$0xff]
    %v1414 = vld [vmem:[#allocation10 + $0x2d4] sm:$0xf]
    %v1415 = vld [vmem:[#allocation10 + $0x2d8] sm:$0xff]
    %v1416 = vld [vmem:[#allocation10 + $0x2e0] sm:$0xff]
    %v1417 = vld [vmem:[#allocation10 + $0x2e8] sm:$0xff]
    %v1418 = vld [vmem:[#allocation10 + $0x2f0] sm:$0xf]
    %v1419 = vld [vmem:[#allocation10 + $0x2f4] sm:$0xff]
    %v1420 = vld [vmem:[#allocation10 + $0x2fc] sm:$0xff]
    %v1421 = vld [vmem:[#allocation10 + $0x304] sm:$0xff]
    %v1422 = vld [vmem:[#allocation10 + $0x30c] sm:$0xf]
    %v1423 = vld [vmem:[#allocation10 + $0x310] sm:$0xff]
    %v1424 = vld [vmem:[#allocation10 + $0x318] sm:$0xff]
    %v1425 = vld [vmem:[#allocation10 + $0x320] sm:$0xff]
    %v1426 = vld [vmem:[#allocation10 + $0x328] sm:$0xf]
    %v1427 = vld [vmem:[#allocation10 + $0x32c] sm:$0xff]
    %v1428 = vld [vmem:[#allocation10 + $0x334] sm:$0xff]
    %v1429 = vld [vmem:[#allocation10 + $0x33c] sm:$0xff]
    %v1430 = vld [vmem:[#allocation10 + $0x344] sm:$0xf]
    %v1431 = vld [vmem:[#allocation10 + $0x348] sm:$0xff]
    %v1432 = vld [vmem:[#allocation10 + $0x350] sm:$0xff]
    %v1433 = vld [vmem:[#allocation10 + $0x358] sm:$0xff]
    %v1434 = vld [vmem:[#allocation10 + $0x360] sm:$0xf]
    %v1435 = vld [vmem:[#allocation10 + $0x364] sm:$0xff]
    %v1436 = vld [vmem:[#allocation10 + $0x36c] sm:$0xff]
    %v1437 = vld [vmem:[#allocation10 + $0x374] sm:$0xff]
    %v1438 = vld [vmem:[#allocation10 + $0x37c] sm:$0xf]
    %v1439 = vld [vmem:[#allocation10 + $0x380] sm:$0xff]
    %v1440 = vld [vmem:[#allocation10 + $0x388] sm:$0xff]
    %v1441 = vld [vmem:[#allocation10 + $0x390] sm:$0xff]
    %v1442 = vld [vmem:[#allocation10 + $0x398] sm:$0xf]
    %v1443 = vld [vmem:[#allocation10 + $0x39c] sm:$0xff]
    %v1444 = vld [vmem:[#allocation10 + $0x3a4] sm:$0xff]
    %v1445 = vld [vmem:[#allocation10 + $0x3ac] sm:$0xff]
    %v1446 = vld [vmem:[#allocation10 + $0x3b4] sm:$0xf]
    %v1447 = vld [vmem:[#allocation10 + $0x3b8] sm:$0xff]
    %v1448 = vld [vmem:[#allocation10 + $0x3c0] sm:$0xff]
    %v1449 = vld [vmem:[#allocation10 + $0x3c8] sm:$0xff]
    %v1450 = vld [vmem:[#allocation10 + $0x3d0] sm:$0xf]
    %v1451 = vld [vmem:[#allocation10 + $0x3d4] sm:$0xff]
    %v1452 = vld [vmem:[#allocation10 + $0x3dc] sm:$0xff]
    %v1453 = vld [vmem:[#allocation10 + $0x3e4] sm:$0xff]
    %v1454 = vld [vmem:[#allocation10 + $0x3ec] sm:$0xf]
    %v1455 = vld [vmem:[#allocation10 + $0x3f0] sm:$0xff]
    %v1456 = vld [vmem:[#allocation10 + $0x3f8] sm:$0xff]
    %v1457 = vld [vmem:[#allocation10 + $0x400] sm:$0xff]
    %v1458 = vld [vmem:[#allocation10 + $0x408] sm:$0xf]
    %v1459 = vld [vmem:[#allocation10 + $0x40c] sm:$0xff]
    %v1460 = vld [vmem:[#allocation10 + $0x414] sm:$0xff]
    %v1461 = vld [vmem:[#allocation10 + $0x41c] sm:$0xff]
    %v1462 = vld [vmem:[#allocation10 + $0x424] sm:$0xf]
    %v1463 = vld [vmem:[#allocation10 + $0x428] sm:$0xff]
    %v1464 = vld [vmem:[#allocation10 + $0x430] sm:$0xff]
    %v1465 = vld [vmem:[#allocation10 + $0x438] sm:$0xff]
    %v1466 = vld [vmem:[#allocation10 + $0x440] sm:$0xf]
    %v1467 = vld [vmem:[#allocation10 + $0x444] sm:$0xff]
    %v1468 = vld [vmem:[#allocation10 + $0x44c] sm:$0xff]
    %v1469 = vld [vmem:[#allocation10 + $0x454] sm:$0xff]
    %v1470 = vld [vmem:[#allocation10 + $0x45c] sm:$0xf]
    %v1471 = vld [vmem:[#allocation10 + $0x460] sm:$0xff]
    %v1472 = vld [vmem:[#allocation10 + $0x468] sm:$0xff]
    %v1473 = vld [vmem:[#allocation10 + $0x470] sm:$0xff]
    %v1474 = vld [vmem:[#allocation10 + $0x478] sm:$0xf]
    %v1475 = vld [vmem:[#allocation10 + $0x47c] sm:$0xff]
    %v1476 = vld [vmem:[#allocation10 + $0x484] sm:$0xff]
    %v1477 = vld [vmem:[#allocation10 + $0x48c] sm:$0xff]
    %v1478 = vld [vmem:[#allocation10 + $0x494] sm:$0xf]
    %v1479 = vld [vmem:[#allocation10 + $0x498] sm:$0xff]
    %v1480 = vld [vmem:[#allocation10 + $0x4a0] sm:$0xff]
    %v1481 = vld [vmem:[#allocation10 + $0x4a8] sm:$0xff]
    %v1482 = vld [vmem:[#allocation10 + $0x4b0] sm:$0xf]
    %v1483 = vld [vmem:[#allocation10 + $0x4b4] sm:$0xff]
    %v1484 = vld [vmem:[#allocation10 + $0x4bc] sm:$0xff]
    %v1485 = vld [vmem:[#allocation10 + $0x4c4] sm:$0xff]
    %v1486 = vld [vmem:[#allocation10 + $0x4cc] sm:$0xf]
    %v1487 = vld [vmem:[#allocation10 + $0x4d0] sm:$0xff]
    %v1488 = vld [vmem:[#allocation10 + $0x4d8] sm:$0xff]
    %v1489 = vld [vmem:[#allocation10 + $0x4e0] sm:$0xff]
    %v1490 = vld [vmem:[#allocation10 + $0x4e8] sm:$0xf]
    %v1491 = vld [vmem:[#allocation10 + $0x4ec] sm:$0xff]
    %v1492 = vld [vmem:[#allocation10 + $0x4f4] sm:$0xff]
    %v1493 = vld [vmem:[#allocation10 + $0x4fc] sm:$0xff]
    %v1494 = vld [vmem:[#allocation10 + $0x504] sm:$0xf]
    %v1495 = vld [vmem:[#allocation10 + $0x508] sm:$0xff]
    %v1496 = vld [vmem:[#allocation10 + $0x510] sm:$0xff]
    %v1497 = vld [vmem:[#allocation10 + $0x518] sm:$0xff]
    %v1498 = vld [vmem:[#allocation10 + $0x520] sm:$0xf]
    %v1499 = vld [vmem:[#allocation10 + $0x524] sm:$0xff]
    %v1500 = vld [vmem:[#allocation10 + $0x52c] sm:$0xff]
    %v1501 = vld [vmem:[#allocation10 + $0x534] sm:$0xff]
    %v1502 = vld [vmem:[#allocation10 + $0x53c] sm:$0xf]
    %v1503 = vld [vmem:[#allocation10 + $0x540] sm:$0xff]
    %v1504 = vld [vmem:[#allocation10 + $0x548] sm:$0xff]
    %v1505 = vld [vmem:[#allocation10 + $0x550] sm:$0xff]
    %v1506 = vld [vmem:[#allocation10 + $0x558] sm:$0xf]
    %v1507 = vld [vmem:[#allocation10 + $0x55c] sm:$0xff]
    %v1508 = vld [vmem:[#allocation10 + $0x564] sm:$0xff]
    %v1509 = vld [vmem:[#allocation10 + $0x56c] sm:$0xff]
    %v1510 = vld [vmem:[#allocation10 + $0x574] sm:$0xf]
    %v1511 = vld [vmem:[#allocation10 + $0x578] sm:$0xff]
    %v1512 = vld [vmem:[#allocation10 + $0x580] sm:$0xff]
    %v1513 = vld [vmem:[#allocation10 + $0x588] sm:$0xff]
    %v1514 = vld [vmem:[#allocation10 + $0x590] sm:$0xf]
    %v1515 = vld [vmem:[#allocation10 + $0x594] sm:$0xff]
    %v1516 = vld [vmem:[#allocation10 + $0x59c] sm:$0xff]
    %v1517 = vld [vmem:[#allocation10 + $0x5a4] sm:$0xff]
    %v1518 = vld [vmem:[#allocation10 + $0x5ac] sm:$0xf]
    %v1519 = vld [vmem:[#allocation10 + $0x5b0] sm:$0xff]
    %v1520 = vld [vmem:[#allocation10 + $0x5b8] sm:$0xff]
    %v1521 = vld [vmem:[#allocation10 + $0x5c0] sm:$0xff]
    %v1522 = vld [vmem:[#allocation10 + $0x5c8] sm:$0xf]
    %v1523 = vld [vmem:[#allocation10 + $0x5cc] sm:$0xff]
    %v1524 = vld [vmem:[#allocation10 + $0x5d4] sm:$0xff]
    %v1525 = vld [vmem:[#allocation10 + $0x5dc] sm:$0xff]
    %v1526 = vld [vmem:[#allocation10 + $0x5e4] sm:$0xf]
    %v1527 = vld [vmem:[#allocation10 + $0x5e8] sm:$0xff]
    %v1528 = vld [vmem:[#allocation10 + $0x5f0] sm:$0xff]
    %v1529 = vld [vmem:[#allocation10 + $0x5f8] sm:$0xff]
    %v1530 = vld [vmem:[#allocation10 + $0x600] sm:$0xf]
    %v1531 = vld [vmem:[#allocation10 + $0x604] sm:$0xff]
    %v1532 = vld [vmem:[#allocation10 + $0x60c] sm:$0xff]
    %v1533 = vld [vmem:[#allocation10 + $0x614] sm:$0xff]
    %v1534 = vld [vmem:[#allocation10 + $0x61c] sm:$0xf]
    %v1535 = vld [vmem:[#allocation10 + $0x620] sm:$0xff]
    %v1536 = vld [vmem:[#allocation10 + $0x628] sm:$0xff]
    %v1537 = vld [vmem:[#allocation10 + $0x630] sm:$0xff]
    %v1538 = vld [vmem:[#allocation10 + $0x638] sm:$0xf]
    %v1539 = vld [vmem:[#allocation10 + $0x63c] sm:$0xff]
    %v1540 = vld [vmem:[#allocation10 + $0x644] sm:$0xff]
    %v1541 = vld [vmem:[#allocation10 + $0x64c] sm:$0xff]
    %v1542 = vld [vmem:[#allocation10 + $0x654] sm:$0xf]
    %v1543 = vld [vmem:[#allocation10 + $0x658] sm:$0xff]
    %v1544 = vld [vmem:[#allocation10 + $0x660] sm:$0xff]
    %v1545 = vld [vmem:[#allocation10 + $0x668] sm:$0xff]
    %v1546 = vld [vmem:[#allocation10 + $0x670] sm:$0xf]
    %v1547 = vld [vmem:[#allocation10 + $0x674] sm:$0xff]
    %v1548 = vld [vmem:[#allocation10 + $0x67c] sm:$0xff]
    %v1549 = vld [vmem:[#allocation10 + $0x684] sm:$0xff]
    %v1550 = vld [vmem:[#allocation10 + $0x68c] sm:$0xf]
    %v1551 = vld [vmem:[#allocation10 + $0x690] sm:$0xff]
    %v1552 = vld [vmem:[#allocation10 + $0x698] sm:$0xff]
    %v1553 = vld [vmem:[#allocation10 + $0x6a0] sm:$0xff]
    %v1554 = vld [vmem:[#allocation10 + $0x6a8] sm:$0xf]
    %v1555 = vld [vmem:[#allocation10 + $0x6ac] sm:$0xff]
    %v1556 = vld [vmem:[#allocation10 + $0x6b4] sm:$0xff]
    %v1557 = vld [vmem:[#allocation10 + $0x6bc] sm:$0xff]
    %v1558 = vld [vmem:[#allocation10 + $0x6c4] sm:$0xf]
    %v1559 = vld [vmem:[#allocation10 + $0x6c8] sm:$0xff]
    %v1560 = vld [vmem:[#allocation10 + $0x6d0] sm:$0xff]
    %v1561 = vld [vmem:[#allocation10 + $0x6d8] sm:$0xff]
    %v1562 = vld [vmem:[#allocation10 + $0x6e0] sm:$0xf]
    %v1563 = vld [vmem:[#allocation10 + $0x6e4] sm:$0xff]
    %v1564 = vld [vmem:[#allocation10 + $0x6ec] sm:$0xff]
    %v1565 = vld [vmem:[#allocation10 + $0x6f4] sm:$0xff]
    %v1566 = vld [vmem:[#allocation10 + $0x6fc] sm:$0xf]
    %v1567 = vld [vmem:[#allocation10 + $0x700] sm:$0xff]
    %v1568 = vld [vmem:[#allocation10 + $0x708] sm:$0xff]
    %v1569 = vld [vmem:[#allocation10 + $0x710] sm:$0xff]
    %v1570 = vld [vmem:[#allocation10 + $0x718] sm:$0xf]
    %v1571 = vld [vmem:[#allocation10 + $0x71c] sm:$0xff]
    %v1572 = vld [vmem:[#allocation10 + $0x724] sm:$0xff]
    %v1573 = vld [vmem:[#allocation10 + $0x72c] sm:$0xff]
    %v1574 = vld [vmem:[#allocation10 + $0x734] sm:$0xf]
    %v1575 = vld [vmem:[#allocation10 + $0x738] sm:$0xff]
    %v1576 = vld [vmem:[#allocation10 + $0x740] sm:$0xff]
    %v1577 = vld [vmem:[#allocation10 + $0x748] sm:$0xff]
    %v1578 = vld [vmem:[#allocation10 + $0x750] sm:$0xf]
    %v1579 = vld [vmem:[#allocation10 + $0x754] sm:$0xff]
    %v1580 = vld [vmem:[#allocation10 + $0x75c] sm:$0xff]
    %v1581 = vld [vmem:[#allocation10 + $0x764] sm:$0xff]
    %v1582 = vld [vmem:[#allocation10 + $0x76c] sm:$0xf]
    %v1583 = vld [vmem:[#allocation10 + $0x770] sm:$0xff]
    %v1584 = vld [vmem:[#allocation10 + $0x778] sm:$0xff]
    %v1585 = vld [vmem:[#allocation10 + $0x780] sm:$0xff]
    %v1586 = vld [vmem:[#allocation10 + $0x788] sm:$0xf]
    %v1587 = vld [vmem:[#allocation10 + $0x78c] sm:$0xff]
    %v1588 = vld [vmem:[#allocation10 + $0x794] sm:$0xff]
    %v1589 = vld [vmem:[#allocation10 + $0x79c] sm:$0xff]
    %v1590 = vld [vmem:[#allocation10 + $0x7a4] sm:$0xf]
    %v1591 = vld [vmem:[#allocation10 + $0x7a8] sm:$0xff]
    %v1592 = vld [vmem:[#allocation10 + $0x7b0] sm:$0xff]
    %v1593 = vld [vmem:[#allocation10 + $0x7b8] sm:$0xff]
    %v1594 = vld [vmem:[#allocation10 + $0x7c0] sm:$0xf]
    %v1595 = vld [vmem:[#allocation10 + $0x7c4] sm:$0xff]
    %v1596 = vld [vmem:[#allocation10 + $0x7cc] sm:$0xff]
    %v1597 = vld [vmem:[#allocation10 + $0x7d4] sm:$0xff]
    %v1598 = vld [vmem:[#allocation10 + $0x7dc] sm:$0xf]
    %v1599 = vld [vmem:[#allocation10 + $0x7e0] sm:$0xff]
    %v1600 = vld [vmem:[#allocation10 + $0x7e8] sm:$0xff]
    %v1601 = vld [vmem:[#allocation10 + $0x7f0] sm:$0xff]
    %v1602 = vld [vmem:[#allocation10 + $0x7f8] sm:$0xf]
    %v1603 = vld [vmem:[#allocation10 + $0x7fc] sm:$0xff]
    %v1604 = vld [vmem:[#allocation10 + $0x804] sm:$0xff]
    %v1605 = vld [vmem:[#allocation10 + $0x80c] sm:$0xff]
    %v1606 = vld [vmem:[#allocation10 + $0x814] sm:$0xf]
    %v1607 = vld [vmem:[#allocation10 + $0x818] sm:$0xff]
    %v1608 = vld [vmem:[#allocation10 + $0x820] sm:$0xff]
    %v1609 = vld [vmem:[#allocation10 + $0x828] sm:$0xff]
    %v1610 = vld [vmem:[#allocation10 + $0x830] sm:$0xf]
    %v1611 = vld [vmem:[#allocation10 + $0x834] sm:$0xff]
    %v1612 = vld [vmem:[#allocation10 + $0x83c] sm:$0xff]
    %v1613 = vld [vmem:[#allocation10 + $0x844] sm:$0xff]
    %v1614 = vld [vmem:[#allocation10 + $0x84c] sm:$0xf]
    %v1615 = vld [vmem:[#allocation10 + $0x850] sm:$0xff]
    %v1616 = vld [vmem:[#allocation10 + $0x858] sm:$0xff]
    %v1617 = vld [vmem:[#allocation10 + $0x860] sm:$0xff]
    %v1618 = vld [vmem:[#allocation10 + $0x868] sm:$0xf]
    %v1619 = vld [vmem:[#allocation10 + $0x86c] sm:$0xff]
    %v1620 = vld [vmem:[#allocation10 + $0x874] sm:$0xff]
    %v1621 = vld [vmem:[#allocation10 + $0x87c] sm:$0xff]
    %v1622 = vld [vmem:[#allocation10 + $0x884] sm:$0xf]
    %v1623 = vld [vmem:[#allocation10 + $0x888] sm:$0xff]
    %v1624 = vld [vmem:[#allocation10 + $0x890] sm:$0xff]
    %v1625 = vld [vmem:[#allocation10 + $0x898] sm:$0xff]
    %v1626 = vld [vmem:[#allocation10 + $0x8a0] sm:$0xf]
    %v1627 = vld [vmem:[#allocation10 + $0x8a4] sm:$0xff]
    %v1628 = vld [vmem:[#allocation10 + $0x8ac] sm:$0xff]
    %v1629 = vld [vmem:[#allocation10 + $0x8b4] sm:$0xff]
    %v1630 = vld [vmem:[#allocation10 + $0x8bc] sm:$0xf]
    %v1631 = vld [vmem:[#allocation10 + $0x8c0] sm:$0xff]
    %v1632 = vld [vmem:[#allocation10 + $0x8c8] sm:$0xff]
    %v1633 = vld [vmem:[#allocation10 + $0x8d0] sm:$0xff]
    %v1634 = vld [vmem:[#allocation10 + $0x8d8] sm:$0xf]
    %v1635 = vld [vmem:[#allocation10 + $0x8dc] sm:$0xff]
    %v1636 = vld [vmem:[#allocation10 + $0x8e4] sm:$0xff]
    %v1637 = vld [vmem:[#allocation10 + $0x8ec] sm:$0xff]
    %v1638 = vld [vmem:[#allocation10 + $0x8f4] sm:$0xf]
    %v1639 = vld [vmem:[#allocation10 + $0x8f8] sm:$0xff]
    %v1640 = vld [vmem:[#allocation10 + $0x900] sm:$0xff]
    %v1641 = vld [vmem:[#allocation10 + $0x908] sm:$0xff]
    %v1642 = vld [vmem:[#allocation10 + $0x910] sm:$0xf]
    %v1643 = vld [vmem:[#allocation10 + $0x914] sm:$0xff]
    %v1644 = vld [vmem:[#allocation10 + $0x91c] sm:$0xff]
    %v1645 = vld [vmem:[#allocation10 + $0x924] sm:$0xff]
    %v1646 = vld [vmem:[#allocation10 + $0x92c] sm:$0xf]
    %v1647 = vld [vmem:[#allocation10 + $0x930] sm:$0xff]
    %v1648 = vld [vmem:[#allocation10 + $0x938] sm:$0xff]
    %v1649 = vld [vmem:[#allocation10 + $0x940] sm:$0xff]
    %v1650 = vld [vmem:[#allocation10 + $0x948] sm:$0xf]
    %v1651 = vld [vmem:[#allocation10 + $0x94c] sm:$0xff]
    %v1652 = vld [vmem:[#allocation10 + $0x954] sm:$0xff]
    %v1653 = vld [vmem:[#allocation10 + $0x95c] sm:$0xff]
    %v1654 = vld [vmem:[#allocation10 + $0x964] sm:$0xf]
    %v1655 = vld [vmem:[#allocation10 + $0x968] sm:$0xff]
    %v1656 = vld [vmem:[#allocation10 + $0x970] sm:$0xff]
    %v1657 = vld [vmem:[#allocation10 + $0x978] sm:$0xff]
    %v1658 = vld [vmem:[#allocation10 + $0x980] sm:$0xf]
    %v1659 = vld [vmem:[#allocation10 + $0x984] sm:$0xff]
    %v1660 = vld [vmem:[#allocation10 + $0x98c] sm:$0xff]
    %v1661 = vld [vmem:[#allocation10 + $0x994] sm:$0xff]
    %v1662 = vld [vmem:[#allocation10 + $0x99c] sm:$0xf]
    %v1663 = vld [vmem:[#allocation10 + $0x9a0] sm:$0xff]
    %v1664 = vld [vmem:[#allocation10 + $0x9a8] sm:$0xff]
    %v1665 = vld [vmem:[#allocation10 + $0x9b0] sm:$0xff]
    %v1666 = vld [vmem:[#allocation10 + $0x9b8] sm:$0xf]
    %v1667 = vld [vmem:[#allocation10 + $0x9bc] sm:$0xff]
    %v1668 = vld [vmem:[#allocation10 + $0x9c4] sm:$0xff]
    %v1669 = vld [vmem:[#allocation10 + $0x9cc] sm:$0xff]
    %v1670 = vld [vmem:[#allocation10 + $0x9d4] sm:$0xf]
    %v1671 = vld [vmem:[#allocation10 + $0x9d8] sm:$0xff]
    %v1672 = vld [vmem:[#allocation10 + $0x9e0] sm:$0xff]
    %v1673 = vld [vmem:[#allocation10 + $0x9e8] sm:$0xff]
    %v1674 = vld [vmem:[#allocation10 + $0x9f0] sm:$0xf]
    %v1675 = vld [vmem:[#allocation10 + $0x9f4] sm:$0xff]
    %v1676 = vld [vmem:[#allocation10 + $0x9fc] sm:$0xff]
    %v1677 = vld [vmem:[#allocation10 + $0xa04] sm:$0xff]
    %v1678 = vld [vmem:[#allocation10 + $0xa0c] sm:$0xf]
    %v1679 = vld [vmem:[#allocation10 + $0xa10] sm:$0xff]
    %v1680 = vld [vmem:[#allocation10 + $0xa18] sm:$0xff]
    %v1681 = vld [vmem:[#allocation10 + $0xa20] sm:$0xff]
    %v1682 = vld [vmem:[#allocation10 + $0xa28] sm:$0xf]
    %v1683 = vld [vmem:[#allocation10 + $0xa2c] sm:$0xff]
    %v1684 = vld [vmem:[#allocation10 + $0xa34] sm:$0xff]
    %v1685 = vld [vmem:[#allocation10 + $0xa3c] sm:$0xff]
    %v1686 = vld [vmem:[#allocation10 + $0xa44] sm:$0xf]
    %v1687 = vld [vmem:[#allocation10 + $0xa48] sm:$0xff]
    %v1688 = vld [vmem:[#allocation10 + $0xa50] sm:$0xff]
    %v1689 = vld [vmem:[#allocation10 + $0xa58] sm:$0xff]
    %v1690 = vld [vmem:[#allocation10 + $0xa60] sm:$0xf]
    %v1691 = vld [vmem:[#allocation10 + $0xa64] sm:$0xff]
    %v1692 = vld [vmem:[#allocation10 + $0xa6c] sm:$0xff]
    %v1693 = vld [vmem:[#allocation10 + $0xa74] sm:$0xff]
    %v1694 = vld [vmem:[#allocation10 + $0xa7c] sm:$0xf]
    %v1695 = vld [vmem:[#allocation10 + $0xa80] sm:$0xff]
    %v1696 = vld [vmem:[#allocation10 + $0xa88] sm:$0xff]
    %v1697 = vld [vmem:[#allocation10 + $0xa90] sm:$0xff]
    %v1698 = vld [vmem:[#allocation10 + $0xa98] sm:$0xf]
    %v1699 = vld [vmem:[#allocation10 + $0xa9c] sm:$0xff]
    %v1700 = vld [vmem:[#allocation10 + $0xaa4] sm:$0xff]
    %v1701 = vld [vmem:[#allocation10 + $0xaac] sm:$0xff]
    %v1702 = vld [vmem:[#allocation10 + $0xab4] sm:$0xf]
    %v1703 = vld [vmem:[#allocation10 + $0xab8] sm:$0xff]
    %v1704 = vld [vmem:[#allocation10 + $0xac0] sm:$0xff]
    %v1705 = vld [vmem:[#allocation10 + $0xac8] sm:$0xff]
    %v1706 = vld [vmem:[#allocation10 + $0xad0] sm:$0xf]
    %v1707 = vld [vmem:[#allocation10 + $0xad4] sm:$0xff]
    %v1708 = vld [vmem:[#allocation10 + $0xadc] sm:$0xff]
    %v1709 = vld [vmem:[#allocation10 + $0xae4] sm:$0xff]
    %v1710 = vld [vmem:[#allocation10 + $0xaec] sm:$0xf]
    %v1711 = vld [vmem:[#allocation10 + $0xaf0] sm:$0xff]
    %v1712 = vld [vmem:[#allocation10 + $0xaf8] sm:$0xff]
    %v1713 = vld [vmem:[#allocation10 + $0xb00] sm:$0xff]
    %v1714 = vld [vmem:[#allocation10 + $0xb08] sm:$0xf]
    %v1715 = vld [vmem:[#allocation10 + $0xb0c] sm:$0xff]
    %v1716 = vld [vmem:[#allocation10 + $0xb14] sm:$0xff]
    %v1717 = vld [vmem:[#allocation10 + $0xb1c] sm:$0xff]
    %v1718 = vld [vmem:[#allocation10 + $0xb24] sm:$0xf]
    %v1719 = vld [vmem:[#allocation10 + $0xb28] sm:$0xff]
    %v1720 = vld [vmem:[#allocation10 + $0xb30] sm:$0xff]
    %v1721 = vld [vmem:[#allocation10 + $0xb38] sm:$0xff]
    %v1722 = vld [vmem:[#allocation10 + $0xb40] sm:$0xf]
    %v1723 = vld [vmem:[#allocation10 + $0xb44] sm:$0xff]
    %v1724 = vld [vmem:[#allocation10 + $0xb4c] sm:$0xff]
    %v1725 = vld [vmem:[#allocation10 + $0xb54] sm:$0xff]
    %v1726 = vld [vmem:[#allocation10 + $0xb5c] sm:$0xf]
    %v1727 = vld [vmem:[#allocation10 + $0xb60] sm:$0xff]
    %v1728 = vld [vmem:[#allocation10 + $0xb68] sm:$0xff]
    %v1729 = vld [vmem:[#allocation10 + $0xb70] sm:$0xff]
    %v1730 = vld [vmem:[#allocation10 + $0xb78] sm:$0xf]
    %v1731 = vld [vmem:[#allocation10 + $0xb7c] sm:$0xff]
    %v1732 = vld [vmem:[#allocation10 + $0xb84] sm:$0xff]
    %v1733 = vld [vmem:[#allocation10 + $0xb8c] sm:$0xff]
    %v1734 = vld [vmem:[#allocation10 + $0xb94] sm:$0xf]
    %v1735 = vld [vmem:[#allocation10 + $0xb98] sm:$0xff]
    %v1736 = vld [vmem:[#allocation10 + $0xba0] sm:$0xff]
    %v1737 = vld [vmem:[#allocation10 + $0xba8] sm:$0xff]
    %v1738 = vld [vmem:[#allocation10 + $0xbb0] sm:$0xf]
    %v1739 = vld [vmem:[#allocation10 + $0xbb4] sm:$0xff]
    %v1740 = vld [vmem:[#allocation10 + $0xbbc] sm:$0xff]
    %v1741 = vld [vmem:[#allocation10 + $0xbc4] sm:$0xff]
    %v1742 = vld [vmem:[#allocation10 + $0xbcc] sm:$0xf]
    %v1743 = vld [vmem:[#allocation10 + $0xbd0] sm:$0xff]
    %v1744 = vld [vmem:[#allocation10 + $0xbd8] sm:$0xff]
    %v1745 = vld [vmem:[#allocation10 + $0xbe0] sm:$0xff]
    %v1746 = vld [vmem:[#allocation10 + $0xbe8] sm:$0xf]
    %v1747 = vld [vmem:[#allocation10 + $0xbec] sm:$0xff]
    %v1748 = vld [vmem:[#allocation10 + $0xbf4] sm:$0xff]
    %v1749 = vld [vmem:[#allocation10 + $0xbfc] sm:$0xff]
    %v1750 = vld [vmem:[#allocation10 + $0xc04] sm:$0xf]
    %v1751 = vld [vmem:[#allocation10 + $0xc08] sm:$0xff]
    %v1752 = vld [vmem:[#allocation10 + $0xc10] sm:$0xff]
    %v1753 = vld [vmem:[#allocation10 + $0xc18] sm:$0xff]
    %v1754 = vld [vmem:[#allocation10 + $0xc20] sm:$0xf]
    %v1755 = vld [vmem:[#allocation10 + $0xc24] sm:$0xff]
    %v1756 = vld [vmem:[#allocation10 + $0xc2c] sm:$0xff]
    %v1757 = vld [vmem:[#allocation10 + $0xc34] sm:$0xff]
    %v1758 = vld [vmem:[#allocation10 + $0xc3c] sm:$0xf]
    %v1759 = vld [vmem:[#allocation10 + $0xc40] sm:$0xff]
    %v1760 = vld [vmem:[#allocation10 + $0xc48] sm:$0xff]
    %v1761 = vld [vmem:[#allocation10 + $0xc50] sm:$0xff]
    %v1762 = vld [vmem:[#allocation10 + $0xc58] sm:$0xf]
    %v1763 = vld [vmem:[#allocation10 + $0xc5c] sm:$0xff]
    %v1764 = vld [vmem:[#allocation10 + $0xc64] sm:$0xff]
    %v1765 = vld [vmem:[#allocation10 + $0xc6c] sm:$0xff]
    %v1766 = vld [vmem:[#allocation10 + $0xc74] sm:$0xf]
    %v1767 = vld [vmem:[#allocation10 + $0xc78] sm:$0xff]
    %v1768 = vld [vmem:[#allocation10 + $0xc80] sm:$0xff]
    %v1769 = vld [vmem:[#allocation10 + $0xc88] sm:$0xff]
    %v1770 = vld [vmem:[#allocation10 + $0xc90] sm:$0xf]
    %v1771 = vld [vmem:[#allocation10 + $0xc94] sm:$0xff]
    %v1772 = vld [vmem:[#allocation10 + $0xc9c] sm:$0xff]
    %v1773 = vld [vmem:[#allocation10 + $0xca4] sm:$0xff]
    %v1774 = vld [vmem:[#allocation10 + $0xcac] sm:$0xf]
    %v1775 = vld [vmem:[#allocation10 + $0xcb0] sm:$0xff]
    %v1776 = vld [vmem:[#allocation10 + $0xcb8] sm:$0xff]
    %v1777 = vld [vmem:[#allocation10 + $0xcc0] sm:$0xff]
    %v1778 = vld [vmem:[#allocation10 + $0xcc8] sm:$0xf]
    %v1779 = vld [vmem:[#allocation10 + $0xccc] sm:$0xff]
    %v1780 = vld [vmem:[#allocation10 + $0xcd4] sm:$0xff]
    %v1781 = vld [vmem:[#allocation10 + $0xcdc] sm:$0xff]
    %v1782 = vld [vmem:[#allocation10 + $0xce4] sm:$0xf]
    %v1783 = vld [vmem:[#allocation10 + $0xce8] sm:$0xff]
    %v1784 = vld [vmem:[#allocation10 + $0xcf0] sm:$0xff]
    %v1785 = vld [vmem:[#allocation10 + $0xcf8] sm:$0xff]
    %v1786 = vld [vmem:[#allocation10 + $0xd00] sm:$0xf]
    %v1787 = vld [vmem:[#allocation10 + $0xd04] sm:$0xff]
    %v1788 = vld [vmem:[#allocation10 + $0xd0c] sm:$0xff]
    %v1789 = vld [vmem:[#allocation10 + $0xd14] sm:$0xff]
    %v1790 = vld [vmem:[#allocation10 + $0xd1c] sm:$0xf]
    %v1791 = vld [vmem:[#allocation10 + $0xd20] sm:$0xff]
    %v1792 = vld [vmem:[#allocation10 + $0xd28] sm:$0xff]
    %v1793 = vld [vmem:[#allocation10 + $0xd30] sm:$0xff]
    %v1794 = vld [vmem:[#allocation10 + $0xd38] sm:$0xf]
    %v1795 = vld [vmem:[#allocation10 + $0xd3c] sm:$0xff]
    %v1796 = vld [vmem:[#allocation10 + $0xd44] sm:$0xff]
    %v1797 = vld [vmem:[#allocation10 + $0xd4c] sm:$0xff]
    %v1798 = vld [vmem:[#allocation10 + $0xd54] sm:$0xf]
    %v1799 = vld [vmem:[#allocation10 + $0xd58] sm:$0xff]
    %v1800 = vld [vmem:[#allocation10 + $0xd60] sm:$0xff]
    %v1801 = vld [vmem:[#allocation10 + $0xd68] sm:$0xff]
    %v1802 = vld [vmem:[#allocation10 + $0xd70] sm:$0xf]
    %v1803 = vld [vmem:[#allocation10 + $0xd74] sm:$0xff]
    %v1804 = vld [vmem:[#allocation10 + $0xd7c] sm:$0xff]
    %v1805 = vld [vmem:[#allocation10 + $0xd84] sm:$0xff]
    %v1806 = vld [vmem:[#allocation10 + $0xd8c] sm:$0xf]
    %v1807 = vld [vmem:[#allocation10 + $0xd90] sm:$0xff]
    %v1808 = vld [vmem:[#allocation10 + $0xd98] sm:$0xff]
    %v1809 = vld [vmem:[#allocation10 + $0xda0] sm:$0xff]
    %v1810 = vld [vmem:[#allocation10 + $0xda8] sm:$0xf]
    %v1811 = vld [vmem:[#allocation10 + $0xdac] sm:$0xff]
    %v1812 = vld [vmem:[#allocation10 + $0xdb4] sm:$0xff]
    %v1813 = vld [vmem:[#allocation10 + $0xdbc] sm:$0xff]
    %v1814 = vld [vmem:[#allocation10 + $0xdc4] sm:$0xf]
    %v1815 = vld [vmem:[#allocation10 + $0xdc8] sm:$0xff]
    %v1816 = vld [vmem:[#allocation10 + $0xdd0] sm:$0xff]
    %v1817 = vld [vmem:[#allocation10 + $0xdd8] sm:$0xff]
    %v1818 = vld [vmem:[#allocation10 + $0xde0] sm:$0xf]
    %v1819 = vld [vmem:[#allocation10 + $0xde4] sm:$0xff]
    %v1820 = vld [vmem:[#allocation10 + $0xdec] sm:$0xff]
    %v1821 = vld [vmem:[#allocation10 + $0xdf4] sm:$0xff]
    %v1822 = vld [vmem:[#allocation10 + $0xdfc] sm:$0xf]
    %v1823 = vld [vmem:[#allocation11] sm:$0xff]
    %v1825 = vlaneseq
    %v1826 = vshrl.u32 %v1825, 7
    %v1827 = vsub.s32 0, %v1826
    %v1828 = vrot.slane %v1823, %v1827
    %v1829 = vlaneseq
    %v1830 = vshrl.u32 %v1829, 7
    %v1831 = vsub.s32 1, %v1830
    %v1832 = vrot.slane %v1823, %v1831
    %v1833 = vlaneseq
    %v1834 = vshrl.u32 %v1833, 7
    %v1835 = vsub.s32 2, %v1834
    %v1836 = vrot.slane %v1823, %v1835
    %v1837 = vlaneseq
    %v1838 = vshrl.u32 %v1837, 7
    %v1839 = vsub.s32 3, %v1838
    %v1840 = vrot.slane %v1823, %v1839
    %v1841 = vlaneseq
    %v1842 = vshrl.u32 %v1841, 7
    %v1843 = vsub.s32 4, %v1842
    %v1844 = vrot.slane %v1823, %v1843
    %v1845 = vlaneseq
    %v1846 = vshrl.u32 %v1845, 7
    %v1847 = vsub.s32 5, %v1846
    %v1848 = vrot.slane %v1823, %v1847
    %v1849 = vlaneseq
    %v1850 = vshrl.u32 %v1849, 7
    %v1851 = vsub.s32 6, %v1850
    %v1852 = vrot.slane %v1823, %v1851
    %v2372 = vunpack.c.l.b16 %v1311
    %v2373 = vunpack.c.h.b16 %v1311
    %v2374 = vunpack.c.l.b16 %v1312
    %v2375 = vunpack.c.h.b16 %v1312
    %v2376 = vunpack.c.l.b16 %v1313
    %v2377 = vunpack.c.h.b16 %v1313
    %v2378 = vunpack.c.l.b16 %v1314
    %v2379 = vunpack.c.l.b16 %v1315
    %v2380 = vunpack.c.h.b16 %v1315
    %v2381 = vunpack.c.l.b16 %v1316
    %v2382 = vunpack.c.h.b16 %v1316
    %v2383 = vunpack.c.l.b16 %v1317
    %v2384 = vunpack.c.h.b16 %v1317
    %v2385 = vunpack.c.l.b16 %v1318
    %v2386 = vunpack.c.l.b16 %v1319
    %v2387 = vunpack.c.h.b16 %v1319
    %v2388 = vunpack.c.l.b16 %v1320
    %v2389 = vunpack.c.h.b16 %v1320
    %v2390 = vunpack.c.l.b16 %v1321
    %v2391 = vunpack.c.h.b16 %v1321
    %v2392 = vunpack.c.l.b16 %v1322
    %v2393 = vunpack.c.l.b16 %v1323
    %v2394 = vunpack.c.h.b16 %v1323
    %v2395 = vunpack.c.l.b16 %v1324
    %v2396 = vunpack.c.h.b16 %v1324
    %v2397 = vunpack.c.l.b16 %v1325
    %v2398 = vunpack.c.h.b16 %v1325
    %v2399 = vunpack.c.l.b16 %v1326
    %v2400 = vunpack.c.l.b16 %v1327
    %v2401 = vunpack.c.h.b16 %v1327
    %v2402 = vunpack.c.l.b16 %v1328
    %v2403 = vunpack.c.h.b16 %v1328
    %v2404 = vunpack.c.l.b16 %v1329
    %v2405 = vunpack.c.h.b16 %v1329
    %v2406 = vunpack.c.l.b16 %v1330
    %v2407 = vunpack.c.l.b16 %v1331
    %v2408 = vunpack.c.h.b16 %v1331
    %v2409 = vunpack.c.l.b16 %v1332
    %v2410 = vunpack.c.h.b16 %v1332
    %v2411 = vunpack.c.l.b16 %v1333
    %v2412 = vunpack.c.h.b16 %v1333
    %v2413 = vunpack.c.l.b16 %v1334
    %v2414 = vunpack.c.l.b16 %v1335
    %v2415 = vunpack.c.h.b16 %v1335
    %v2416 = vunpack.c.l.b16 %v1336
    %v2417 = vunpack.c.h.b16 %v1336
    %v2418 = vunpack.c.l.b16 %v1337
    %v2419 = vunpack.c.h.b16 %v1337
    %v2420 = vunpack.c.l.b16 %v1338
    %v2421 = vunpack.c.l.b16 %v1339
    %v2422 = vunpack.c.h.b16 %v1339
    %v2423 = vunpack.c.l.b16 %v1340
    %v2424 = vunpack.c.h.b16 %v1340
    %v2425 = vunpack.c.l.b16 %v1341
    %v2426 = vunpack.c.h.b16 %v1341
    %v2427 = vunpack.c.l.b16 %v1342
    %v2428 = vunpack.c.l.b16 %v1343
    %v2429 = vunpack.c.h.b16 %v1343
    %v2430 = vunpack.c.l.b16 %v1344
    %v2431 = vunpack.c.h.b16 %v1344
    %v2432 = vunpack.c.l.b16 %v1345
    %v2433 = vunpack.c.h.b16 %v1345
    %v2434 = vunpack.c.l.b16 %v1346
    %v2435 = vunpack.c.l.b16 %v1347
    %v2436 = vunpack.c.h.b16 %v1347
    %v2437 = vunpack.c.l.b16 %v1348
    %v2438 = vunpack.c.h.b16 %v1348
    %v2439 = vunpack.c.l.b16 %v1349
    %v2440 = vunpack.c.h.b16 %v1349
    %v2441 = vunpack.c.l.b16 %v1350
    %v2442 = vunpack.c.l.b16 %v1351
    %v2443 = vunpack.c.h.b16 %v1351
    %v2444 = vunpack.c.l.b16 %v1352
    %v2445 = vunpack.c.h.b16 %v1352
    %v2446 = vunpack.c.l.b16 %v1353
    %v2447 = vunpack.c.h.b16 %v1353
    %v2448 = vunpack.c.l.b16 %v1354
    %v2449 = vunpack.c.l.b16 %v1355
    %v2450 = vunpack.c.h.b16 %v1355
    %v2451 = vunpack.c.l.b16 %v1356
    %v2452 = vunpack.c.h.b16 %v1356
    %v2453 = vunpack.c.l.b16 %v1357
    %v2454 = vunpack.c.h.b16 %v1357
    %v2455 = vunpack.c.l.b16 %v1358
    %v2456 = vunpack.c.l.b16 %v1359
    %v2457 = vunpack.c.h.b16 %v1359
    %v2458 = vunpack.c.l.b16 %v1360
    %v2459 = vunpack.c.h.b16 %v1360
    %v2460 = vunpack.c.l.b16 %v1361
    %v2461 = vunpack.c.h.b16 %v1361
    %v2462 = vunpack.c.l.b16 %v1362
    %v2463 = vunpack.c.l.b16 %v1363
    %v2464 = vunpack.c.h.b16 %v1363
    %v2465 = vunpack.c.l.b16 %v1364
    %v2466 = vunpack.c.h.b16 %v1364
    %v2467 = vunpack.c.l.b16 %v1365
    %v2468 = vunpack.c.h.b16 %v1365
    %v2469 = vunpack.c.l.b16 %v1366
    %v2470 = vunpack.c.l.b16 %v1367
    %v2471 = vunpack.c.h.b16 %v1367
    %v2472 = vunpack.c.l.b16 %v1368
    %v2473 = vunpack.c.h.b16 %v1368
    %v2474 = vunpack.c.l.b16 %v1369
    %v2475 = vunpack.c.h.b16 %v1369
    %v2476 = vunpack.c.l.b16 %v1370
    %v2477 = vunpack.c.l.b16 %v1371
    %v2478 = vunpack.c.h.b16 %v1371
    %v2479 = vunpack.c.l.b16 %v1372
    %v2480 = vunpack.c.h.b16 %v1372
    %v2481 = vunpack.c.l.b16 %v1373
    %v2482 = vunpack.c.h.b16 %v1373
    %v2483 = vunpack.c.l.b16 %v1374
    %v2484 = vunpack.c.l.b16 %v1375
    %v2485 = vunpack.c.h.b16 %v1375
    %v2486 = vunpack.c.l.b16 %v1376
    %v2487 = vunpack.c.h.b16 %v1376
    %v2488 = vunpack.c.l.b16 %v1377
    %v2489 = vunpack.c.h.b16 %v1377
    %v2490 = vunpack.c.l.b16 %v1378
    %v2491 = vunpack.c.l.b16 %v1379
    %v2492 = vunpack.c.h.b16 %v1379
    %v2493 = vunpack.c.l.b16 %v1380
    %v2494 = vunpack.c.h.b16 %v1380
    %v2495 = vunpack.c.l.b16 %v1381
    %v2496 = vunpack.c.h.b16 %v1381
    %v2497 = vunpack.c.l.b16 %v1382
    %v2498 = vunpack.c.l.b16 %v1383
    %v2499 = vunpack.c.h.b16 %v1383
    %v2500 = vunpack.c.l.b16 %v1384
    %v2501 = vunpack.c.h.b16 %v1384
    %v2502 = vunpack.c.l.b16 %v1385
    %v2503 = vunpack.c.h.b16 %v1385
    %v2504 = vunpack.c.l.b16 %v1386
    %v2505 = vunpack.c.l.b16 %v1387
    %v2506 = vunpack.c.h.b16 %v1387
    %v2507 = vunpack.c.l.b16 %v1388
    %v2508 = vunpack.c.h.b16 %v1388
    %v2509 = vunpack.c.l.b16 %v1389
    %v2510 = vunpack.c.h.b16 %v1389
    %v2511 = vunpack.c.l.b16 %v1390
    %v2512 = vunpack.c.l.b16 %v1391
    %v2513 = vunpack.c.h.b16 %v1391
    %v2514 = vunpack.c.l.b16 %v1392
    %v2515 = vunpack.c.h.b16 %v1392
    %v2516 = vunpack.c.l.b16 %v1393
    %v2517 = vunpack.c.h.b16 %v1393
    %v2518 = vunpack.c.l.b16 %v1394
    %v2519 = vunpack.c.l.b16 %v1395
    %v2520 = vunpack.c.h.b16 %v1395
    %v2521 = vunpack.c.l.b16 %v1396
    %v2522 = vunpack.c.h.b16 %v1396
    %v2523 = vunpack.c.l.b16 %v1397
    %v2524 = vunpack.c.h.b16 %v1397
    %v2525 = vunpack.c.l.b16 %v1398
    %v2526 = vunpack.c.l.b16 %v1399
    %v2527 = vunpack.c.h.b16 %v1399
    %v2528 = vunpack.c.l.b16 %v1400
    %v2529 = vunpack.c.h.b16 %v1400
    %v2530 = vunpack.c.l.b16 %v1401
    %v2531 = vunpack.c.h.b16 %v1401
    %v2532 = vunpack.c.l.b16 %v1402
    %v2533 = vunpack.c.l.b16 %v1403
    %v2534 = vunpack.c.h.b16 %v1403
    %v2535 = vunpack.c.l.b16 %v1404
    %v2536 = vunpack.c.h.b16 %v1404
    %v2537 = vunpack.c.l.b16 %v1405
    %v2538 = vunpack.c.h.b16 %v1405
    %v2539 = vunpack.c.l.b16 %v1406
    %v2540 = vunpack.c.l.b16 %v1407
    %v2541 = vunpack.c.h.b16 %v1407
    %v2542 = vunpack.c.l.b16 %v1408
    %v2543 = vunpack.c.h.b16 %v1408
    %v2544 = vunpack.c.l.b16 %v1409
    %v2545 = vunpack.c.h.b16 %v1409
    %v2546 = vunpack.c.l.b16 %v1410
    %v2547 = vunpack.c.l.b16 %v1411
    %v2548 = vunpack.c.h.b16 %v1411
    %v2549 = vunpack.c.l.b16 %v1412
    %v2550 = vunpack.c.h.b16 %v1412
    %v2551 = vunpack.c.l.b16 %v1413
    %v2552 = vunpack.c.h.b16 %v1413
    %v2553 = vunpack.c.l.b16 %v1414
    %v2554 = vunpack.c.l.b16 %v1415
    %v2555 = vunpack.c.h.b16 %v1415
    %v2556 = vunpack.c.l.b16 %v1416
    %v2557 = vunpack.c.h.b16 %v1416
    %v2558 = vunpack.c.l.b16 %v1417
    %v2559 = vunpack.c.h.b16 %v1417
    %v2560 = vunpack.c.l.b16 %v1418
    %v2561 = vunpack.c.l.b16 %v1419
    %v2562 = vunpack.c.h.b16 %v1419
    %v2563 = vunpack.c.l.b16 %v1420
    %v2564 = vunpack.c.h.b16 %v1420
    %v2565 = vunpack.c.l.b16 %v1421
    %v2566 = vunpack.c.h.b16 %v1421
    %v2567 = vunpack.c.l.b16 %v1422
    %v2568 = vunpack.c.l.b16 %v1423
    %v2569 = vunpack.c.h.b16 %v1423
    %v2570 = vunpack.c.l.b16 %v1424
    %v2571 = vunpack.c.h.b16 %v1424
    %v2572 = vunpack.c.l.b16 %v1425
    %v2573 = vunpack.c.h.b16 %v1425
    %v2574 = vunpack.c.l.b16 %v1426
    %v2575 = vunpack.c.l.b16 %v1427
    %v2576 = vunpack.c.h.b16 %v1427
    %v2577 = vunpack.c.l.b16 %v1428
    %v2578 = vunpack.c.h.b16 %v1428
    %v2579 = vunpack.c.l.b16 %v1429
    %v2580 = vunpack.c.h.b16 %v1429
    %v2581 = vunpack.c.l.b16 %v1430
    %v2582 = vunpack.c.l.b16 %v1431
    %v2583 = vunpack.c.h.b16 %v1431
    %v2584 = vunpack.c.l.b16 %v1432
    %v2585 = vunpack.c.h.b16 %v1432
    %v2586 = vunpack.c.l.b16 %v1433
    %v2587 = vunpack.c.h.b16 %v1433
    %v2588 = vunpack.c.l.b16 %v1434
    %v2589 = vunpack.c.l.b16 %v1435
    %v2590 = vunpack.c.h.b16 %v1435
    %v2591 = vunpack.c.l.b16 %v1436
    %v2592 = vunpack.c.h.b16 %v1436
    %v2593 = vunpack.c.l.b16 %v1437
    %v2594 = vunpack.c.h.b16 %v1437
    %v2595 = vunpack.c.l.b16 %v1438
    %v2596 = vunpack.c.l.b16 %v1439
    %v2597 = vunpack.c.h.b16 %v1439
    %v2598 = vunpack.c.l.b16 %v1440
    %v2599 = vunpack.c.h.b16 %v1440
    %v2600 = vunpack.c.l.b16 %v1441
    %v2601 = vunpack.c.h.b16 %v1441
    %v2602 = vunpack.c.l.b16 %v1442
    %v2603 = vunpack.c.l.b16 %v1443
    %v2604 = vunpack.c.h.b16 %v1443
    %v2605 = vunpack.c.l.b16 %v1444
    %v2606 = vunpack.c.h.b16 %v1444
    %v2607 = vunpack.c.l.b16 %v1445
    %v2608 = vunpack.c.h.b16 %v1445
    %v2609 = vunpack.c.l.b16 %v1446
    %v2610 = vunpack.c.l.b16 %v1447
    %v2611 = vunpack.c.h.b16 %v1447
    %v2612 = vunpack.c.l.b16 %v1448
    %v2613 = vunpack.c.h.b16 %v1448
    %v2614 = vunpack.c.l.b16 %v1449
    %v2615 = vunpack.c.h.b16 %v1449
    %v2616 = vunpack.c.l.b16 %v1450
    %v2617 = vunpack.c.l.b16 %v1451
    %v2618 = vunpack.c.h.b16 %v1451
    %v2619 = vunpack.c.l.b16 %v1452
    %v2620 = vunpack.c.h.b16 %v1452
    %v2621 = vunpack.c.l.b16 %v1453
    %v2622 = vunpack.c.h.b16 %v1453
    %v2623 = vunpack.c.l.b16 %v1454
    %v2624 = vunpack.c.l.b16 %v1455
    %v2625 = vunpack.c.h.b16 %v1455
    %v2626 = vunpack.c.l.b16 %v1456
    %v2627 = vunpack.c.h.b16 %v1456
    %v2628 = vunpack.c.l.b16 %v1457
    %v2629 = vunpack.c.h.b16 %v1457
    %v2630 = vunpack.c.l.b16 %v1458
    %v2631 = vunpack.c.l.b16 %v1459
    %v2632 = vunpack.c.h.b16 %v1459
    %v2633 = vunpack.c.l.b16 %v1460
    %v2634 = vunpack.c.h.b16 %v1460
    %v2635 = vunpack.c.l.b16 %v1461
    %v2636 = vunpack.c.h.b16 %v1461
    %v2637 = vunpack.c.l.b16 %v1462
    %v2638 = vunpack.c.l.b16 %v1463
    %v2639 = vunpack.c.h.b16 %v1463
    %v2640 = vunpack.c.l.b16 %v1464
    %v2641 = vunpack.c.h.b16 %v1464
    %v2642 = vunpack.c.l.b16 %v1465
    %v2643 = vunpack.c.h.b16 %v1465
    %v2644 = vunpack.c.l.b16 %v1466
    %v2645 = vunpack.c.l.b16 %v1467
    %v2646 = vunpack.c.h.b16 %v1467
    %v2647 = vunpack.c.l.b16 %v1468
    %v2648 = vunpack.c.h.b16 %v1468
    %v2649 = vunpack.c.l.b16 %v1469
    %v2650 = vunpack.c.h.b16 %v1469
    %v2651 = vunpack.c.l.b16 %v1470
    %v2652 = vunpack.c.l.b16 %v1471
    %v2653 = vunpack.c.h.b16 %v1471
    %v2654 = vunpack.c.l.b16 %v1472
    %v2655 = vunpack.c.h.b16 %v1472
    %v2656 = vunpack.c.l.b16 %v1473
    %v2657 = vunpack.c.h.b16 %v1473
    %v2658 = vunpack.c.l.b16 %v1474
    %v2659 = vunpack.c.l.b16 %v1475
    %v2660 = vunpack.c.h.b16 %v1475
    %v2661 = vunpack.c.l.b16 %v1476
    %v2662 = vunpack.c.h.b16 %v1476
    %v2663 = vunpack.c.l.b16 %v1477
    %v2664 = vunpack.c.h.b16 %v1477
    %v2665 = vunpack.c.l.b16 %v1478
    %v2666 = vunpack.c.l.b16 %v1479
    %v2667 = vunpack.c.h.b16 %v1479
    %v2668 = vunpack.c.l.b16 %v1480
    %v2669 = vunpack.c.h.b16 %v1480
    %v2670 = vunpack.c.l.b16 %v1481
    %v2671 = vunpack.c.h.b16 %v1481
    %v2672 = vunpack.c.l.b16 %v1482
    %v2673 = vunpack.c.l.b16 %v1483
    %v2674 = vunpack.c.h.b16 %v1483
    %v2675 = vunpack.c.l.b16 %v1484
    %v2676 = vunpack.c.h.b16 %v1484
    %v2677 = vunpack.c.l.b16 %v1485
    %v2678 = vunpack.c.h.b16 %v1485
    %v2679 = vunpack.c.l.b16 %v1486
    %v2680 = vunpack.c.l.b16 %v1487
    %v2681 = vunpack.c.h.b16 %v1487
    %v2682 = vunpack.c.l.b16 %v1488
    %v2683 = vunpack.c.h.b16 %v1488
    %v2684 = vunpack.c.l.b16 %v1489
    %v2685 = vunpack.c.h.b16 %v1489
    %v2686 = vunpack.c.l.b16 %v1490
    %v2687 = vunpack.c.l.b16 %v1491
    %v2688 = vunpack.c.h.b16 %v1491
    %v2689 = vunpack.c.l.b16 %v1492
    %v2690 = vunpack.c.h.b16 %v1492
    %v2691 = vunpack.c.l.b16 %v1493
    %v2692 = vunpack.c.h.b16 %v1493
    %v2693 = vunpack.c.l.b16 %v1494
    %v2694 = vunpack.c.l.b16 %v1495
    %v2695 = vunpack.c.h.b16 %v1495
    %v2696 = vunpack.c.l.b16 %v1496
    %v2697 = vunpack.c.h.b16 %v1496
    %v2698 = vunpack.c.l.b16 %v1497
    %v2699 = vunpack.c.h.b16 %v1497
    %v2700 = vunpack.c.l.b16 %v1498
    %v2701 = vunpack.c.l.b16 %v1499
    %v2702 = vunpack.c.h.b16 %v1499
    %v2703 = vunpack.c.l.b16 %v1500
    %v2704 = vunpack.c.h.b16 %v1500
    %v2705 = vunpack.c.l.b16 %v1501
    %v2706 = vunpack.c.h.b16 %v1501
    %v2707 = vunpack.c.l.b16 %v1502
    %v2708 = vunpack.c.l.b16 %v1503
    %v2709 = vunpack.c.h.b16 %v1503
    %v2710 = vunpack.c.l.b16 %v1504
    %v2711 = vunpack.c.h.b16 %v1504
    %v2712 = vunpack.c.l.b16 %v1505
    %v2713 = vunpack.c.h.b16 %v1505
    %v2714 = vunpack.c.l.b16 %v1506
    %v2715 = vunpack.c.l.b16 %v1507
    %v2716 = vunpack.c.h.b16 %v1507
    %v2717 = vunpack.c.l.b16 %v1508
    %v2718 = vunpack.c.h.b16 %v1508
    %v2719 = vunpack.c.l.b16 %v1509
    %v2720 = vunpack.c.h.b16 %v1509
    %v2721 = vunpack.c.l.b16 %v1510
    %v2722 = vunpack.c.l.b16 %v1511
    %v2723 = vunpack.c.h.b16 %v1511
    %v2724 = vunpack.c.l.b16 %v1512
    %v2725 = vunpack.c.h.b16 %v1512
    %v2726 = vunpack.c.l.b16 %v1513
    %v2727 = vunpack.c.h.b16 %v1513
    %v2728 = vunpack.c.l.b16 %v1514
    %v2729 = vunpack.c.l.b16 %v1515
    %v2730 = vunpack.c.h.b16 %v1515
    %v2731 = vunpack.c.l.b16 %v1516
    %v2732 = vunpack.c.h.b16 %v1516
    %v2733 = vunpack.c.l.b16 %v1517
    %v2734 = vunpack.c.h.b16 %v1517
    %v2735 = vunpack.c.l.b16 %v1518
    %v2736 = vunpack.c.l.b16 %v1519
    %v2737 = vunpack.c.h.b16 %v1519
    %v2738 = vunpack.c.l.b16 %v1520
    %v2739 = vunpack.c.h.b16 %v1520
    %v2740 = vunpack.c.l.b16 %v1521
    %v2741 = vunpack.c.h.b16 %v1521
    %v2742 = vunpack.c.l.b16 %v1522
    %v2743 = vunpack.c.l.b16 %v1523
    %v2744 = vunpack.c.h.b16 %v1523
    %v2745 = vunpack.c.l.b16 %v1524
    %v2746 = vunpack.c.h.b16 %v1524
    %v2747 = vunpack.c.l.b16 %v1525
    %v2748 = vunpack.c.h.b16 %v1525
    %v2749 = vunpack.c.l.b16 %v1526
    %v2750 = vunpack.c.l.b16 %v1527
    %v2751 = vunpack.c.h.b16 %v1527
    %v2752 = vunpack.c.l.b16 %v1528
    %v2753 = vunpack.c.h.b16 %v1528
    %v2754 = vunpack.c.l.b16 %v1529
    %v2755 = vunpack.c.h.b16 %v1529
    %v2756 = vunpack.c.l.b16 %v1530
    %v2757 = vunpack.c.l.b16 %v1531
    %v2758 = vunpack.c.h.b16 %v1531
    %v2759 = vunpack.c.l.b16 %v1532
    %v2760 = vunpack.c.h.b16 %v1532
    %v2761 = vunpack.c.l.b16 %v1533
    %v2762 = vunpack.c.h.b16 %v1533
    %v2763 = vunpack.c.l.b16 %v1534
    %v2764 = vunpack.c.l.b16 %v1535
    %v2765 = vunpack.c.h.b16 %v1535
    %v2766 = vunpack.c.l.b16 %v1536
    %v2767 = vunpack.c.h.b16 %v1536
    %v2768 = vunpack.c.l.b16 %v1537
    %v2769 = vunpack.c.h.b16 %v1537
    %v2770 = vunpack.c.l.b16 %v1538
    %v2771 = vunpack.c.l.b16 %v1539
    %v2772 = vunpack.c.h.b16 %v1539
    %v2773 = vunpack.c.l.b16 %v1540
    %v2774 = vunpack.c.h.b16 %v1540
    %v2775 = vunpack.c.l.b16 %v1541
    %v2776 = vunpack.c.h.b16 %v1541
    %v2777 = vunpack.c.l.b16 %v1542
    %v2778 = vunpack.c.l.b16 %v1543
    %v2779 = vunpack.c.h.b16 %v1543
    %v2780 = vunpack.c.l.b16 %v1544
    %v2781 = vunpack.c.h.b16 %v1544
    %v2782 = vunpack.c.l.b16 %v1545
    %v2783 = vunpack.c.h.b16 %v1545
    %v2784 = vunpack.c.l.b16 %v1546
    %v2785 = vunpack.c.l.b16 %v1547
    %v2786 = vunpack.c.h.b16 %v1547
    %v2787 = vunpack.c.l.b16 %v1548
    %v2788 = vunpack.c.h.b16 %v1548
    %v2789 = vunpack.c.l.b16 %v1549
    %v2790 = vunpack.c.h.b16 %v1549
    %v2791 = vunpack.c.l.b16 %v1550
    %v2792 = vunpack.c.l.b16 %v1551
    %v2793 = vunpack.c.h.b16 %v1551
    %v2794 = vunpack.c.l.b16 %v1552
    %v2795 = vunpack.c.h.b16 %v1552
    %v2796 = vunpack.c.l.b16 %v1553
    %v2797 = vunpack.c.h.b16 %v1553
    %v2798 = vunpack.c.l.b16 %v1554
    %v2799 = vunpack.c.l.b16 %v1555
    %v2800 = vunpack.c.h.b16 %v1555
    %v2801 = vunpack.c.l.b16 %v1556
    %v2802 = vunpack.c.h.b16 %v1556
    %v2803 = vunpack.c.l.b16 %v1557
    %v2804 = vunpack.c.h.b16 %v1557
    %v2805 = vunpack.c.l.b16 %v1558
    %v2806 = vunpack.c.l.b16 %v1559
    %v2807 = vunpack.c.h.b16 %v1559
    %v2808 = vunpack.c.l.b16 %v1560
    %v2809 = vunpack.c.h.b16 %v1560
    %v2810 = vunpack.c.l.b16 %v1561
    %v2811 = vunpack.c.h.b16 %v1561
    %v2812 = vunpack.c.l.b16 %v1562
    %v2813 = vunpack.c.l.b16 %v1563
    %v2814 = vunpack.c.h.b16 %v1563
    %v2815 = vunpack.c.l.b16 %v1564
    %v2816 = vunpack.c.h.b16 %v1564
    %v2817 = vunpack.c.l.b16 %v1565
    %v2818 = vunpack.c.h.b16 %v1565
    %v2819 = vunpack.c.l.b16 %v1566
    %v2820 = vunpack.c.l.b16 %v1567
    %v2821 = vunpack.c.h.b16 %v1567
    %v2822 = vunpack.c.l.b16 %v1568
    %v2823 = vunpack.c.h.b16 %v1568
    %v2824 = vunpack.c.l.b16 %v1569
    %v2825 = vunpack.c.h.b16 %v1569
    %v2826 = vunpack.c.l.b16 %v1570
    %v2827 = vunpack.c.l.b16 %v1571
    %v2828 = vunpack.c.h.b16 %v1571
    %v2829 = vunpack.c.l.b16 %v1572
    %v2830 = vunpack.c.h.b16 %v1572
    %v2831 = vunpack.c.l.b16 %v1573
    %v2832 = vunpack.c.h.b16 %v1573
    %v2833 = vunpack.c.l.b16 %v1574
    %v2834 = vunpack.c.l.b16 %v1575
    %v2835 = vunpack.c.h.b16 %v1575
    %v2836 = vunpack.c.l.b16 %v1576
    %v2837 = vunpack.c.h.b16 %v1576
    %v2838 = vunpack.c.l.b16 %v1577
    %v2839 = vunpack.c.h.b16 %v1577
    %v2840 = vunpack.c.l.b16 %v1578
    %v2841 = vunpack.c.l.b16 %v1579
    %v2842 = vunpack.c.h.b16 %v1579
    %v2843 = vunpack.c.l.b16 %v1580
    %v2844 = vunpack.c.h.b16 %v1580
    %v2845 = vunpack.c.l.b16 %v1581
    %v2846 = vunpack.c.h.b16 %v1581
    %v2847 = vunpack.c.l.b16 %v1582
    %v2848 = vunpack.c.l.b16 %v1583
    %v2849 = vunpack.c.h.b16 %v1583
    %v2850 = vunpack.c.l.b16 %v1584
    %v2851 = vunpack.c.h.b16 %v1584
    %v2852 = vunpack.c.l.b16 %v1585
    %v2853 = vunpack.c.h.b16 %v1585
    %v2854 = vunpack.c.l.b16 %v1586
    %v2855 = vunpack.c.l.b16 %v1587
    %v2856 = vunpack.c.h.b16 %v1587
    %v2857 = vunpack.c.l.b16 %v1588
    %v2858 = vunpack.c.h.b16 %v1588
    %v2859 = vunpack.c.l.b16 %v1589
    %v2860 = vunpack.c.h.b16 %v1589
    %v2861 = vunpack.c.l.b16 %v1590
    %v2862 = vunpack.c.l.b16 %v1591
    %v2863 = vunpack.c.h.b16 %v1591
    %v2864 = vunpack.c.l.b16 %v1592
    %v2865 = vunpack.c.h.b16 %v1592
    %v2866 = vunpack.c.l.b16 %v1593
    %v2867 = vunpack.c.h.b16 %v1593
    %v2868 = vunpack.c.l.b16 %v1594
    %v2869 = vunpack.c.l.b16 %v1595
    %v2870 = vunpack.c.h.b16 %v1595
    %v2871 = vunpack.c.l.b16 %v1596
    %v2872 = vunpack.c.h.b16 %v1596
    %v2873 = vunpack.c.l.b16 %v1597
    %v2874 = vunpack.c.h.b16 %v1597
    %v2875 = vunpack.c.l.b16 %v1598
    %v2876 = vunpack.c.l.b16 %v1599
    %v2877 = vunpack.c.h.b16 %v1599
    %v2878 = vunpack.c.l.b16 %v1600
    %v2879 = vunpack.c.h.b16 %v1600
    %v2880 = vunpack.c.l.b16 %v1601
    %v2881 = vunpack.c.h.b16 %v1601
    %v2882 = vunpack.c.l.b16 %v1602
    %v2883 = vunpack.c.l.b16 %v1603
    %v2884 = vunpack.c.h.b16 %v1603
    %v2885 = vunpack.c.l.b16 %v1604
    %v2886 = vunpack.c.h.b16 %v1604
    %v2887 = vunpack.c.l.b16 %v1605
    %v2888 = vunpack.c.h.b16 %v1605
    %v2889 = vunpack.c.l.b16 %v1606
    %v2890 = vunpack.c.l.b16 %v1607
    %v2891 = vunpack.c.h.b16 %v1607
    %v2892 = vunpack.c.l.b16 %v1608
    %v2893 = vunpack.c.h.b16 %v1608
    %v2894 = vunpack.c.l.b16 %v1609
    %v2895 = vunpack.c.h.b16 %v1609
    %v2896 = vunpack.c.l.b16 %v1610
    %v2897 = vunpack.c.l.b16 %v1611
    %v2898 = vunpack.c.h.b16 %v1611
    %v2899 = vunpack.c.l.b16 %v1612
    %v2900 = vunpack.c.h.b16 %v1612
    %v2901 = vunpack.c.l.b16 %v1613
    %v2902 = vunpack.c.h.b16 %v1613
    %v2903 = vunpack.c.l.b16 %v1614
    %v2904 = vunpack.c.l.b16 %v1615
    %v2905 = vunpack.c.h.b16 %v1615
    %v2906 = vunpack.c.l.b16 %v1616
    %v2907 = vunpack.c.h.b16 %v1616
    %v2908 = vunpack.c.l.b16 %v1617
    %v2909 = vunpack.c.h.b16 %v1617
    %v2910 = vunpack.c.l.b16 %v1618
    %v2911 = vunpack.c.l.b16 %v1619
    %v2912 = vunpack.c.h.b16 %v1619
    %v2913 = vunpack.c.l.b16 %v1620
    %v2914 = vunpack.c.h.b16 %v1620
    %v2915 = vunpack.c.l.b16 %v1621
    %v2916 = vunpack.c.h.b16 %v1621
    %v2917 = vunpack.c.l.b16 %v1622
    %v2918 = vunpack.c.l.b16 %v1623
    %v2919 = vunpack.c.h.b16 %v1623
    %v2920 = vunpack.c.l.b16 %v1624
    %v2921 = vunpack.c.h.b16 %v1624
    %v2922 = vunpack.c.l.b16 %v1625
    %v2923 = vunpack.c.h.b16 %v1625
    %v2924 = vunpack.c.l.b16 %v1626
    %v2925 = vunpack.c.l.b16 %v1627
    %v2926 = vunpack.c.h.b16 %v1627
    %v2927 = vunpack.c.l.b16 %v1628
    %v2928 = vunpack.c.h.b16 %v1628
    %v2929 = vunpack.c.l.b16 %v1629
    %v2930 = vunpack.c.h.b16 %v1629
    %v2931 = vunpack.c.l.b16 %v1630
    %v2932 = vunpack.c.l.b16 %v1631
    %v2933 = vunpack.c.h.b16 %v1631
    %v2934 = vunpack.c.l.b16 %v1632
    %v2935 = vunpack.c.h.b16 %v1632
    %v2936 = vunpack.c.l.b16 %v1633
    %v2937 = vunpack.c.h.b16 %v1633
    %v2938 = vunpack.c.l.b16 %v1634
    %v2939 = vunpack.c.l.b16 %v1635
    %v2940 = vunpack.c.h.b16 %v1635
    %v2941 = vunpack.c.l.b16 %v1636
    %v2942 = vunpack.c.h.b16 %v1636
    %v2943 = vunpack.c.l.b16 %v1637
    %v2944 = vunpack.c.h.b16 %v1637
    %v2945 = vunpack.c.l.b16 %v1638
    %v2946 = vunpack.c.l.b16 %v1639
    %v2947 = vunpack.c.h.b16 %v1639
    %v2948 = vunpack.c.l.b16 %v1640
    %v2949 = vunpack.c.h.b16 %v1640
    %v2950 = vunpack.c.l.b16 %v1641
    %v2951 = vunpack.c.h.b16 %v1641
    %v2952 = vunpack.c.l.b16 %v1642
    %v2953 = vunpack.c.l.b16 %v1643
    %v2954 = vunpack.c.h.b16 %v1643
    %v2955 = vunpack.c.l.b16 %v1644
    %v2956 = vunpack.c.h.b16 %v1644
    %v2957 = vunpack.c.l.b16 %v1645
    %v2958 = vunpack.c.h.b16 %v1645
    %v2959 = vunpack.c.l.b16 %v1646
    %v2960 = vunpack.c.l.b16 %v1647
    %v2961 = vunpack.c.h.b16 %v1647
    %v2962 = vunpack.c.l.b16 %v1648
    %v2963 = vunpack.c.h.b16 %v1648
    %v2964 = vunpack.c.l.b16 %v1649
    %v2965 = vunpack.c.h.b16 %v1649
    %v2966 = vunpack.c.l.b16 %v1650
    %v2967 = vunpack.c.l.b16 %v1651
    %v2968 = vunpack.c.h.b16 %v1651
    %v2969 = vunpack.c.l.b16 %v1652
    %v2970 = vunpack.c.h.b16 %v1652
    %v2971 = vunpack.c.l.b16 %v1653
    %v2972 = vunpack.c.h.b16 %v1653
    %v2973 = vunpack.c.l.b16 %v1654
    %v2974 = vunpack.c.l.b16 %v1655
    %v2975 = vunpack.c.h.b16 %v1655
    %v2976 = vunpack.c.l.b16 %v1656
    %v2977 = vunpack.c.h.b16 %v1656
    %v2978 = vunpack.c.l.b16 %v1657
    %v2979 = vunpack.c.h.b16 %v1657
    %v2980 = vunpack.c.l.b16 %v1658
    %v2981 = vunpack.c.l.b16 %v1659
    %v2982 = vunpack.c.h.b16 %v1659
    %v2983 = vunpack.c.l.b16 %v1660
    %v2984 = vunpack.c.h.b16 %v1660
    %v2985 = vunpack.c.l.b16 %v1661
    %v2986 = vunpack.c.h.b16 %v1661
    %v2987 = vunpack.c.l.b16 %v1662
    %v2988 = vunpack.c.l.b16 %v1663
    %v2989 = vunpack.c.h.b16 %v1663
    %v2990 = vunpack.c.l.b16 %v1664
    %v2991 = vunpack.c.h.b16 %v1664
    %v2992 = vunpack.c.l.b16 %v1665
    %v2993 = vunpack.c.h.b16 %v1665
    %v2994 = vunpack.c.l.b16 %v1666
    %v2995 = vunpack.c.l.b16 %v1667
    %v2996 = vunpack.c.h.b16 %v1667
    %v2997 = vunpack.c.l.b16 %v1668
    %v2998 = vunpack.c.h.b16 %v1668
    %v2999 = vunpack.c.l.b16 %v1669
    %v3000 = vunpack.c.h.b16 %v1669
    %v3001 = vunpack.c.l.b16 %v1670
    %v3002 = vunpack.c.l.b16 %v1671
    %v3003 = vunpack.c.h.b16 %v1671
    %v3004 = vunpack.c.l.b16 %v1672
    %v3005 = vunpack.c.h.b16 %v1672
    %v3006 = vunpack.c.l.b16 %v1673
    %v3007 = vunpack.c.h.b16 %v1673
    %v3008 = vunpack.c.l.b16 %v1674
    %v3009 = vunpack.c.l.b16 %v1675
    %v3010 = vunpack.c.h.b16 %v1675
    %v3011 = vunpack.c.l.b16 %v1676
    %v3012 = vunpack.c.h.b16 %v1676
    %v3013 = vunpack.c.l.b16 %v1677
    %v3014 = vunpack.c.h.b16 %v1677
    %v3015 = vunpack.c.l.b16 %v1678
    %v3016 = vunpack.c.l.b16 %v1679
    %v3017 = vunpack.c.h.b16 %v1679
    %v3018 = vunpack.c.l.b16 %v1680
    %v3019 = vunpack.c.h.b16 %v1680
    %v3020 = vunpack.c.l.b16 %v1681
    %v3021 = vunpack.c.h.b16 %v1681
    %v3022 = vunpack.c.l.b16 %v1682
    %v3023 = vunpack.c.l.b16 %v1683
    %v3024 = vunpack.c.h.b16 %v1683
    %v3025 = vunpack.c.l.b16 %v1684
    %v3026 = vunpack.c.h.b16 %v1684
    %v3027 = vunpack.c.l.b16 %v1685
    %v3028 = vunpack.c.h.b16 %v1685
    %v3029 = vunpack.c.l.b16 %v1686
    %v3030 = vunpack.c.l.b16 %v1687
    %v3031 = vunpack.c.h.b16 %v1687
    %v3032 = vunpack.c.l.b16 %v1688
    %v3033 = vunpack.c.h.b16 %v1688
    %v3034 = vunpack.c.l.b16 %v1689
    %v3035 = vunpack.c.h.b16 %v1689
    %v3036 = vunpack.c.l.b16 %v1690
    %v3037 = vunpack.c.l.b16 %v1691
    %v3038 = vunpack.c.h.b16 %v1691
    %v3039 = vunpack.c.l.b16 %v1692
    %v3040 = vunpack.c.h.b16 %v1692
    %v3041 = vunpack.c.l.b16 %v1693
    %v3042 = vunpack.c.h.b16 %v1693
    %v3043 = vunpack.c.l.b16 %v1694
    %v3044 = vunpack.c.l.b16 %v1695
    %v3045 = vunpack.c.h.b16 %v1695
    %v3046 = vunpack.c.l.b16 %v1696
    %v3047 = vunpack.c.h.b16 %v1696
    %v3048 = vunpack.c.l.b16 %v1697
    %v3049 = vunpack.c.h.b16 %v1697
    %v3050 = vunpack.c.l.b16 %v1698
    %v3051 = vunpack.c.l.b16 %v1699
    %v3052 = vunpack.c.h.b16 %v1699
    %v3053 = vunpack.c.l.b16 %v1700
    %v3054 = vunpack.c.h.b16 %v1700
    %v3055 = vunpack.c.l.b16 %v1701
    %v3056 = vunpack.c.h.b16 %v1701
    %v3057 = vunpack.c.l.b16 %v1702
    %v3058 = vunpack.c.l.b16 %v1703
    %v3059 = vunpack.c.h.b16 %v1703
    %v3060 = vunpack.c.l.b16 %v1704
    %v3061 = vunpack.c.h.b16 %v1704
    %v3062 = vunpack.c.l.b16 %v1705
    %v3063 = vunpack.c.h.b16 %v1705
    %v3064 = vunpack.c.l.b16 %v1706
    %v3065 = vunpack.c.l.b16 %v1707
    %v3066 = vunpack.c.h.b16 %v1707
    %v3067 = vunpack.c.l.b16 %v1708
    %v3068 = vunpack.c.h.b16 %v1708
    %v3069 = vunpack.c.l.b16 %v1709
    %v3070 = vunpack.c.h.b16 %v1709
    %v3071 = vunpack.c.l.b16 %v1710
    %v3072 = vunpack.c.l.b16 %v1711
    %v3073 = vunpack.c.h.b16 %v1711
    %v3074 = vunpack.c.l.b16 %v1712
    %v3075 = vunpack.c.h.b16 %v1712
    %v3076 = vunpack.c.l.b16 %v1713
    %v3077 = vunpack.c.h.b16 %v1713
    %v3078 = vunpack.c.l.b16 %v1714
    %v3079 = vunpack.c.l.b16 %v1715
    %v3080 = vunpack.c.h.b16 %v1715
    %v3081 = vunpack.c.l.b16 %v1716
    %v3082 = vunpack.c.h.b16 %v1716
    %v3083 = vunpack.c.l.b16 %v1717
    %v3084 = vunpack.c.h.b16 %v1717
    %v3085 = vunpack.c.l.b16 %v1718
    %v3086 = vunpack.c.l.b16 %v1719
    %v3087 = vunpack.c.h.b16 %v1719
    %v3088 = vunpack.c.l.b16 %v1720
    %v3089 = vunpack.c.h.b16 %v1720
    %v3090 = vunpack.c.l.b16 %v1721
    %v3091 = vunpack.c.h.b16 %v1721
    %v3092 = vunpack.c.l.b16 %v1722
    %v3093 = vunpack.c.l.b16 %v1723
    %v3094 = vunpack.c.h.b16 %v1723
    %v3095 = vunpack.c.l.b16 %v1724
    %v3096 = vunpack.c.h.b16 %v1724
    %v3097 = vunpack.c.l.b16 %v1725
    %v3098 = vunpack.c.h.b16 %v1725
    %v3099 = vunpack.c.l.b16 %v1726
    %v3100 = vunpack.c.l.b16 %v1727
    %v3101 = vunpack.c.h.b16 %v1727
    %v3102 = vunpack.c.l.b16 %v1728
    %v3103 = vunpack.c.h.b16 %v1728
    %v3104 = vunpack.c.l.b16 %v1729
    %v3105 = vunpack.c.h.b16 %v1729
    %v3106 = vunpack.c.l.b16 %v1730
    %v3107 = vunpack.c.l.b16 %v1731
    %v3108 = vunpack.c.h.b16 %v1731
    %v3109 = vunpack.c.l.b16 %v1732
    %v3110 = vunpack.c.h.b16 %v1732
    %v3111 = vunpack.c.l.b16 %v1733
    %v3112 = vunpack.c.h.b16 %v1733
    %v3113 = vunpack.c.l.b16 %v1734
    %v3114 = vunpack.c.l.b16 %v1735
    %v3115 = vunpack.c.h.b16 %v1735
    %v3116 = vunpack.c.l.b16 %v1736
    %v3117 = vunpack.c.h.b16 %v1736
    %v3118 = vunpack.c.l.b16 %v1737
    %v3119 = vunpack.c.h.b16 %v1737
    %v3120 = vunpack.c.l.b16 %v1738
    %v3121 = vunpack.c.l.b16 %v1739
    %v3122 = vunpack.c.h.b16 %v1739
    %v3123 = vunpack.c.l.b16 %v1740
    %v3124 = vunpack.c.h.b16 %v1740
    %v3125 = vunpack.c.l.b16 %v1741
    %v3126 = vunpack.c.h.b16 %v1741
    %v3127 = vunpack.c.l.b16 %v1742
    %v3128 = vunpack.c.l.b16 %v1743
    %v3129 = vunpack.c.h.b16 %v1743
    %v3130 = vunpack.c.l.b16 %v1744
    %v3131 = vunpack.c.h.b16 %v1744
    %v3132 = vunpack.c.l.b16 %v1745
    %v3133 = vunpack.c.h.b16 %v1745
    %v3134 = vunpack.c.l.b16 %v1746
    %v3135 = vunpack.c.l.b16 %v1747
    %v3136 = vunpack.c.h.b16 %v1747
    %v3137 = vunpack.c.l.b16 %v1748
    %v3138 = vunpack.c.h.b16 %v1748
    %v3139 = vunpack.c.l.b16 %v1749
    %v3140 = vunpack.c.h.b16 %v1749
    %v3141 = vunpack.c.l.b16 %v1750
    %v3142 = vunpack.c.l.b16 %v1751
    %v3143 = vunpack.c.h.b16 %v1751
    %v3144 = vunpack.c.l.b16 %v1752
    %v3145 = vunpack.c.h.b16 %v1752
    %v3146 = vunpack.c.l.b16 %v1753
    %v3147 = vunpack.c.h.b16 %v1753
    %v3148 = vunpack.c.l.b16 %v1754
    %v3149 = vunpack.c.l.b16 %v1755
    %v3150 = vunpack.c.h.b16 %v1755
    %v3151 = vunpack.c.l.b16 %v1756
    %v3152 = vunpack.c.h.b16 %v1756
    %v3153 = vunpack.c.l.b16 %v1757
    %v3154 = vunpack.c.h.b16 %v1757
    %v3155 = vunpack.c.l.b16 %v1758
    %v3156 = vunpack.c.l.b16 %v1759
    %v3157 = vunpack.c.h.b16 %v1759
    %v3158 = vunpack.c.l.b16 %v1760
    %v3159 = vunpack.c.h.b16 %v1760
    %v3160 = vunpack.c.l.b16 %v1761
    %v3161 = vunpack.c.h.b16 %v1761
    %v3162 = vunpack.c.l.b16 %v1762
    %v3163 = vunpack.c.l.b16 %v1763
    %v3164 = vunpack.c.h.b16 %v1763
    %v3165 = vunpack.c.l.b16 %v1764
    %v3166 = vunpack.c.h.b16 %v1764
    %v3167 = vunpack.c.l.b16 %v1765
    %v3168 = vunpack.c.h.b16 %v1765
    %v3169 = vunpack.c.l.b16 %v1766
    %v3170 = vunpack.c.l.b16 %v1767
    %v3171 = vunpack.c.h.b16 %v1767
    %v3172 = vunpack.c.l.b16 %v1768
    %v3173 = vunpack.c.h.b16 %v1768
    %v3174 = vunpack.c.l.b16 %v1769
    %v3175 = vunpack.c.h.b16 %v1769
    %v3176 = vunpack.c.l.b16 %v1770
    %v3177 = vunpack.c.l.b16 %v1771
    %v3178 = vunpack.c.h.b16 %v1771
    %v3179 = vunpack.c.l.b16 %v1772
    %v3180 = vunpack.c.h.b16 %v1772
    %v3181 = vunpack.c.l.b16 %v1773
    %v3182 = vunpack.c.h.b16 %v1773
    %v3183 = vunpack.c.l.b16 %v1774
    %v3184 = vunpack.c.l.b16 %v1775
    %v3185 = vunpack.c.h.b16 %v1775
    %v3186 = vunpack.c.l.b16 %v1776
    %v3187 = vunpack.c.h.b16 %v1776
    %v3188 = vunpack.c.l.b16 %v1777
    %v3189 = vunpack.c.h.b16 %v1777
    %v3190 = vunpack.c.l.b16 %v1778
    %v3191 = vunpack.c.l.b16 %v1779
    %v3192 = vunpack.c.h.b16 %v1779
    %v3193 = vunpack.c.l.b16 %v1780
    %v3194 = vunpack.c.h.b16 %v1780
    %v3195 = vunpack.c.l.b16 %v1781
    %v3196 = vunpack.c.h.b16 %v1781
    %v3197 = vunpack.c.l.b16 %v1782
    %v3198 = vunpack.c.l.b16 %v1783
    %v3199 = vunpack.c.h.b16 %v1783
    %v3200 = vunpack.c.l.b16 %v1784
    %v3201 = vunpack.c.h.b16 %v1784
    %v3202 = vunpack.c.l.b16 %v1785
    %v3203 = vunpack.c.h.b16 %v1785
    %v3204 = vunpack.c.l.b16 %v1786
    %v3205 = vunpack.c.l.b16 %v1787
    %v3206 = vunpack.c.h.b16 %v1787
    %v3207 = vunpack.c.l.b16 %v1788
    %v3208 = vunpack.c.h.b16 %v1788
    %v3209 = vunpack.c.l.b16 %v1789
    %v3210 = vunpack.c.h.b16 %v1789
    %v3211 = vunpack.c.l.b16 %v1790
    %v3212 = vunpack.c.l.b16 %v1791
    %v3213 = vunpack.c.h.b16 %v1791
    %v3214 = vunpack.c.l.b16 %v1792
    %v3215 = vunpack.c.h.b16 %v1792
    %v3216 = vunpack.c.l.b16 %v1793
    %v3217 = vunpack.c.h.b16 %v1793
    %v3218 = vunpack.c.l.b16 %v1794
    %v3219 = vunpack.c.l.b16 %v1795
    %v3220 = vunpack.c.h.b16 %v1795
    %v3221 = vunpack.c.l.b16 %v1796
    %v3222 = vunpack.c.h.b16 %v1796
    %v3223 = vunpack.c.l.b16 %v1797
    %v3224 = vunpack.c.h.b16 %v1797
    %v3225 = vunpack.c.l.b16 %v1798
    %v3226 = vunpack.c.l.b16 %v1799
    %v3227 = vunpack.c.h.b16 %v1799
    %v3228 = vunpack.c.l.b16 %v1800
    %v3229 = vunpack.c.h.b16 %v1800
    %v3230 = vunpack.c.l.b16 %v1801
    %v3231 = vunpack.c.h.b16 %v1801
    %v3232 = vunpack.c.l.b16 %v1802
    %v3233 = vunpack.c.l.b16 %v1803
    %v3234 = vunpack.c.h.b16 %v1803
    %v3235 = vunpack.c.l.b16 %v1804
    %v3236 = vunpack.c.h.b16 %v1804
    %v3237 = vunpack.c.l.b16 %v1805
    %v3238 = vunpack.c.h.b16 %v1805
    %v3239 = vunpack.c.l.b16 %v1806
    %v3240 = vunpack.c.l.b16 %v1807
    %v3241 = vunpack.c.h.b16 %v1807
    %v3242 = vunpack.c.l.b16 %v1808
    %v3243 = vunpack.c.h.b16 %v1808
    %v3244 = vunpack.c.l.b16 %v1809
    %v3245 = vunpack.c.h.b16 %v1809
    %v3246 = vunpack.c.l.b16 %v1810
    %v3247 = vunpack.c.l.b16 %v1811
    %v3248 = vunpack.c.h.b16 %v1811
    %v3249 = vunpack.c.l.b16 %v1812
    %v3250 = vunpack.c.h.b16 %v1812
    %v3251 = vunpack.c.l.b16 %v1813
    %v3252 = vunpack.c.h.b16 %v1813
    %v3253 = vunpack.c.l.b16 %v1814
    %v3254 = vunpack.c.l.b16 %v1815
    %v3255 = vunpack.c.h.b16 %v1815
    %v3256 = vunpack.c.l.b16 %v1816
    %v3257 = vunpack.c.h.b16 %v1816
    %v3258 = vunpack.c.l.b16 %v1817
    %v3259 = vunpack.c.h.b16 %v1817
    %v3260 = vunpack.c.l.b16 %v1818
    %v3261 = vunpack.c.l.b16 %v1819
    %v3262 = vunpack.c.h.b16 %v1819
    %v3263 = vunpack.c.l.b16 %v1820
    %v3264 = vunpack.c.h.b16 %v1820
    %v3265 = vunpack.c.l.b16 %v1821
    %v3266 = vunpack.c.h.b16 %v1821
    %v3267 = vunpack.c.l.b16 %v1822
    %v3268 = vpack.c.b16 %v2379, %v2372
    %v3269 = vpack.c.b16 %v2380, %v2373
    %v3270 = vpack.c.b16 %v2381, %v2374
    %v3271 = vpack.c.b16 %v2382, %v2375
    %v3272 = vpack.c.b16 %v2383, %v2376
    %v3273 = vpack.c.b16 %v2384, %v2377
    %v3274 = vpack.c.b16 %v2385, %v2378
    %v3275 = vpack.c.b16 %v2393, %v2386
    %v3276 = vpack.c.b16 %v2394, %v2387
    %v3277 = vpack.c.b16 %v2395, %v2388
    %v3278 = vpack.c.b16 %v2396, %v2389
    %v3279 = vpack.c.b16 %v2397, %v2390
    %v3280 = vpack.c.b16 %v2398, %v2391
    %v3281 = vpack.c.b16 %v2399, %v2392
    %v3282 = vpack.c.b16 %v2407, %v2400
    %v3283 = vpack.c.b16 %v2408, %v2401
    %v3284 = vpack.c.b16 %v2409, %v2402
    %v3285 = vpack.c.b16 %v2410, %v2403
    %v3286 = vpack.c.b16 %v2411, %v2404
    %v3287 = vpack.c.b16 %v2412, %v2405
    %v3288 = vpack.c.b16 %v2413, %v2406
    %v3289 = vpack.c.b16 %v2421, %v2414
    %v3290 = vpack.c.b16 %v2422, %v2415
    %v3291 = vpack.c.b16 %v2423, %v2416
    %v3292 = vpack.c.b16 %v2424, %v2417
    %v3293 = vpack.c.b16 %v2425, %v2418
    %v3294 = vpack.c.b16 %v2426, %v2419
    %v3295 = vpack.c.b16 %v2427, %v2420
    %v3296 = vpack.c.b16 %v2435, %v2428
    %v3297 = vpack.c.b16 %v2436, %v2429
    %v3298 = vpack.c.b16 %v2437, %v2430
    %v3299 = vpack.c.b16 %v2438, %v2431
    %v3300 = vpack.c.b16 %v2439, %v2432
    %v3301 = vpack.c.b16 %v2440, %v2433
    %v3302 = vpack.c.b16 %v2441, %v2434
    %v3303 = vpack.c.b16 %v2449, %v2442
    %v3304 = vpack.c.b16 %v2450, %v2443
    %v3305 = vpack.c.b16 %v2451, %v2444
    %v3306 = vpack.c.b16 %v2452, %v2445
    %v3307 = vpack.c.b16 %v2453, %v2446
    %v3308 = vpack.c.b16 %v2454, %v2447
    %v3309 = vpack.c.b16 %v2455, %v2448
    %v3310 = vpack.c.b16 %v2463, %v2456
    %v3311 = vpack.c.b16 %v2464, %v2457
    %v3312 = vpack.c.b16 %v2465, %v2458
    %v3313 = vpack.c.b16 %v2466, %v2459
    %v3314 = vpack.c.b16 %v2467, %v2460
    %v3315 = vpack.c.b16 %v2468, %v2461
    %v3316 = vpack.c.b16 %v2469, %v2462
    %v3317 = vpack.c.b16 %v2477, %v2470
    %v3318 = vpack.c.b16 %v2478, %v2471
    %v3319 = vpack.c.b16 %v2479, %v2472
    %v3320 = vpack.c.b16 %v2480, %v2473
    %v3321 = vpack.c.b16 %v2481, %v2474
    %v3322 = vpack.c.b16 %v2482, %v2475
    %v3323 = vpack.c.b16 %v2483, %v2476
    %v3324 = vpack.c.b16 %v2491, %v2484
    %v3325 = vpack.c.b16 %v2492, %v2485
    %v3326 = vpack.c.b16 %v2493, %v2486
    %v3327 = vpack.c.b16 %v2494, %v2487
    %v3328 = vpack.c.b16 %v2495, %v2488
    %v3329 = vpack.c.b16 %v2496, %v2489
    %v3330 = vpack.c.b16 %v2497, %v2490
    %v3331 = vpack.c.b16 %v2505, %v2498
    %v3332 = vpack.c.b16 %v2506, %v2499
    %v3333 = vpack.c.b16 %v2507, %v2500
    %v3334 = vpack.c.b16 %v2508, %v2501
    %v3335 = vpack.c.b16 %v2509, %v2502
    %v3336 = vpack.c.b16 %v2510, %v2503
    %v3337 = vpack.c.b16 %v2511, %v2504
    %v3338 = vpack.c.b16 %v2519, %v2512
    %v3339 = vpack.c.b16 %v2520, %v2513
    %v3340 = vpack.c.b16 %v2521, %v2514
    %v3341 = vpack.c.b16 %v2522, %v2515
    %v3342 = vpack.c.b16 %v2523, %v2516
    %v3343 = vpack.c.b16 %v2524, %v2517
    %v3344 = vpack.c.b16 %v2525, %v2518
    %v3345 = vpack.c.b16 %v2533, %v2526
    %v3346 = vpack.c.b16 %v2534, %v2527
    %v3347 = vpack.c.b16 %v2535, %v2528
    %v3348 = vpack.c.b16 %v2536, %v2529
    %v3349 = vpack.c.b16 %v2537, %v2530
    %v3350 = vpack.c.b16 %v2538, %v2531
    %v3351 = vpack.c.b16 %v2539, %v2532
    %v3352 = vpack.c.b16 %v2547, %v2540
    %v3353 = vpack.c.b16 %v2548, %v2541
    %v3354 = vpack.c.b16 %v2549, %v2542
    %v3355 = vpack.c.b16 %v2550, %v2543
    %v3356 = vpack.c.b16 %v2551, %v2544
    %v3357 = vpack.c.b16 %v2552, %v2545
    %v3358 = vpack.c.b16 %v2553, %v2546
    %v3359 = vpack.c.b16 %v2561, %v2554
    %v3360 = vpack.c.b16 %v2562, %v2555
    %v3361 = vpack.c.b16 %v2563, %v2556
    %v3362 = vpack.c.b16 %v2564, %v2557
    %v3363 = vpack.c.b16 %v2565, %v2558
    %v3364 = vpack.c.b16 %v2566, %v2559
    %v3365 = vpack.c.b16 %v2567, %v2560
    %v3366 = vpack.c.b16 %v2575, %v2568
    %v3367 = vpack.c.b16 %v2576, %v2569
    %v3368 = vpack.c.b16 %v2577, %v2570
    %v3369 = vpack.c.b16 %v2578, %v2571
    %v3370 = vpack.c.b16 %v2579, %v2572
    %v3371 = vpack.c.b16 %v2580, %v2573
    %v3372 = vpack.c.b16 %v2581, %v2574
    %v3373 = vpack.c.b16 %v2589, %v2582
    %v3374 = vpack.c.b16 %v2590, %v2583
    %v3375 = vpack.c.b16 %v2591, %v2584
    %v3376 = vpack.c.b16 %v2592, %v2585
    %v3377 = vpack.c.b16 %v2593, %v2586
    %v3378 = vpack.c.b16 %v2594, %v2587
    %v3379 = vpack.c.b16 %v2595, %v2588
    %v3380 = vpack.c.b16 %v2603, %v2596
    %v3381 = vpack.c.b16 %v2604, %v2597
    %v3382 = vpack.c.b16 %v2605, %v2598
    %v3383 = vpack.c.b16 %v2606, %v2599
    %v3384 = vpack.c.b16 %v2607, %v2600
    %v3385 = vpack.c.b16 %v2608, %v2601
    %v3386 = vpack.c.b16 %v2609, %v2602
    %v3387 = vpack.c.b16 %v2617, %v2610
    %v3388 = vpack.c.b16 %v2618, %v2611
    %v3389 = vpack.c.b16 %v2619, %v2612
    %v3390 = vpack.c.b16 %v2620, %v2613
    %v3391 = vpack.c.b16 %v2621, %v2614
    %v3392 = vpack.c.b16 %v2622, %v2615
    %v3393 = vpack.c.b16 %v2623, %v2616
    %v3394 = vpack.c.b16 %v2631, %v2624
    %v3395 = vpack.c.b16 %v2632, %v2625
    %v3396 = vpack.c.b16 %v2633, %v2626
    %v3397 = vpack.c.b16 %v2634, %v2627
    %v3398 = vpack.c.b16 %v2635, %v2628
    %v3399 = vpack.c.b16 %v2636, %v2629
    %v3400 = vpack.c.b16 %v2637, %v2630
    %v3401 = vpack.c.b16 %v2645, %v2638
    %v3402 = vpack.c.b16 %v2646, %v2639
    %v3403 = vpack.c.b16 %v2647, %v2640
    %v3404 = vpack.c.b16 %v2648, %v2641
    %v3405 = vpack.c.b16 %v2649, %v2642
    %v3406 = vpack.c.b16 %v2650, %v2643
    %v3407 = vpack.c.b16 %v2651, %v2644
    %v3408 = vpack.c.b16 %v2659, %v2652
    %v3409 = vpack.c.b16 %v2660, %v2653
    %v3410 = vpack.c.b16 %v2661, %v2654
    %v3411 = vpack.c.b16 %v2662, %v2655
    %v3412 = vpack.c.b16 %v2663, %v2656
    %v3413 = vpack.c.b16 %v2664, %v2657
    %v3414 = vpack.c.b16 %v2665, %v2658
    %v3415 = vpack.c.b16 %v2673, %v2666
    %v3416 = vpack.c.b16 %v2674, %v2667
    %v3417 = vpack.c.b16 %v2675, %v2668
    %v3418 = vpack.c.b16 %v2676, %v2669
    %v3419 = vpack.c.b16 %v2677, %v2670
    %v3420 = vpack.c.b16 %v2678, %v2671
    %v3421 = vpack.c.b16 %v2679, %v2672
    %v3422 = vpack.c.b16 %v2687, %v2680
    %v3423 = vpack.c.b16 %v2688, %v2681
    %v3424 = vpack.c.b16 %v2689, %v2682
    %v3425 = vpack.c.b16 %v2690, %v2683
    %v3426 = vpack.c.b16 %v2691, %v2684
    %v3427 = vpack.c.b16 %v2692, %v2685
    %v3428 = vpack.c.b16 %v2693, %v2686
    %v3429 = vpack.c.b16 %v2701, %v2694
    %v3430 = vpack.c.b16 %v2702, %v2695
    %v3431 = vpack.c.b16 %v2703, %v2696
    %v3432 = vpack.c.b16 %v2704, %v2697
    %v3433 = vpack.c.b16 %v2705, %v2698
    %v3434 = vpack.c.b16 %v2706, %v2699
    %v3435 = vpack.c.b16 %v2707, %v2700
    %v3436 = vpack.c.b16 %v2715, %v2708
    %v3437 = vpack.c.b16 %v2716, %v2709
    %v3438 = vpack.c.b16 %v2717, %v2710
    %v3439 = vpack.c.b16 %v2718, %v2711
    %v3440 = vpack.c.b16 %v2719, %v2712
    %v3441 = vpack.c.b16 %v2720, %v2713
    %v3442 = vpack.c.b16 %v2721, %v2714
    %v3443 = vpack.c.b16 %v2729, %v2722
    %v3444 = vpack.c.b16 %v2730, %v2723
    %v3445 = vpack.c.b16 %v2731, %v2724
    %v3446 = vpack.c.b16 %v2732, %v2725
    %v3447 = vpack.c.b16 %v2733, %v2726
    %v3448 = vpack.c.b16 %v2734, %v2727
    %v3449 = vpack.c.b16 %v2735, %v2728
    %v3450 = vpack.c.b16 %v2743, %v2736
    %v3451 = vpack.c.b16 %v2744, %v2737
    %v3452 = vpack.c.b16 %v2745, %v2738
    %v3453 = vpack.c.b16 %v2746, %v2739
    %v3454 = vpack.c.b16 %v2747, %v2740
    %v3455 = vpack.c.b16 %v2748, %v2741
    %v3456 = vpack.c.b16 %v2749, %v2742
    %v3457 = vpack.c.b16 %v2757, %v2750
    %v3458 = vpack.c.b16 %v2758, %v2751
    %v3459 = vpack.c.b16 %v2759, %v2752
    %v3460 = vpack.c.b16 %v2760, %v2753
    %v3461 = vpack.c.b16 %v2761, %v2754
    %v3462 = vpack.c.b16 %v2762, %v2755
    %v3463 = vpack.c.b16 %v2763, %v2756
    %v3464 = vpack.c.b16 %v2771, %v2764
    %v3465 = vpack.c.b16 %v2772, %v2765
    %v3466 = vpack.c.b16 %v2773, %v2766
    %v3467 = vpack.c.b16 %v2774, %v2767
    %v3468 = vpack.c.b16 %v2775, %v2768
    %v3469 = vpack.c.b16 %v2776, %v2769
    %v3470 = vpack.c.b16 %v2777, %v2770
    %v3471 = vpack.c.b16 %v2785, %v2778
    %v3472 = vpack.c.b16 %v2786, %v2779
    %v3473 = vpack.c.b16 %v2787, %v2780
    %v3474 = vpack.c.b16 %v2788, %v2781
    %v3475 = vpack.c.b16 %v2789, %v2782
    %v3476 = vpack.c.b16 %v2790, %v2783
    %v3477 = vpack.c.b16 %v2791, %v2784
    %v3478 = vpack.c.b16 %v2799, %v2792
    %v3479 = vpack.c.b16 %v2800, %v2793
    %v3480 = vpack.c.b16 %v2801, %v2794
    %v3481 = vpack.c.b16 %v2802, %v2795
    %v3482 = vpack.c.b16 %v2803, %v2796
    %v3483 = vpack.c.b16 %v2804, %v2797
    %v3484 = vpack.c.b16 %v2805, %v2798
    %v3485 = vpack.c.b16 %v2813, %v2806
    %v3486 = vpack.c.b16 %v2814, %v2807
    %v3487 = vpack.c.b16 %v2815, %v2808
    %v3488 = vpack.c.b16 %v2816, %v2809
    %v3489 = vpack.c.b16 %v2817, %v2810
    %v3490 = vpack.c.b16 %v2818, %v2811
    %v3491 = vpack.c.b16 %v2819, %v2812
    %v3492 = vpack.c.b16 %v2827, %v2820
    %v3493 = vpack.c.b16 %v2828, %v2821
    %v3494 = vpack.c.b16 %v2829, %v2822
    %v3495 = vpack.c.b16 %v2830, %v2823
    %v3496 = vpack.c.b16 %v2831, %v2824
    %v3497 = vpack.c.b16 %v2832, %v2825
    %v3498 = vpack.c.b16 %v2833, %v2826
    %v3499 = vpack.c.b16 %v2841, %v2834
    %v3500 = vpack.c.b16 %v2842, %v2835
    %v3501 = vpack.c.b16 %v2843, %v2836
    %v3502 = vpack.c.b16 %v2844, %v2837
    %v3503 = vpack.c.b16 %v2845, %v2838
    %v3504 = vpack.c.b16 %v2846, %v2839
    %v3505 = vpack.c.b16 %v2847, %v2840
    %v3506 = vpack.c.b16 %v2855, %v2848
    %v3507 = vpack.c.b16 %v2856, %v2849
    %v3508 = vpack.c.b16 %v2857, %v2850
    %v3509 = vpack.c.b16 %v2858, %v2851
    %v3510 = vpack.c.b16 %v2859, %v2852
    %v3511 = vpack.c.b16 %v2860, %v2853
    %v3512 = vpack.c.b16 %v2861, %v2854
    %v3513 = vpack.c.b16 %v2869, %v2862
    %v3514 = vpack.c.b16 %v2870, %v2863
    %v3515 = vpack.c.b16 %v2871, %v2864
    %v3516 = vpack.c.b16 %v2872, %v2865
    %v3517 = vpack.c.b16 %v2873, %v2866
    %v3518 = vpack.c.b16 %v2874, %v2867
    %v3519 = vpack.c.b16 %v2875, %v2868
    %v3520 = vpack.c.b16 %v2883, %v2876
    %v3521 = vpack.c.b16 %v2884, %v2877
    %v3522 = vpack.c.b16 %v2885, %v2878
    %v3523 = vpack.c.b16 %v2886, %v2879
    %v3524 = vpack.c.b16 %v2887, %v2880
    %v3525 = vpack.c.b16 %v2888, %v2881
    %v3526 = vpack.c.b16 %v2889, %v2882
    %v3527 = vpack.c.b16 %v2897, %v2890
    %v3528 = vpack.c.b16 %v2898, %v2891
    %v3529 = vpack.c.b16 %v2899, %v2892
    %v3530 = vpack.c.b16 %v2900, %v2893
    %v3531 = vpack.c.b16 %v2901, %v2894
    %v3532 = vpack.c.b16 %v2902, %v2895
    %v3533 = vpack.c.b16 %v2903, %v2896
    %v3534 = vpack.c.b16 %v2911, %v2904
    %v3535 = vpack.c.b16 %v2912, %v2905
    %v3536 = vpack.c.b16 %v2913, %v2906
    %v3537 = vpack.c.b16 %v2914, %v2907
    %v3538 = vpack.c.b16 %v2915, %v2908
    %v3539 = vpack.c.b16 %v2916, %v2909
    %v3540 = vpack.c.b16 %v2917, %v2910
    %v3541 = vpack.c.b16 %v2925, %v2918
    %v3542 = vpack.c.b16 %v2926, %v2919
    %v3543 = vpack.c.b16 %v2927, %v2920
    %v3544 = vpack.c.b16 %v2928, %v2921
    %v3545 = vpack.c.b16 %v2929, %v2922
    %v3546 = vpack.c.b16 %v2930, %v2923
    %v3547 = vpack.c.b16 %v2931, %v2924
    %v3548 = vpack.c.b16 %v2939, %v2932
    %v3549 = vpack.c.b16 %v2940, %v2933
    %v3550 = vpack.c.b16 %v2941, %v2934
    %v3551 = vpack.c.b16 %v2942, %v2935
    %v3552 = vpack.c.b16 %v2943, %v2936
    %v3553 = vpack.c.b16 %v2944, %v2937
    %v3554 = vpack.c.b16 %v2945, %v2938
    %v3555 = vpack.c.b16 %v2953, %v2946
    %v3556 = vpack.c.b16 %v2954, %v2947
    %v3557 = vpack.c.b16 %v2955, %v2948
    %v3558 = vpack.c.b16 %v2956, %v2949
    %v3559 = vpack.c.b16 %v2957, %v2950
    %v3560 = vpack.c.b16 %v2958, %v2951
    %v3561 = vpack.c.b16 %v2959, %v2952
    %v3562 = vpack.c.b16 %v2967, %v2960
    %v3563 = vpack.c.b16 %v2968, %v2961
    %v3564 = vpack.c.b16 %v2969, %v2962
    %v3565 = vpack.c.b16 %v2970, %v2963
    %v3566 = vpack.c.b16 %v2971, %v2964
    %v3567 = vpack.c.b16 %v2972, %v2965
    %v3568 = vpack.c.b16 %v2973, %v2966
    %v3569 = vpack.c.b16 %v2981, %v2974
    %v3570 = vpack.c.b16 %v2982, %v2975
    %v3571 = vpack.c.b16 %v2983, %v2976
    %v3572 = vpack.c.b16 %v2984, %v2977
    %v3573 = vpack.c.b16 %v2985, %v2978
    %v3574 = vpack.c.b16 %v2986, %v2979
    %v3575 = vpack.c.b16 %v2987, %v2980
    %v3576 = vpack.c.b16 %v2995, %v2988
    %v3577 = vpack.c.b16 %v2996, %v2989
    %v3578 = vpack.c.b16 %v2997, %v2990
    %v3579 = vpack.c.b16 %v2998, %v2991
    %v3580 = vpack.c.b16 %v2999, %v2992
    %v3581 = vpack.c.b16 %v3000, %v2993
    %v3582 = vpack.c.b16 %v3001, %v2994
    %v3583 = vpack.c.b16 %v3009, %v3002
    %v3584 = vpack.c.b16 %v3010, %v3003
    %v3585 = vpack.c.b16 %v3011, %v3004
    %v3586 = vpack.c.b16 %v3012, %v3005
    %v3587 = vpack.c.b16 %v3013, %v3006
    %v3588 = vpack.c.b16 %v3014, %v3007
    %v3589 = vpack.c.b16 %v3015, %v3008
    %v3590 = vpack.c.b16 %v3023, %v3016
    %v3591 = vpack.c.b16 %v3024, %v3017
    %v3592 = vpack.c.b16 %v3025, %v3018
    %v3593 = vpack.c.b16 %v3026, %v3019
    %v3594 = vpack.c.b16 %v3027, %v3020
    %v3595 = vpack.c.b16 %v3028, %v3021
    %v3596 = vpack.c.b16 %v3029, %v3022
    %v3597 = vpack.c.b16 %v3037, %v3030
    %v3598 = vpack.c.b16 %v3038, %v3031
    %v3599 = vpack.c.b16 %v3039, %v3032
    %v3600 = vpack.c.b16 %v3040, %v3033
    %v3601 = vpack.c.b16 %v3041, %v3034
    %v3602 = vpack.c.b16 %v3042, %v3035
    %v3603 = vpack.c.b16 %v3043, %v3036
    %v3604 = vpack.c.b16 %v3051, %v3044
    %v3605 = vpack.c.b16 %v3052, %v3045
    %v3606 = vpack.c.b16 %v3053, %v3046
    %v3607 = vpack.c.b16 %v3054, %v3047
    %v3608 = vpack.c.b16 %v3055, %v3048
    %v3609 = vpack.c.b16 %v3056, %v3049
    %v3610 = vpack.c.b16 %v3057, %v3050
    %v3611 = vpack.c.b16 %v3065, %v3058
    %v3612 = vpack.c.b16 %v3066, %v3059
    %v3613 = vpack.c.b16 %v3067, %v3060
    %v3614 = vpack.c.b16 %v3068, %v3061
    %v3615 = vpack.c.b16 %v3069, %v3062
    %v3616 = vpack.c.b16 %v3070, %v3063
    %v3617 = vpack.c.b16 %v3071, %v3064
    %v3618 = vpack.c.b16 %v3079, %v3072
    %v3619 = vpack.c.b16 %v3080, %v3073
    %v3620 = vpack.c.b16 %v3081, %v3074
    %v3621 = vpack.c.b16 %v3082, %v3075
    %v3622 = vpack.c.b16 %v3083, %v3076
    %v3623 = vpack.c.b16 %v3084, %v3077
    %v3624 = vpack.c.b16 %v3085, %v3078
    %v3625 = vpack.c.b16 %v3093, %v3086
    %v3626 = vpack.c.b16 %v3094, %v3087
    %v3627 = vpack.c.b16 %v3095, %v3088
    %v3628 = vpack.c.b16 %v3096, %v3089
    %v3629 = vpack.c.b16 %v3097, %v3090
    %v3630 = vpack.c.b16 %v3098, %v3091
    %v3631 = vpack.c.b16 %v3099, %v3092
    %v3632 = vpack.c.b16 %v3107, %v3100
    %v3633 = vpack.c.b16 %v3108, %v3101
    %v3634 = vpack.c.b16 %v3109, %v3102
    %v3635 = vpack.c.b16 %v3110, %v3103
    %v3636 = vpack.c.b16 %v3111, %v3104
    %v3637 = vpack.c.b16 %v3112, %v3105
    %v3638 = vpack.c.b16 %v3113, %v3106
    %v3639 = vpack.c.b16 %v3121, %v3114
    %v3640 = vpack.c.b16 %v3122, %v3115
    %v3641 = vpack.c.b16 %v3123, %v3116
    %v3642 = vpack.c.b16 %v3124, %v3117
    %v3643 = vpack.c.b16 %v3125, %v3118
    %v3644 = vpack.c.b16 %v3126, %v3119
    %v3645 = vpack.c.b16 %v3127, %v3120
    %v3646 = vpack.c.b16 %v3135, %v3128
    %v3647 = vpack.c.b16 %v3136, %v3129
    %v3648 = vpack.c.b16 %v3137, %v3130
    %v3649 = vpack.c.b16 %v3138, %v3131
    %v3650 = vpack.c.b16 %v3139, %v3132
    %v3651 = vpack.c.b16 %v3140, %v3133
    %v3652 = vpack.c.b16 %v3141, %v3134
    %v3653 = vpack.c.b16 %v3149, %v3142
    %v3654 = vpack.c.b16 %v3150, %v3143
    %v3655 = vpack.c.b16 %v3151, %v3144
    %v3656 = vpack.c.b16 %v3152, %v3145
    %v3657 = vpack.c.b16 %v3153, %v3146
    %v3658 = vpack.c.b16 %v3154, %v3147
    %v3659 = vpack.c.b16 %v3155, %v3148
    %v3660 = vpack.c.b16 %v3163, %v3156
    %v3661 = vpack.c.b16 %v3164, %v3157
    %v3662 = vpack.c.b16 %v3165, %v3158
    %v3663 = vpack.c.b16 %v3166, %v3159
    %v3664 = vpack.c.b16 %v3167, %v3160
    %v3665 = vpack.c.b16 %v3168, %v3161
    %v3666 = vpack.c.b16 %v3169, %v3162
    %v3667 = vpack.c.b16 %v3177, %v3170
    %v3668 = vpack.c.b16 %v3178, %v3171
    %v3669 = vpack.c.b16 %v3179, %v3172
    %v3670 = vpack.c.b16 %v3180, %v3173
    %v3671 = vpack.c.b16 %v3181, %v3174
    %v3672 = vpack.c.b16 %v3182, %v3175
    %v3673 = vpack.c.b16 %v3183, %v3176
    %v3674 = vpack.c.b16 %v3191, %v3184
    %v3675 = vpack.c.b16 %v3192, %v3185
    %v3676 = vpack.c.b16 %v3193, %v3186
    %v3677 = vpack.c.b16 %v3194, %v3187
    %v3678 = vpack.c.b16 %v3195, %v3188
    %v3679 = vpack.c.b16 %v3196, %v3189
    %v3680 = vpack.c.b16 %v3197, %v3190
    %v3681 = vpack.c.b16 %v3205, %v3198
    %v3682 = vpack.c.b16 %v3206, %v3199
    %v3683 = vpack.c.b16 %v3207, %v3200
    %v3684 = vpack.c.b16 %v3208, %v3201
    %v3685 = vpack.c.b16 %v3209, %v3202
    %v3686 = vpack.c.b16 %v3210, %v3203
    %v3687 = vpack.c.b16 %v3211, %v3204
    %v3688 = vpack.c.b16 %v3219, %v3212
    %v3689 = vpack.c.b16 %v3220, %v3213
    %v3690 = vpack.c.b16 %v3221, %v3214
    %v3691 = vpack.c.b16 %v3222, %v3215
    %v3692 = vpack.c.b16 %v3223, %v3216
    %v3693 = vpack.c.b16 %v3224, %v3217
    %v3694 = vpack.c.b16 %v3225, %v3218
    %v3695 = vpack.c.b16 %v3233, %v3226
    %v3696 = vpack.c.b16 %v3234, %v3227
    %v3697 = vpack.c.b16 %v3235, %v3228
    %v3698 = vpack.c.b16 %v3236, %v3229
    %v3699 = vpack.c.b16 %v3237, %v3230
    %v3700 = vpack.c.b16 %v3238, %v3231
    %v3701 = vpack.c.b16 %v3239, %v3232
    %v3702 = vpack.c.b16 %v3247, %v3240
    %v3703 = vpack.c.b16 %v3248, %v3241
    %v3704 = vpack.c.b16 %v3249, %v3242
    %v3705 = vpack.c.b16 %v3250, %v3243
    %v3706 = vpack.c.b16 %v3251, %v3244
    %v3707 = vpack.c.b16 %v3252, %v3245
    %v3708 = vpack.c.b16 %v3253, %v3246
    %v3709 = vpack.c.b16 %v3261, %v3254
    %v3710 = vpack.c.b16 %v3262, %v3255
    %v3711 = vpack.c.b16 %v3263, %v3256
    %v3712 = vpack.c.b16 %v3264, %v3257
    %v3713 = vpack.c.b16 %v3265, %v3258
    %v3714 = vpack.c.b16 %v3266, %v3259
    %v3715 = vpack.c.b16 %v3267, %v3260
    %4164 = vmatprep.subr.bf16.mxu0 %v3318
    %4165 = vmatpush1.bf16.msra.mxu0 %v3317
    %4166 = vmatprep.subr.bf16.mxu0 %v3311
    %4167 = vmatpush1.bf16.msra.mxu0 %v3310
    %4168 = vmatprep.subr.bf16.mxu0 %v3304
    %4169 = vmatpush1.bf16.msra.mxu0 %v3303
    %4170 = vmatprep.subr.bf16.mxu0 %v3297
    %4171 = vmatpush1.bf16.msra.mxu0 %v3296
    %4172 = vmatprep.subr.bf16.mxu0 %v3290
    %4173 = vmatpush1.bf16.msra.mxu0 %v3289
    %4174 = vmatprep.subr.bf16.mxu0 %v3283
    %4175 = vmatpush1.bf16.msra.mxu0 %v3282
    %4176 = vmatprep.subr.bf16.mxu0 %v3276
    %4177 = vmatpush1.bf16.msra.mxu0 %v3275
    %4178 = vmatprep.subr.bf16.mxu0 %v3269
    %4179 = vmatpush1.bf16.msra.mxu0 %v3268
    %4180 = vmatprep.subr.bf16.mxu0 %v3374
    %4181 = vmatpush2.bf16.msra.mxu0 %v3373
    %4182 = vmatprep.subr.bf16.mxu0 %v3367
    %4183 = vmatpush2.bf16.msra.mxu0 %v3366
    %4184 = vmatprep.subr.bf16.mxu0 %v3360
    %4185 = vmatpush2.bf16.msra.mxu0 %v3359
    %4186 = vmatprep.subr.bf16.mxu0 %v3353
    %4187 = vmatpush2.bf16.msra.mxu0 %v3352
    %4188 = vmatprep.subr.bf16.mxu0 %v3346
    %4189 = vmatpush2.bf16.msra.mxu0 %v3345
    %4190 = vmatprep.subr.bf16.mxu0 %v3339
    %4191 = vmatpush2.bf16.msra.mxu0 %v3338
    %4192 = vmatprep.subr.bf16.mxu0 %v3332
    %4193 = vmatpush2.bf16.msra.mxu0 %v3331
    %4194 = vmatprep.subr.bf16.mxu0 %v3325
    %4195 = vmatpush2.bf16.msra.mxu0 %v3324
    %4196 = vmatprep.mubr.bf16.mxu0 %v1296
    %4197 = vmatmul.mubr.bf16.gmra.mxu0 %v1295
    %v4198 = vpop.f32.mrf.mxu0
    %v4199 = vadd.f32 %v1828, %v4198
    %v4200 = vpop.f32.mrf.mxu0
    %v4201 = vadd.f32 %v1832, %v4200
    %v4202 = vpop.f32.mrf.mxu0
    %v4203 = vadd.f32 %v1828, %v4202
    %v4204 = vpop.f32.mrf.mxu0
    %v4205 = vadd.f32 %v1832, %v4204
    %4206 = vmatprep.mubr.bf16.mxu0 %v1304
    %4207 = vmatmul.mubr.bf16.gmra.mxu0 %v1303
    %v4208 = vpop.f32.mrf.mxu0
    %v4209 = vadd.f32 %v1828, %v4208
    %v4210 = vpop.f32.mrf.mxu0
    %v4211 = vadd.f32 %v1832, %v4210
    %v4212 = vpop.f32.mrf.mxu0
    %v4213 = vadd.f32 %v1828, %v4212
    %v4214 = vpop.f32.mrf.mxu0
    %v4215 = vadd.f32 %v1832, %v4214
    %4216 = vdwg.mxu0
    %4217 = vmatprep.subr.bf16.mxu0 %v3430
    %4218 = vmatpush1.bf16.msra.mxu0 %v3429
    %4219 = vmatprep.subr.bf16.mxu0 %v3423
    %4220 = vmatpush1.bf16.msra.mxu0 %v3422
    %4221 = vmatprep.subr.bf16.mxu0 %v3416
    %4222 = vmatpush1.bf16.msra.mxu0 %v3415
    %4223 = vmatprep.subr.bf16.mxu0 %v3409
    %4224 = vmatpush1.bf16.msra.mxu0 %v3408
    %4225 = vmatprep.subr.bf16.mxu0 %v3402
    %4226 = vmatpush1.bf16.msra.mxu0 %v3401
    %4227 = vmatprep.subr.bf16.mxu0 %v3395
    %4228 = vmatpush1.bf16.msra.mxu0 %v3394
    %4229 = vmatprep.subr.bf16.mxu0 %v3388
    %4230 = vmatpush1.bf16.msra.mxu0 %v3387
    %4231 = vmatprep.subr.bf16.mxu0 %v3381
    %4232 = vmatpush1.bf16.msra.mxu0 %v3380
    %4233 = vmatprep.subr.bf16.mxu0 %v3486
    %4234 = vmatpush2.bf16.msra.mxu0 %v3485
    %4235 = vmatprep.subr.bf16.mxu0 %v3479
    %4236 = vmatpush2.bf16.msra.mxu0 %v3478
    %4237 = vmatprep.subr.bf16.mxu0 %v3472
    %4238 = vmatpush2.bf16.msra.mxu0 %v3471
    %4239 = vmatprep.subr.bf16.mxu0 %v3465
    %4240 = vmatpush2.bf16.msra.mxu0 %v3464
    %4241 = vmatprep.subr.bf16.mxu0 %v3458
    %4242 = vmatpush2.bf16.msra.mxu0 %v3457
    %4243 = vmatprep.subr.bf16.mxu0 %v3451
    %4244 = vmatpush2.bf16.msra.mxu0 %v3450
    %4245 = vmatprep.subr.bf16.mxu0 %v3444
    %4246 = vmatpush2.bf16.msra.mxu0 %v3443
    %4247 = vmatprep.subr.bf16.mxu0 %v3437
    %4248 = vmatpush2.bf16.msra.mxu0 %v3436
    %4249 = vmatprep.mubr.bf16.mxu0 %v1298
    %4250 = vmatmul.mubr.bf16.gmra.mxu0 %v1297
    %v4251 = vpop.f32.mrf.mxu0
    %v4252 = vadd.f32 %v4199, %v4251
    %v4253 = vpop.f32.mrf.mxu0
    %v4254 = vadd.f32 %v4201, %v4253
    %v4255 = vpop.f32.mrf.mxu0
    %v4256 = vadd.f32 %v4203, %v4255
    %v4257 = vpop.f32.mrf.mxu0
    %v4258 = vadd.f32 %v4205, %v4257
    %4259 = vmatprep.mubr.bf16.mxu0 %v1306
    %4260 = vmatmul.mubr.bf16.gmra.mxu0 %v1305
    %v4261 = vpop.f32.mrf.mxu0
    %v4262 = vadd.f32 %v4209, %v4261
    %v4263 = vpop.f32.mrf.mxu0
    %v4264 = vadd.f32 %v4211, %v4263
    %v4265 = vpop.f32.mrf.mxu0
    %v4266 = vadd.f32 %v4213, %v4265
    %v4267 = vpop.f32.mrf.mxu0
    %v4268 = vadd.f32 %v4215, %v4267
    %4269 = vdwg.mxu0
    %4270 = vmatprep.subr.bf16.mxu0 %v3542
    %4271 = vmatpush1.bf16.msra.mxu0 %v3541
    %4272 = vmatprep.subr.bf16.mxu0 %v3535
    %4273 = vmatpush1.bf16.msra.mxu0 %v3534
    %4274 = vmatprep.subr.bf16.mxu0 %v3528
    %4275 = vmatpush1.bf16.msra.mxu0 %v3527
    %4276 = vmatprep.subr.bf16.mxu0 %v3521
    %4277 = vmatpush1.bf16.msra.mxu0 %v3520
    %4278 = vmatprep.subr.bf16.mxu0 %v3514
    %4279 = vmatpush1.bf16.msra.mxu0 %v3513
    %4280 = vmatprep.subr.bf16.mxu0 %v3507
    %4281 = vmatpush1.bf16.msra.mxu0 %v3506
    %4282 = vmatprep.subr.bf16.mxu0 %v3500
    %4283 = vmatpush1.bf16.msra.mxu0 %v3499
    %4284 = vmatprep.subr.bf16.mxu0 %v3493
    %4285 = vmatpush1.bf16.msra.mxu0 %v3492
    %4286 = vmatprep.subr.bf16.mxu0 %v3598
    %4287 = vmatpush2.bf16.msra.mxu0 %v3597
    %4288 = vmatprep.subr.bf16.mxu0 %v3591
    %4289 = vmatpush2.bf16.msra.mxu0 %v3590
    %4290 = vmatprep.subr.bf16.mxu0 %v3584
    %4291 = vmatpush2.bf16.msra.mxu0 %v3583
    %4292 = vmatprep.subr.bf16.mxu0 %v3577
    %4293 = vmatpush2.bf16.msra.mxu0 %v3576
    %4294 = vmatprep.subr.bf16.mxu0 %v3570
    %4295 = vmatpush2.bf16.msra.mxu0 %v3569
    %4296 = vmatprep.subr.bf16.mxu0 %v3563
    %4297 = vmatpush2.bf16.msra.mxu0 %v3562
    %4298 = vmatprep.subr.bf16.mxu0 %v3556
    %4299 = vmatpush2.bf16.msra.mxu0 %v3555
    %4300 = vmatprep.subr.bf16.mxu0 %v3549
    %4301 = vmatpush2.bf16.msra.mxu0 %v3548
    %4302 = vmatprep.mubr.bf16.mxu0 %v1300
    %4303 = vmatmul.mubr.bf16.gmra.mxu0 %v1299
    %v4304 = vpop.f32.mrf.mxu0
    %v4305 = vadd.f32 %v4252, %v4304
    %v4306 = vpop.f32.mrf.mxu0
    %v4307 = vadd.f32 %v4254, %v4306
    %v4308 = vpop.f32.mrf.mxu0
    %v4309 = vadd.f32 %v4256, %v4308
    %v4310 = vpop.f32.mrf.mxu0
    %v4311 = vadd.f32 %v4258, %v4310
    %4312 = vmatprep.mubr.bf16.mxu0 %v1308
    %4313 = vmatmul.mubr.bf16.gmra.mxu0 %v1307
    %v4314 = vpop.f32.mrf.mxu0
    %v4315 = vadd.f32 %v4262, %v4314
    %v4316 = vpop.f32.mrf.mxu0
    %v4317 = vadd.f32 %v4264, %v4316
    %v4318 = vpop.f32.mrf.mxu0
    %v4319 = vadd.f32 %v4266, %v4318
    %v4320 = vpop.f32.mrf.mxu0
    %v4321 = vadd.f32 %v4268, %v4320
    %4322 = vdwg.mxu0
    %4323 = vmatprep.subr.bf16.mxu0 %v3654
    %4324 = vmatpush1.bf16.msra.mxu0 %v3653
    %4325 = vmatprep.subr.bf16.mxu0 %v3647
    %4326 = vmatpush1.bf16.msra.mxu0 %v3646
    %4327 = vmatprep.subr.bf16.mxu0 %v3640
    %4328 = vmatpush1.bf16.msra.mxu0 %v3639
    %4329 = vmatprep.subr.bf16.mxu0 %v3633
    %4330 = vmatpush1.bf16.msra.mxu0 %v3632
    %4331 = vmatprep.subr.bf16.mxu0 %v3626
    %4332 = vmatpush1.bf16.msra.mxu0 %v3625
    %4333 = vmatprep.subr.bf16.mxu0 %v3619
    %4334 = vmatpush1.bf16.msra.mxu0 %v3618
    %4335 = vmatprep.subr.bf16.mxu0 %v3612
    %4336 = vmatpush1.bf16.msra.mxu0 %v3611
    %4337 = vmatprep.subr.bf16.mxu0 %v3605
    %4338 = vmatpush1.bf16.msra.mxu0 %v3604
    %4339 = vmatprep.subr.bf16.mxu0 %v3710
    %4340 = vmatpush2.bf16.msra.mxu0 %v3709
    %4341 = vmatprep.subr.bf16.mxu0 %v3703
    %4342 = vmatpush2.bf16.msra.mxu0 %v3702
    %4343 = vmatprep.subr.bf16.mxu0 %v3696
    %4344 = vmatpush2.bf16.msra.mxu0 %v3695
    %4345 = vmatprep.subr.bf16.mxu0 %v3689
    %4346 = vmatpush2.bf16.msra.mxu0 %v3688
    %4347 = vmatprep.subr.bf16.mxu0 %v3682
    %4348 = vmatpush2.bf16.msra.mxu0 %v3681
    %4349 = vmatprep.subr.bf16.mxu0 %v3675
    %4350 = vmatpush2.bf16.msra.mxu0 %v3674
    %4351 = vmatprep.subr.bf16.mxu0 %v3668
    %4352 = vmatpush2.bf16.msra.mxu0 %v3667
    %4353 = vmatprep.subr.bf16.mxu0 %v3661
    %4354 = vmatpush2.bf16.msra.mxu0 %v3660
    %4355 = vmatprep.mubr.bf16.mxu0 %v1302
    %4356 = vmatmul.mubr.bf16.gmra.mxu0 %v1301
    %v4357 = vpop.f32.mrf.mxu0
    %v4358 = vadd.f32 %v4305, %v4357
    %v4359 = vpop.f32.mrf.mxu0
    %v4360 = vadd.f32 %v4307, %v4359
    %v4361 = vpop.f32.mrf.mxu0
    %v4362 = vadd.f32 %v4309, %v4361
    %v4363 = vpop.f32.mrf.mxu0
    %v4364 = vadd.f32 %v4311, %v4363
    %4365 = vmatprep.mubr.bf16.mxu0 %v1310
    %4366 = vmatmul.mubr.bf16.gmra.mxu0 %v1309
    %v4367 = vpop.f32.mrf.mxu0
    %v4368 = vadd.f32 %v4315, %v4367
    %v4369 = vpop.f32.mrf.mxu0
    %v4370 = vadd.f32 %v4317, %v4369
    %v4371 = vpop.f32.mrf.mxu0
    %v4372 = vadd.f32 %v4319, %v4371
    %v4373 = vpop.f32.mrf.mxu0
    %v4374 = vadd.f32 %v4321, %v4373
    %4375 = vdwg.mxu0
    %4376 = vmatprep.subr.bf16.mxu0 %v3320
    %4377 = vmatpush1.bf16.msra.mxu0 %v3319
    %4378 = vmatprep.subr.bf16.mxu0 %v3313
    %4379 = vmatpush1.bf16.msra.mxu0 %v3312
    %4380 = vmatprep.subr.bf16.mxu0 %v3306
    %4381 = vmatpush1.bf16.msra.mxu0 %v3305
    %4382 = vmatprep.subr.bf16.mxu0 %v3299
    %4383 = vmatpush1.bf16.msra.mxu0 %v3298
    %4384 = vmatprep.subr.bf16.mxu0 %v3292
    %4385 = vmatpush1.bf16.msra.mxu0 %v3291
    %4386 = vmatprep.subr.bf16.mxu0 %v3285
    %4387 = vmatpush1.bf16.msra.mxu0 %v3284
    %4388 = vmatprep.subr.bf16.mxu0 %v3278
    %4389 = vmatpush1.bf16.msra.mxu0 %v3277
    %4390 = vmatprep.subr.bf16.mxu0 %v3271
    %4391 = vmatpush1.bf16.msra.mxu0 %v3270
    %4392 = vmatprep.subr.bf16.mxu0 %v3376
    %4393 = vmatpush2.bf16.msra.mxu0 %v3375
    %4394 = vmatprep.subr.bf16.mxu0 %v3369
    %4395 = vmatpush2.bf16.msra.mxu0 %v3368
    %4396 = vmatprep.subr.bf16.mxu0 %v3362
    %4397 = vmatpush2.bf16.msra.mxu0 %v3361
    %4398 = vmatprep.subr.bf16.mxu0 %v3355
    %4399 = vmatpush2.bf16.msra.mxu0 %v3354
    %4400 = vmatprep.subr.bf16.mxu0 %v3348
    %4401 = vmatpush2.bf16.msra.mxu0 %v3347
    %4402 = vmatprep.subr.bf16.mxu0 %v3341
    %4403 = vmatpush2.bf16.msra.mxu0 %v3340
    %4404 = vmatprep.subr.bf16.mxu0 %v3334
    %4405 = vmatpush2.bf16.msra.mxu0 %v3333
    %4406 = vmatprep.subr.bf16.mxu0 %v3327
    %4407 = vmatpush2.bf16.msra.mxu0 %v3326
    %4408 = vmatprep.mubr.bf16.mxu0 %v1296
    %4409 = vmatmul.mubr.bf16.gmra.mxu0 %v1295
    %v4410 = vpop.f32.mrf.mxu0
    %v4411 = vadd.f32 %v1836, %v4410
    %v4412 = vpop.f32.mrf.mxu0
    %v4413 = vadd.f32 %v1840, %v4412
    %v4414 = vpop.f32.mrf.mxu0
    %v4415 = vadd.f32 %v1836, %v4414
    %v4416 = vpop.f32.mrf.mxu0
    %v4417 = vadd.f32 %v1840, %v4416
    %4418 = vmatprep.mubr.bf16.mxu0 %v1304
    %4419 = vmatmul.mubr.bf16.gmra.mxu0 %v1303
    %v4420 = vpop.f32.mrf.mxu0
    %v4421 = vadd.f32 %v1836, %v4420
    %v4422 = vpop.f32.mrf.mxu0
    %v4423 = vadd.f32 %v1840, %v4422
    %v4424 = vpop.f32.mrf.mxu0
    %v4425 = vadd.f32 %v1836, %v4424
    %v4426 = vpop.f32.mrf.mxu0
    %v4427 = vadd.f32 %v1840, %v4426
    %4428 = vdwg.mxu0
    %4429 = vmatprep.subr.bf16.mxu0 %v3432
    %4430 = vmatpush1.bf16.msra.mxu0 %v3431
    %4431 = vmatprep.subr.bf16.mxu0 %v3425
    %4432 = vmatpush1.bf16.msra.mxu0 %v3424
    %4433 = vmatprep.subr.bf16.mxu0 %v3418
    %4434 = vmatpush1.bf16.msra.mxu0 %v3417
    %4435 = vmatprep.subr.bf16.mxu0 %v3411
    %4436 = vmatpush1.bf16.msra.mxu0 %v3410
    %4437 = vmatprep.subr.bf16.mxu0 %v3404
    %4438 = vmatpush1.bf16.msra.mxu0 %v3403
    %4439 = vmatprep.subr.bf16.mxu0 %v3397
    %4440 = vmatpush1.bf16.msra.mxu0 %v3396
    %4441 = vmatprep.subr.bf16.mxu0 %v3390
    %4442 = vmatpush1.bf16.msra.mxu0 %v3389
    %4443 = vmatprep.subr.bf16.mxu0 %v3383
    %4444 = vmatpush1.bf16.msra.mxu0 %v3382
    %4445 = vmatprep.subr.bf16.mxu0 %v3488
    %4446 = vmatpush2.bf16.msra.mxu0 %v3487
    %4447 = vmatprep.subr.bf16.mxu0 %v3481
    %4448 = vmatpush2.bf16.msra.mxu0 %v3480
    %4449 = vmatprep.subr.bf16.mxu0 %v3474
    %4450 = vmatpush2.bf16.msra.mxu0 %v3473
    %4451 = vmatprep.subr.bf16.mxu0 %v3467
    %4452 = vmatpush2.bf16.msra.mxu0 %v3466
    %4453 = vmatprep.subr.bf16.mxu0 %v3460
    %4454 = vmatpush2.bf16.msra.mxu0 %v3459
    %4455 = vmatprep.subr.bf16.mxu0 %v3453
    %4456 = vmatpush2.bf16.msra.mxu0 %v3452
    %4457 = vmatprep.subr.bf16.mxu0 %v3446
    %4458 = vmatpush2.bf16.msra.mxu0 %v3445
    %4459 = vmatprep.subr.bf16.mxu0 %v3439
    %4460 = vmatpush2.bf16.msra.mxu0 %v3438
    %4461 = vmatprep.mubr.bf16.mxu0 %v1298
    %4462 = vmatmul.mubr.bf16.gmra.mxu0 %v1297
    %v4463 = vpop.f32.mrf.mxu0
    %v4464 = vadd.f32 %v4411, %v4463
    %v4465 = vpop.f32.mrf.mxu0
    %v4466 = vadd.f32 %v4413, %v4465
    %v4467 = vpop.f32.mrf.mxu0
    %v4468 = vadd.f32 %v4415, %v4467
    %v4469 = vpop.f32.mrf.mxu0
    %v4470 = vadd.f32 %v4417, %v4469
    %4471 = vmatprep.mubr.bf16.mxu0 %v1306
    %4472 = vmatmul.mubr.bf16.gmra.mxu0 %v1305
    %v4473 = vpop.f32.mrf.mxu0
    %v4474 = vadd.f32 %v4421, %v4473
    %v4475 = vpop.f32.mrf.mxu0
    %v4476 = vadd.f32 %v4423, %v4475
    %v4477 = vpop.f32.mrf.mxu0
    %v4478 = vadd.f32 %v4425, %v4477
    %v4479 = vpop.f32.mrf.mxu0
    %v4480 = vadd.f32 %v4427, %v4479
    %4481 = vdwg.mxu0
    %4482 = vmatprep.subr.bf16.mxu0 %v3544
    %4483 = vmatpush1.bf16.msra.mxu0 %v3543
    %4484 = vmatprep.subr.bf16.mxu0 %v3537
    %4485 = vmatpush1.bf16.msra.mxu0 %v3536
    %4486 = vmatprep.subr.bf16.mxu0 %v3530
    %4487 = vmatpush1.bf16.msra.mxu0 %v3529
    %4488 = vmatprep.subr.bf16.mxu0 %v3523
    %4489 = vmatpush1.bf16.msra.mxu0 %v3522
    %4490 = vmatprep.subr.bf16.mxu0 %v3516
    %4491 = vmatpush1.bf16.msra.mxu0 %v3515
    %4492 = vmatprep.subr.bf16.mxu0 %v3509
    %4493 = vmatpush1.bf16.msra.mxu0 %v3508
    %4494 = vmatprep.subr.bf16.mxu0 %v3502
    %4495 = vmatpush1.bf16.msra.mxu0 %v3501
    %4496 = vmatprep.subr.bf16.mxu0 %v3495
    %4497 = vmatpush1.bf16.msra.mxu0 %v3494
    %4498 = vmatprep.subr.bf16.mxu0 %v3600
    %4499 = vmatpush2.bf16.msra.mxu0 %v3599
    %4500 = vmatprep.subr.bf16.mxu0 %v3593
    %4501 = vmatpush2.bf16.msra.mxu0 %v3592
    %4502 = vmatprep.subr.bf16.mxu0 %v3586
    %4503 = vmatpush2.bf16.msra.mxu0 %v3585
    %4504 = vmatprep.subr.bf16.mxu0 %v3579
    %4505 = vmatpush2.bf16.msra.mxu0 %v3578
    %4506 = vmatprep.subr.bf16.mxu0 %v3572
    %4507 = vmatpush2.bf16.msra.mxu0 %v3571
    %4508 = vmatprep.subr.bf16.mxu0 %v3565
    %4509 = vmatpush2.bf16.msra.mxu0 %v3564
    %4510 = vmatprep.subr.bf16.mxu0 %v3558
    %4511 = vmatpush2.bf16.msra.mxu0 %v3557
    %4512 = vmatprep.subr.bf16.mxu0 %v3551
    %4513 = vmatpush2.bf16.msra.mxu0 %v3550
    %4514 = vmatprep.mubr.bf16.mxu0 %v1300
    %4515 = vmatmul.mubr.bf16.gmra.mxu0 %v1299
    %v4516 = vpop.f32.mrf.mxu0
    %v4517 = vadd.f32 %v4464, %v4516
    %v4518 = vpop.f32.mrf.mxu0
    %v4519 = vadd.f32 %v4466, %v4518
    %v4520 = vpop.f32.mrf.mxu0
    %v4521 = vadd.f32 %v4468, %v4520
    %v4522 = vpop.f32.mrf.mxu0
    %v4523 = vadd.f32 %v4470, %v4522
    %4524 = vmatprep.mubr.bf16.mxu0 %v1308
    %4525 = vmatmul.mubr.bf16.gmra.mxu0 %v1307
    %v4526 = vpop.f32.mrf.mxu0
    %v4527 = vadd.f32 %v4474, %v4526
    %v4528 = vpop.f32.mrf.mxu0
    %v4529 = vadd.f32 %v4476, %v4528
    %v4530 = vpop.f32.mrf.mxu0
    %v4531 = vadd.f32 %v4478, %v4530
    %v4532 = vpop.f32.mrf.mxu0
    %v4533 = vadd.f32 %v4480, %v4532
    %4534 = vdwg.mxu0
    %4535 = vmatprep.subr.bf16.mxu0 %v3656
    %4536 = vmatpush1.bf16.msra.mxu0 %v3655
    %4537 = vmatprep.subr.bf16.mxu0 %v3649
    %4538 = vmatpush1.bf16.msra.mxu0 %v3648
    %4539 = vmatprep.subr.bf16.mxu0 %v3642
    %4540 = vmatpush1.bf16.msra.mxu0 %v3641
    %4541 = vmatprep.subr.bf16.mxu0 %v3635
    %4542 = vmatpush1.bf16.msra.mxu0 %v3634
    %4543 = vmatprep.subr.bf16.mxu0 %v3628
    %4544 = vmatpush1.bf16.msra.mxu0 %v3627
    %4545 = vmatprep.subr.bf16.mxu0 %v3621
    %4546 = vmatpush1.bf16.msra.mxu0 %v3620
    %4547 = vmatprep.subr.bf16.mxu0 %v3614
    %4548 = vmatpush1.bf16.msra.mxu0 %v3613
    %4549 = vmatprep.subr.bf16.mxu0 %v3607
    %4550 = vmatpush1.bf16.msra.mxu0 %v3606
    %4551 = vmatprep.subr.bf16.mxu0 %v3712
    %4552 = vmatpush2.bf16.msra.mxu0 %v3711
    %4553 = vmatprep.subr.bf16.mxu0 %v3705
    %4554 = vmatpush2.bf16.msra.mxu0 %v3704
    %4555 = vmatprep.subr.bf16.mxu0 %v3698
    %4556 = vmatpush2.bf16.msra.mxu0 %v3697
    %4557 = vmatprep.subr.bf16.mxu0 %v3691
    %4558 = vmatpush2.bf16.msra.mxu0 %v3690
    %4559 = vmatprep.subr.bf16.mxu0 %v3684
    %4560 = vmatpush2.bf16.msra.mxu0 %v3683
    %4561 = vmatprep.subr.bf16.mxu0 %v3677
    %4562 = vmatpush2.bf16.msra.mxu0 %v3676
    %4563 = vmatprep.subr.bf16.mxu0 %v3670
    %4564 = vmatpush2.bf16.msra.mxu0 %v3669
    %4565 = vmatprep.subr.bf16.mxu0 %v3663
    %4566 = vmatpush2.bf16.msra.mxu0 %v3662
    %4567 = vmatprep.mubr.bf16.mxu0 %v1302
    %4568 = vmatmul.mubr.bf16.gmra.mxu0 %v1301
    %v4569 = vpop.f32.mrf.mxu0
    %v4570 = vadd.f32 %v4517, %v4569
    %v4571 = vpop.f32.mrf.mxu0
    %v4572 = vadd.f32 %v4519, %v4571
    %v4573 = vpop.f32.mrf.mxu0
    %v4574 = vadd.f32 %v4521, %v4573
    %v4575 = vpop.f32.mrf.mxu0
    %v4576 = vadd.f32 %v4523, %v4575
    %4577 = vmatprep.mubr.bf16.mxu0 %v1310
    %4578 = vmatmul.mubr.bf16.gmra.mxu0 %v1309
    %v4579 = vpop.f32.mrf.mxu0
    %v4580 = vadd.f32 %v4527, %v4579
    %v4581 = vpop.f32.mrf.mxu0
    %v4582 = vadd.f32 %v4529, %v4581
    %v4583 = vpop.f32.mrf.mxu0
    %v4584 = vadd.f32 %v4531, %v4583
    %v4585 = vpop.f32.mrf.mxu0
    %v4586 = vadd.f32 %v4533, %v4585
    %4587 = vdwg.mxu0
    %4588 = vmatprep.subr.bf16.mxu0 %v3322
    %4589 = vmatpush1.bf16.msra.mxu0 %v3321
    %4590 = vmatprep.subr.bf16.mxu0 %v3315
    %4591 = vmatpush1.bf16.msra.mxu0 %v3314
    %4592 = vmatprep.subr.bf16.mxu0 %v3308
    %4593 = vmatpush1.bf16.msra.mxu0 %v3307
    %4594 = vmatprep.subr.bf16.mxu0 %v3301
    %4595 = vmatpush1.bf16.msra.mxu0 %v3300
    %4596 = vmatprep.subr.bf16.mxu0 %v3294
    %4597 = vmatpush1.bf16.msra.mxu0 %v3293
    %4598 = vmatprep.subr.bf16.mxu0 %v3287
    %4599 = vmatpush1.bf16.msra.mxu0 %v3286
    %4600 = vmatprep.subr.bf16.mxu0 %v3280
    %4601 = vmatpush1.bf16.msra.mxu0 %v3279
    %4602 = vmatprep.subr.bf16.mxu0 %v3273
    %4603 = vmatpush1.bf16.msra.mxu0 %v3272
    %4604 = vmatprep.subr.bf16.mxu0 %v3378
    %4605 = vmatpush2.bf16.msra.mxu0 %v3377
    %4606 = vmatprep.subr.bf16.mxu0 %v3371
    %4607 = vmatpush2.bf16.msra.mxu0 %v3370
    %4608 = vmatprep.subr.bf16.mxu0 %v3364
    %4609 = vmatpush2.bf16.msra.mxu0 %v3363
    %4610 = vmatprep.subr.bf16.mxu0 %v3357
    %4611 = vmatpush2.bf16.msra.mxu0 %v3356
    %4612 = vmatprep.subr.bf16.mxu0 %v3350
    %4613 = vmatpush2.bf16.msra.mxu0 %v3349
    %4614 = vmatprep.subr.bf16.mxu0 %v3343
    %4615 = vmatpush2.bf16.msra.mxu0 %v3342
    %4616 = vmatprep.subr.bf16.mxu0 %v3336
    %4617 = vmatpush2.bf16.msra.mxu0 %v3335
    %4618 = vmatprep.subr.bf16.mxu0 %v3329
    %4619 = vmatpush2.bf16.msra.mxu0 %v3328
    %4620 = vmatprep.mubr.bf16.mxu0 %v1296
    %4621 = vmatmul.mubr.bf16.gmra.mxu0 %v1295
    %v4622 = vpop.f32.mrf.mxu0
    %v4623 = vadd.f32 %v1844, %v4622
    %v4624 = vpop.f32.mrf.mxu0
    %v4625 = vadd.f32 %v1848, %v4624
    %v4626 = vpop.f32.mrf.mxu0
    %v4627 = vadd.f32 %v1844, %v4626
    %v4628 = vpop.f32.mrf.mxu0
    %v4629 = vadd.f32 %v1848, %v4628
    %4630 = vmatprep.mubr.bf16.mxu0 %v1304
    %4631 = vmatmul.mubr.bf16.gmra.mxu0 %v1303
    %v4632 = vpop.f32.mrf.mxu0
    %v4633 = vadd.f32 %v1844, %v4632
    %v4634 = vpop.f32.mrf.mxu0
    %v4635 = vadd.f32 %v1848, %v4634
    %v4636 = vpop.f32.mrf.mxu0
    %v4637 = vadd.f32 %v1844, %v4636
    %v4638 = vpop.f32.mrf.mxu0
    %v4639 = vadd.f32 %v1848, %v4638
    %4640 = vdwg.mxu0
    %4641 = vmatprep.subr.bf16.mxu0 %v3434
    %4642 = vmatpush1.bf16.msra.mxu0 %v3433
    %4643 = vmatprep.subr.bf16.mxu0 %v3427
    %4644 = vmatpush1.bf16.msra.mxu0 %v3426
    %4645 = vmatprep.subr.bf16.mxu0 %v3420
    %4646 = vmatpush1.bf16.msra.mxu0 %v3419
    %4647 = vmatprep.subr.bf16.mxu0 %v3413
    %4648 = vmatpush1.bf16.msra.mxu0 %v3412
    %4649 = vmatprep.subr.bf16.mxu0 %v3406
    %4650 = vmatpush1.bf16.msra.mxu0 %v3405
    %4651 = vmatprep.subr.bf16.mxu0 %v3399
    %4652 = vmatpush1.bf16.msra.mxu0 %v3398
    %4653 = vmatprep.subr.bf16.mxu0 %v3392
    %4654 = vmatpush1.bf16.msra.mxu0 %v3391
    %4655 = vmatprep.subr.bf16.mxu0 %v3385
    %4656 = vmatpush1.bf16.msra.mxu0 %v3384
    %4657 = vmatprep.subr.bf16.mxu0 %v3490
    %4658 = vmatpush2.bf16.msra.mxu0 %v3489
    %4659 = vmatprep.subr.bf16.mxu0 %v3483
    %4660 = vmatpush2.bf16.msra.mxu0 %v3482
    %4661 = vmatprep.subr.bf16.mxu0 %v3476
    %4662 = vmatpush2.bf16.msra.mxu0 %v3475
    %4663 = vmatprep.subr.bf16.mxu0 %v3469
    %4664 = vmatpush2.bf16.msra.mxu0 %v3468
    %4665 = vmatprep.subr.bf16.mxu0 %v3462
    %4666 = vmatpush2.bf16.msra.mxu0 %v3461
    %4667 = vmatprep.subr.bf16.mxu0 %v3455
    %4668 = vmatpush2.bf16.msra.mxu0 %v3454
    %4669 = vmatprep.subr.bf16.mxu0 %v3448
    %4670 = vmatpush2.bf16.msra.mxu0 %v3447
    %4671 = vmatprep.subr.bf16.mxu0 %v3441
    %4672 = vmatpush2.bf16.msra.mxu0 %v3440
    %4673 = vmatprep.mubr.bf16.mxu0 %v1298
    %4674 = vmatmul.mubr.bf16.gmra.mxu0 %v1297
    %v4675 = vpop.f32.mrf.mxu0
    %v4676 = vadd.f32 %v4623, %v4675
    %v4677 = vpop.f32.mrf.mxu0
    %v4678 = vadd.f32 %v4625, %v4677
    %v4679 = vpop.f32.mrf.mxu0
    %v4680 = vadd.f32 %v4627, %v4679
    %v4681 = vpop.f32.mrf.mxu0
    %v4682 = vadd.f32 %v4629, %v4681
    %4683 = vmatprep.mubr.bf16.mxu0 %v1306
    %4684 = vmatmul.mubr.bf16.gmra.mxu0 %v1305
    %v4685 = vpop.f32.mrf.mxu0
    %v4686 = vadd.f32 %v4633, %v4685
    %v4687 = vpop.f32.mrf.mxu0
    %v4688 = vadd.f32 %v4635, %v4687
    %v4689 = vpop.f32.mrf.mxu0
    %v4690 = vadd.f32 %v4637, %v4689
    %v4691 = vpop.f32.mrf.mxu0
    %v4692 = vadd.f32 %v4639, %v4691
    %4693 = vdwg.mxu0
    %4694 = vmatprep.subr.bf16.mxu0 %v3546
    %4695 = vmatpush1.bf16.msra.mxu0 %v3545
    %4696 = vmatprep.subr.bf16.mxu0 %v3539
    %4697 = vmatpush1.bf16.msra.mxu0 %v3538
    %4698 = vmatprep.subr.bf16.mxu0 %v3532
    %4699 = vmatpush1.bf16.msra.mxu0 %v3531
    %4700 = vmatprep.subr.bf16.mxu0 %v3525
    %4701 = vmatpush1.bf16.msra.mxu0 %v3524
    %4702 = vmatprep.subr.bf16.mxu0 %v3518
    %4703 = vmatpush1.bf16.msra.mxu0 %v3517
    %4704 = vmatprep.subr.bf16.mxu0 %v3511
    %4705 = vmatpush1.bf16.msra.mxu0 %v3510
    %4706 = vmatprep.subr.bf16.mxu0 %v3504
    %4707 = vmatpush1.bf16.msra.mxu0 %v3503
    %4708 = vmatprep.subr.bf16.mxu0 %v3497
    %4709 = vmatpush1.bf16.msra.mxu0 %v3496
    %4710 = vmatprep.subr.bf16.mxu0 %v3602
    %4711 = vmatpush2.bf16.msra.mxu0 %v3601
    %4712 = vmatprep.subr.bf16.mxu0 %v3595
    %4713 = vmatpush2.bf16.msra.mxu0 %v3594
    %4714 = vmatprep.subr.bf16.mxu0 %v3588
    %4715 = vmatpush2.bf16.msra.mxu0 %v3587
    %4716 = vmatprep.subr.bf16.mxu0 %v3581
    %4717 = vmatpush2.bf16.msra.mxu0 %v3580
    %4718 = vmatprep.subr.bf16.mxu0 %v3574
    %4719 = vmatpush2.bf16.msra.mxu0 %v3573
    %4720 = vmatprep.subr.bf16.mxu0 %v3567
    %4721 = vmatpush2.bf16.msra.mxu0 %v3566
    %4722 = vmatprep.subr.bf16.mxu0 %v3560
    %4723 = vmatpush2.bf16.msra.mxu0 %v3559
    %4724 = vmatprep.subr.bf16.mxu0 %v3553
    %4725 = vmatpush2.bf16.msra.mxu0 %v3552
    %4726 = vmatprep.mubr.bf16.mxu0 %v1300
    %4727 = vmatmul.mubr.bf16.gmra.mxu0 %v1299
    %v4728 = vpop.f32.mrf.mxu0
    %v4729 = vadd.f32 %v4676, %v4728
    %v4730 = vpop.f32.mrf.mxu0
    %v4731 = vadd.f32 %v4678, %v4730
    %v4732 = vpop.f32.mrf.mxu0
    %v4733 = vadd.f32 %v4680, %v4732
    %v4734 = vpop.f32.mrf.mxu0
    %v4735 = vadd.f32 %v4682, %v4734
    %4736 = vmatprep.mubr.bf16.mxu0 %v1308
    %4737 = vmatmul.mubr.bf16.gmra.mxu0 %v1307
    %v4738 = vpop.f32.mrf.mxu0
    %v4739 = vadd.f32 %v4686, %v4738
    %v4740 = vpop.f32.mrf.mxu0
    %v4741 = vadd.f32 %v4688, %v4740
    %v4742 = vpop.f32.mrf.mxu0
    %v4743 = vadd.f32 %v4690, %v4742
    %v4744 = vpop.f32.mrf.mxu0
    %v4745 = vadd.f32 %v4692, %v4744
    %4746 = vdwg.mxu0
    %4747 = vmatprep.subr.bf16.mxu0 %v3658
    %4748 = vmatpush1.bf16.msra.mxu0 %v3657
    %4749 = vmatprep.subr.bf16.mxu0 %v3651
    %4750 = vmatpush1.bf16.msra.mxu0 %v3650
    %4751 = vmatprep.subr.bf16.mxu0 %v3644
    %4752 = vmatpush1.bf16.msra.mxu0 %v3643
    %4753 = vmatprep.subr.bf16.mxu0 %v3637
    %4754 = vmatpush1.bf16.msra.mxu0 %v3636
    %4755 = vmatprep.subr.bf16.mxu0 %v3630
    %4756 = vmatpush1.bf16.msra.mxu0 %v3629
    %4757 = vmatprep.subr.bf16.mxu0 %v3623
    %4758 = vmatpush1.bf16.msra.mxu0 %v3622
    %4759 = vmatprep.subr.bf16.mxu0 %v3616
    %4760 = vmatpush1.bf16.msra.mxu0 %v3615
    %4761 = vmatprep.subr.bf16.mxu0 %v3609
    %4762 = vmatpush1.bf16.msra.mxu0 %v3608
    %4763 = vmatprep.subr.bf16.mxu0 %v3714
    %4764 = vmatpush2.bf16.msra.mxu0 %v3713
    %4765 = vmatprep.subr.bf16.mxu0 %v3707
    %4766 = vmatpush2.bf16.msra.mxu0 %v3706
    %4767 = vmatprep.subr.bf16.mxu0 %v3700
    %4768 = vmatpush2.bf16.msra.mxu0 %v3699
    %4769 = vmatprep.subr.bf16.mxu0 %v3693
    %4770 = vmatpush2.bf16.msra.mxu0 %v3692
    %4771 = vmatprep.subr.bf16.mxu0 %v3686
    %4772 = vmatpush2.bf16.msra.mxu0 %v3685
    %4773 = vmatprep.subr.bf16.mxu0 %v3679
    %4774 = vmatpush2.bf16.msra.mxu0 %v3678
    %4775 = vmatprep.subr.bf16.mxu0 %v3672
    %4776 = vmatpush2.bf16.msra.mxu0 %v3671
    %4777 = vmatprep.subr.bf16.mxu0 %v3665
    %4778 = vmatpush2.bf16.msra.mxu0 %v3664
    %4779 = vmatprep.mubr.bf16.mxu0 %v1302
    %4780 = vmatmul.mubr.bf16.gmra.mxu0 %v1301
    %v4781 = vpop.f32.mrf.mxu0
    %v4782 = vadd.f32 %v4729, %v4781
    %v4783 = vpop.f32.mrf.mxu0
    %v4784 = vadd.f32 %v4731, %v4783
    %v4785 = vpop.f32.mrf.mxu0
    %v4786 = vadd.f32 %v4733, %v4785
    %v4787 = vpop.f32.mrf.mxu0
    %v4788 = vadd.f32 %v4735, %v4787
    %4789 = vmatprep.mubr.bf16.mxu0 %v1310
    %4790 = vmatmul.mubr.bf16.gmra.mxu0 %v1309
    %v4791 = vpop.f32.mrf.mxu0
    %v4792 = vadd.f32 %v4739, %v4791
    %v4793 = vpop.f32.mrf.mxu0
    %v4794 = vadd.f32 %v4741, %v4793
    %v4795 = vpop.f32.mrf.mxu0
    %v4796 = vadd.f32 %v4743, %v4795
    %v4797 = vpop.f32.mrf.mxu0
    %v4798 = vadd.f32 %v4745, %v4797
    %4799 = vdwg.mxu0
    %4800 = vmatprep.subr.bf16.mxu0 0
    %4801 = vmatpush1.bf16.msra.mxu0 %v3323
    %4802 = vmatprep.subr.bf16.mxu0 0
    %4803 = vmatpush1.bf16.msra.mxu0 %v3316
    %4804 = vmatprep.subr.bf16.mxu0 0
    %4805 = vmatpush1.bf16.msra.mxu0 %v3309
    %4806 = vmatprep.subr.bf16.mxu0 0
    %4807 = vmatpush1.bf16.msra.mxu0 %v3302
    %4808 = vmatprep.subr.bf16.mxu0 0
    %4809 = vmatpush1.bf16.msra.mxu0 %v3295
    %4810 = vmatprep.subr.bf16.mxu0 0
    %4811 = vmatpush1.bf16.msra.mxu0 %v3288
    %4812 = vmatprep.subr.bf16.mxu0 0
    %4813 = vmatpush1.bf16.msra.mxu0 %v3281
    %4814 = vmatprep.subr.bf16.mxu0 0
    %4815 = vmatpush1.bf16.msra.mxu0 %v3274
    %4816 = vmatprep.subr.bf16.mxu0 0
    %4817 = vmatpush2.bf16.msra.mxu0 %v3379
    %4818 = vmatprep.subr.bf16.mxu0 0
    %4819 = vmatpush2.bf16.msra.mxu0 %v3372
    %4820 = vmatprep.subr.bf16.mxu0 0
    %4821 = vmatpush2.bf16.msra.mxu0 %v3365
    %4822 = vmatprep.subr.bf16.mxu0 0
    %4823 = vmatpush2.bf16.msra.mxu0 %v3358
    %4824 = vmatprep.subr.bf16.mxu0 0
    %4825 = vmatpush2.bf16.msra.mxu0 %v3351
    %4826 = vmatprep.subr.bf16.mxu0 0
    %4827 = vmatpush2.bf16.msra.mxu0 %v3344
    %4828 = vmatprep.subr.bf16.mxu0 0
    %4829 = vmatpush2.bf16.msra.mxu0 %v3337
    %4830 = vmatprep.subr.bf16.mxu0 0
    %4831 = vmatpush2.bf16.msra.mxu0 %v3330
    %4832 = vmatprep.mubr.bf16.mxu0 %v1296
    %4833 = vmatmul.mubr.bf16.gmra.mxu0 %v1295
    %v4834 = vpop.f32.mrf.mxu0
    %v4835 = vadd.f32 %v1852, %v4834
    %v4836 = vpop.f32.mrf.mxu0
    %v4837 = vpop.f32.mrf.mxu0
    %v4838 = vadd.f32 %v1852, %v4837
    %v4839 = vpop.f32.mrf.mxu0
    %4840 = vmatprep.mubr.bf16.mxu0 %v1304
    %4841 = vmatmul.mubr.bf16.gmra.mxu0 %v1303
    %v4842 = vpop.f32.mrf.mxu0
    %v4843 = vadd.f32 %v1852, %v4842
    %v4844 = vpop.f32.mrf.mxu0
    %v4845 = vpop.f32.mrf.mxu0
    %v4846 = vadd.f32 %v1852, %v4845
    %v4847 = vpop.f32.mrf.mxu0
    %4848 = vdwg.mxu0
    %4849 = vmatprep.subr.bf16.mxu0 0
    %4850 = vmatpush1.bf16.msra.mxu0 %v3435
    %4851 = vmatprep.subr.bf16.mxu0 0
    %4852 = vmatpush1.bf16.msra.mxu0 %v3428
    %4853 = vmatprep.subr.bf16.mxu0 0
    %4854 = vmatpush1.bf16.msra.mxu0 %v3421
    %4855 = vmatprep.subr.bf16.mxu0 0
    %4856 = vmatpush1.bf16.msra.mxu0 %v3414
    %4857 = vmatprep.subr.bf16.mxu0 0
    %4858 = vmatpush1.bf16.msra.mxu0 %v3407
    %4859 = vmatprep.subr.bf16.mxu0 0
    %4860 = vmatpush1.bf16.msra.mxu0 %v3400
    %4861 = vmatprep.subr.bf16.mxu0 0
    %4862 = vmatpush1.bf16.msra.mxu0 %v3393
    %4863 = vmatprep.subr.bf16.mxu0 0
    %4864 = vmatpush1.bf16.msra.mxu0 %v3386
    %4865 = vmatprep.subr.bf16.mxu0 0
    %4866 = vmatpush2.bf16.msra.mxu0 %v3491
    %4867 = vmatprep.subr.bf16.mxu0 0
    %4868 = vmatpush2.bf16.msra.mxu0 %v3484
    %4869 = vmatprep.subr.bf16.mxu0 0
    %4870 = vmatpush2.bf16.msra.mxu0 %v3477
    %4871 = vmatprep.subr.bf16.mxu0 0
    %4872 = vmatpush2.bf16.msra.mxu0 %v3470
    %4873 = vmatprep.subr.bf16.mxu0 0
    %4874 = vmatpush2.bf16.msra.mxu0 %v3463
    %4875 = vmatprep.subr.bf16.mxu0 0
    %4876 = vmatpush2.bf16.msra.mxu0 %v3456
    %4877 = vmatprep.subr.bf16.mxu0 0
    %4878 = vmatpush2.bf16.msra.mxu0 %v3449
    %4879 = vmatprep.subr.bf16.mxu0 0
    %4880 = vmatpush2.bf16.msra.mxu0 %v3442
    %4881 = vmatprep.mubr.bf16.mxu0 %v1298
    %4882 = vmatmul.mubr.bf16.gmra.mxu0 %v1297
    %v4883 = vpop.f32.mrf.mxu0
    %v4884 = vadd.f32 %v4835, %v4883
    %v4885 = vpop.f32.mrf.mxu0
    %v4886 = vpop.f32.mrf.mxu0
    %v4887 = vadd.f32 %v4838, %v4886
    %v4888 = vpop.f32.mrf.mxu0
    %4889 = vmatprep.mubr.bf16.mxu0 %v1306
    %4890 = vmatmul.mubr.bf16.gmra.mxu0 %v1305
    %v4891 = vpop.f32.mrf.mxu0
    %v4892 = vadd.f32 %v4843, %v4891
    %v4893 = vpop.f32.mrf.mxu0
    %v4894 = vpop.f32.mrf.mxu0
    %v4895 = vadd.f32 %v4846, %v4894
    %v4896 = vpop.f32.mrf.mxu0
    %4897 = vdwg.mxu0
    %4898 = vmatprep.subr.bf16.mxu0 0
    %4899 = vmatpush1.bf16.msra.mxu0 %v3547
    %4900 = vmatprep.subr.bf16.mxu0 0
    %4901 = vmatpush1.bf16.msra.mxu0 %v3540
    %4902 = vmatprep.subr.bf16.mxu0 0
    %4903 = vmatpush1.bf16.msra.mxu0 %v3533
    %4904 = vmatprep.subr.bf16.mxu0 0
    %4905 = vmatpush1.bf16.msra.mxu0 %v3526
    %4906 = vmatprep.subr.bf16.mxu0 0
    %4907 = vmatpush1.bf16.msra.mxu0 %v3519
    %4908 = vmatprep.subr.bf16.mxu0 0
    %4909 = vmatpush1.bf16.msra.mxu0 %v3512
    %4910 = vmatprep.subr.bf16.mxu0 0
    %4911 = vmatpush1.bf16.msra.mxu0 %v3505
    %4912 = vmatprep.subr.bf16.mxu0 0
    %4913 = vmatpush1.bf16.msra.mxu0 %v3498
    %4914 = vmatprep.subr.bf16.mxu0 0
    %4915 = vmatpush2.bf16.msra.mxu0 %v3603
    %4916 = vmatprep.subr.bf16.mxu0 0
    %4917 = vmatpush2.bf16.msra.mxu0 %v3596
    %4918 = vmatprep.subr.bf16.mxu0 0
    %4919 = vmatpush2.bf16.msra.mxu0 %v3589
    %4920 = vmatprep.subr.bf16.mxu0 0
    %4921 = vmatpush2.bf16.msra.mxu0 %v3582
    %4922 = vmatprep.subr.bf16.mxu0 0
    %4923 = vmatpush2.bf16.msra.mxu0 %v3575
    %4924 = vmatprep.subr.bf16.mxu0 0
    %4925 = vmatpush2.bf16.msra.mxu0 %v3568
    %4926 = vmatprep.subr.bf16.mxu0 0
    %4927 = vmatpush2.bf16.msra.mxu0 %v3561
    %4928 = vmatprep.subr.bf16.mxu0 0
    %4929 = vmatpush2.bf16.msra.mxu0 %v3554
    %4930 = vmatprep.mubr.bf16.mxu0 %v1300
    %4931 = vmatmul.mubr.bf16.gmra.mxu0 %v1299
    %v4932 = vpop.f32.mrf.mxu0
    %v4933 = vadd.f32 %v4884, %v4932
    %v4934 = vpop.f32.mrf.mxu0
    %v4935 = vpop.f32.mrf.mxu0
    %v4936 = vadd.f32 %v4887, %v4935
    %v4937 = vpop.f32.mrf.mxu0
    %4938 = vmatprep.mubr.bf16.mxu0 %v1308
    %4939 = vmatmul.mubr.bf16.gmra.mxu0 %v1307
    %v4940 = vpop.f32.mrf.mxu0
    %v4941 = vadd.f32 %v4892, %v4940
    %v4942 = vpop.f32.mrf.mxu0
    %v4943 = vpop.f32.mrf.mxu0
    %v4944 = vadd.f32 %v4895, %v4943
    %v4945 = vpop.f32.mrf.mxu0
    %4946 = vdwg.mxu0
    %4947 = vmatprep.subr.bf16.mxu0 0
    %4948 = vmatpush1.bf16.msra.mxu0 %v3659
    %4949 = vmatprep.subr.bf16.mxu0 0
    %4950 = vmatpush1.bf16.msra.mxu0 %v3652
    %4951 = vmatprep.subr.bf16.mxu0 0
    %4952 = vmatpush1.bf16.msra.mxu0 %v3645
    %4953 = vmatprep.subr.bf16.mxu0 0
    %4954 = vmatpush1.bf16.msra.mxu0 %v3638
    %4955 = vmatprep.subr.bf16.mxu0 0
    %4956 = vmatpush1.bf16.msra.mxu0 %v3631
    %4957 = vmatprep.subr.bf16.mxu0 0
    %4958 = vmatpush1.bf16.msra.mxu0 %v3624
    %4959 = vmatprep.subr.bf16.mxu0 0
    %4960 = vmatpush1.bf16.msra.mxu0 %v3617
    %4961 = vmatprep.subr.bf16.mxu0 0
    %4962 = vmatpush1.bf16.msra.mxu0 %v3610
    %4963 = vmatprep.subr.bf16.mxu0 0
    %4964 = vmatpush2.bf16.msra.mxu0 %v3715
    %4965 = vmatprep.subr.bf16.mxu0 0
    %4966 = vmatpush2.bf16.msra.mxu0 %v3708
    %4967 = vmatprep.subr.bf16.mxu0 0
    %4968 = vmatpush2.bf16.msra.mxu0 %v3701
    %4969 = vmatprep.subr.bf16.mxu0 0
    %4970 = vmatpush2.bf16.msra.mxu0 %v3694
    %4971 = vmatprep.subr.bf16.mxu0 0
    %4972 = vmatpush2.bf16.msra.mxu0 %v3687
    %4973 = vmatprep.subr.bf16.mxu0 0
    %4974 = vmatpush2.bf16.msra.mxu0 %v3680
    %4975 = vmatprep.subr.bf16.mxu0 0
    %4976 = vmatpush2.bf16.msra.mxu0 %v3673
    %4977 = vmatprep.subr.bf16.mxu0 0
    %4978 = vmatpush2.bf16.msra.mxu0 %v3666
    %4979 = vmatprep.mubr.bf16.mxu0 %v1302
    %4980 = vmatmul.mubr.bf16.gmra.mxu0 %v1301
    %v4981 = vpop.f32.mrf.mxu0
    %v4982 = vadd.f32 %v4933, %v4981
    %v4983 = vpop.f32.mrf.mxu0
    %v4984 = vpop.f32.mrf.mxu0
    %v4985 = vadd.f32 %v4936, %v4984
    %v4986 = vpop.f32.mrf.mxu0
    %4987 = vmatprep.mubr.bf16.mxu0 %v1310
    %4988 = vmatmul.mubr.bf16.gmra.mxu0 %v1309
    %v4989 = vpop.f32.mrf.mxu0
    %v4990 = vadd.f32 %v4941, %v4989
    %v4991 = vpop.f32.mrf.mxu0
    %v4992 = vpop.f32.mrf.mxu0
    %v4993 = vadd.f32 %v4944, %v4992
    %v4994 = vpop.f32.mrf.mxu0
    %4995 = vdwg.mxu0
    %v4996 = vsub.f32 0.0, %v4358
    %v4997 = vsub.f32 0.0, %v4360
    %v4998 = vsub.f32 0.0, %v4570
    %v4999 = vsub.f32 0.0, %v4572
    %v5000 = vsub.f32 0.0, %v4782
    %v5001 = vsub.f32 0.0, %v4784
    %v5002 = vsub.f32 0.0, %v4982
    %v5003 = vsub.f32 0.0, %v4362
    %v5004 = vsub.f32 0.0, %v4364
    %v5005 = vsub.f32 0.0, %v4574
    %v5006 = vsub.f32 0.0, %v4576
    %v5007 = vsub.f32 0.0, %v4786
    %v5008 = vsub.f32 0.0, %v4788
    %v5009 = vsub.f32 0.0, %v4985
    %v5010 = vsub.f32 0.0, %v4368
    %v5011 = vsub.f32 0.0, %v4370
    %v5012 = vsub.f32 0.0, %v4580
    %v5013 = vsub.f32 0.0, %v4582
    %v5014 = vsub.f32 0.0, %v4792
    %v5015 = vsub.f32 0.0, %v4794
    %v5016 = vsub.f32 0.0, %v4990
    %v5017 = vsub.f32 0.0, %v4372
    %v5018 = vsub.f32 0.0, %v4374
    %v5019 = vsub.f32 0.0, %v4584
    %v5020 = vsub.f32 0.0, %v4586
    %v5021 = vsub.f32 0.0, %v4796
    %v5022 = vsub.f32 0.0, %v4798
    %v5023 = vsub.f32 0.0, %v4993
    %v5024 = vmul.f32 %v4996, 1.442695
    %v5025 = vpow.pop %v5024
    %v5026 = vmul.f32 %v4997, 1.442695
    %v5027 = vpow.pop %v5026
    %v5028 = vmul.f32 %v4998, 1.442695
    %v5029 = vpow.pop %v5028
    %v5030 = vmul.f32 %v4999, 1.442695
    %v5031 = vpow.pop %v5030
    %v5032 = vmul.f32 %v5000, 1.442695
    %v5033 = vpow.pop %v5032
    %v5034 = vmul.f32 %v5001, 1.442695
    %v5035 = vpow.pop %v5034
    %v5036 = vmul.f32 %v5002, 1.442695
    %v5037 = vpow.pop %v5036
    %v5038 = vmul.f32 %v5003, 1.442695
    %v5039 = vpow.pop %v5038
    %v5040 = vmul.f32 %v5004, 1.442695
    %v5041 = vpow.pop %v5040
    %v5042 = vmul.f32 %v5005, 1.442695
    %v5043 = vpow.pop %v5042
    %v5044 = vmul.f32 %v5006, 1.442695
    %v5045 = vpow.pop %v5044
    %v5046 = vmul.f32 %v5007, 1.442695
    %v5047 = vpow.pop %v5046
    %v5048 = vmul.f32 %v5008, 1.442695
    %v5049 = vpow.pop %v5048
    %v5050 = vmul.f32 %v5009, 1.442695
    %v5051 = vpow.pop %v5050
    %v5052 = vmul.f32 %v5010, 1.442695
    %v5053 = vpow.pop %v5052
    %v5054 = vmul.f32 %v5011, 1.442695
    %v5055 = vpow.pop %v5054
    %v5056 = vmul.f32 %v5012, 1.442695
    %v5057 = vpow.pop %v5056
    %v5058 = vmul.f32 %v5013, 1.442695
    %v5059 = vpow.pop %v5058
    %v5060 = vmul.f32 %v5014, 1.442695
    %v5061 = vpow.pop %v5060
    %v5062 = vmul.f32 %v5015, 1.442695
    %v5063 = vpow.pop %v5062
    %v5064 = vmul.f32 %v5016, 1.442695
    %v5065 = vpow.pop %v5064
    %v5066 = vmul.f32 %v5017, 1.442695
    %v5067 = vpow.pop %v5066
    %v5068 = vmul.f32 %v5018, 1.442695
    %v5069 = vpow.pop %v5068
    %v5070 = vmul.f32 %v5019, 1.442695
    %v5071 = vpow.pop %v5070
    %v5072 = vmul.f32 %v5020, 1.442695
    %v5073 = vpow.pop %v5072
    %v5074 = vmul.f32 %v5021, 1.442695
    %v5075 = vpow.pop %v5074
    %v5076 = vmul.f32 %v5022, 1.442695
    %v5077 = vpow.pop %v5076
    %v5078 = vmul.f32 %v5023, 1.442695
    %v5079 = vpow.pop %v5078
    %v5080 = vadd.f32 %v5025, 1.0
    %v5081 = vadd.f32 %v5027, 1.0
    %v5082 = vadd.f32 %v5029, 1.0
    %v5083 = vadd.f32 %v5031, 1.0
    %v5084 = vadd.f32 %v5033, 1.0
    %v5085 = vadd.f32 %v5035, 1.0
    %v5086 = vadd.f32 %v5037, 1.0
    %v5087 = vadd.f32 %v5039, 1.0
    %v5088 = vadd.f32 %v5041, 1.0
    %v5089 = vadd.f32 %v5043, 1.0
    %v5090 = vadd.f32 %v5045, 1.0
    %v5091 = vadd.f32 %v5047, 1.0
    %v5092 = vadd.f32 %v5049, 1.0
    %v5093 = vadd.f32 %v5051, 1.0
    %v5094 = vadd.f32 %v5053, 1.0
    %v5095 = vadd.f32 %v5055, 1.0
    %v5096 = vadd.f32 %v5057, 1.0
    %v5097 = vadd.f32 %v5059, 1.0
    %v5098 = vadd.f32 %v5061, 1.0
    %v5099 = vadd.f32 %v5063, 1.0
    %v5100 = vadd.f32 %v5065, 1.0
    %v5101 = vadd.f32 %v5067, 1.0
    %v5102 = vadd.f32 %v5069, 1.0
    %v5103 = vadd.f32 %v5071, 1.0
    %v5104 = vadd.f32 %v5073, 1.0
    %v5105 = vadd.f32 %v5075, 1.0
    %v5106 = vadd.f32 %v5077, 1.0
    %v5107 = vadd.f32 %v5079, 1.0
    %v5108 = vrcp.pop %v5080
    %v5109 = vrcp.pop %v5081
    %v5110 = vrcp.pop %v5082
    %v5111 = vrcp.pop %v5083
    %v5112 = vrcp.pop %v5084
    %v5113 = vrcp.pop %v5085
    %v5114 = vrcp.pop %v5086
    %v5115 = vrcp.pop %v5087
    %v5116 = vrcp.pop %v5088
    %v5117 = vrcp.pop %v5089
    %v5118 = vrcp.pop %v5090
    %v5119 = vrcp.pop %v5091
    %v5120 = vrcp.pop %v5092
    %v5121 = vrcp.pop %v5093
    %v5122 = vrcp.pop %v5094
    %v5123 = vrcp.pop %v5095
    %v5124 = vrcp.pop %v5096
    %v5125 = vrcp.pop %v5097
    %v5126 = vrcp.pop %v5098
    %v5127 = vrcp.pop %v5099
    %v5128 = vrcp.pop %v5100
    %v5129 = vrcp.pop %v5101
    %v5130 = vrcp.pop %v5102
    %v5131 = vrcp.pop %v5103
    %v5132 = vrcp.pop %v5104
    %v5133 = vrcp.pop %v5105
    %v5134 = vrcp.pop %v5106
    %v5135 = vrcp.pop %v5107
    %5136 = vst [vmem:[#allocation13] sm:$0xff] %v5108
    %5137 = vst [vmem:[#allocation13 + $0x8] sm:$0xff] %v5109
    %5138 = vst [vmem:[#allocation13 + $0x10] sm:$0xff] %v5110
    %5139 = vst [vmem:[#allocation13 + $0x18] sm:$0xff] %v5111
    %5140 = vst [vmem:[#allocation13 + $0x20] sm:$0xff] %v5112
    %5141 = vst [vmem:[#allocation13 + $0x28] sm:$0xff] %v5113
    %5142 = vst [vmem:[#allocation13 + $0x30] sm:$0xff] %v5114
    %5143 = vst [vmem:[#allocation13 + $0x38] sm:$0xff] %v5115
    %5144 = vst [vmem:[#allocation13 + $0x40] sm:$0xff] %v5116
    %5145 = vst [vmem:[#allocation13 + $0x48] sm:$0xff] %v5117
    %5146 = vst [vmem:[#allocation13 + $0x50] sm:$0xff] %v5118
    %5147 = vst [vmem:[#allocation13 + $0x58] sm:$0xff] %v5119
    %5148 = vst [vmem:[#allocation13 + $0x60] sm:$0xff] %v5120
    %5149 = vst [vmem:[#allocation13 + $0x68] sm:$0xff] %v5121
    %5150 = vst [vmem:[#allocation13 + $0x70] sm:$0xff] %v5122
    %5151 = vst [vmem:[#allocation13 + $0x78] sm:$0xff] %v5123
    %5152 = vst [vmem:[#allocation13 + $0x80] sm:$0xff] %v5124
    %5153 = vst [vmem:[#allocation13 + $0x88] sm:$0xff] %v5125
    %5154 = vst [vmem:[#allocation13 + $0x90] sm:$0xff] %v5126
    %5155 = vst [vmem:[#allocation13 + $0x98] sm:$0xff] %v5127
    %5156 = vst [vmem:[#allocation13 + $0xa0] sm:$0xff] %v5128
    %5157 = vst [vmem:[#allocation13 + $0xa8] sm:$0xff] %v5129
    %5158 = vst [vmem:[#allocation13 + $0xb0] sm:$0xff] %v5130
    %5159 = vst [vmem:[#allocation13 + $0xb8] sm:$0xff] %v5131
    %5160 = vst [vmem:[#allocation13 + $0xc0] sm:$0xff] %v5132
    %5161 = vst [vmem:[#allocation13 + $0xc8] sm:$0xff] %v5133
    %5162 = vst [vmem:[#allocation13 + $0xd0] sm:$0xff] %v5134
    %5163 = vst [vmem:[#allocation13 + $0xd8] sm:$0xff] %v5135
    // Predicated region
    $region54: #{tpu_custom_call.1} parent=1 // pred_check
      _
    $region55: #{tpu_custom_call.1} parent=1 // pred_check_branch
      %5165 = sbr.rel (0) target = $region57
    $region56: #{tpu_custom_call.1} parent=1 // pred_region
      %s5167 = ssub.s32 3584, 3584
      %5168 = vsyncadd [#allocation4], %s5167
      %s5169 = sshll.u32 [#allocation13], 4
      %s5170 = int_to_ptr.vmem [resolvable:$true] %s5169
      %5175 = dma.vmem_to_hbm [thread:$0]  %s5170, 3584, %s7, [#allocation4], 896, 896, 56
    $region57: #{tpu_custom_call.1} parent=1 // pred_fallthru
      _
    // Predicated region
    $region58: #{tpu_custom_call.1} parent=1 // pred_check
      _
    $region59: #{tpu_custom_call.1} parent=1 // pred_check_branch
      %5177 = sbr.rel (0) target = $region61
    $region60: #{tpu_custom_call.1} parent=1 // pred_region
      %5178 = dma.done [#allocation4], 3584
    $region61: #{tpu_custom_call.1} parent=1 // pred_fallthru
      _
    %5179 = vsyncpa [#allocation3], 1
    %5180 = vsyncpa [#allocation6], 1
    %5181 = vsyncpa [#allocation9], 1
    %5182 = vsyncpa [#allocation12], 1
    %5183 = vsyncpa [#allocation4], 1

</llo_original>
